<compile_context>
chip_gen: v6e
topology: v6e:2x2x1
jax: 0.10.0
libtpu: 0.0.40
codegen_flags: <defaults>
</compile_context>

<pallas_src>
import functools

import jax
import jax.numpy as jnp
from jax.experimental import pallas as pl
from jax.experimental.pallas import tpu as pltpu

EPS = 1e-5


def _basic_block_kernel(x_ref, w1_ref, w2_ref, bias_ref, o_ref, xrow_ref):
    """Fused BasicBlock forward for one image.

    x_ref   : (1, C, H*W)    f32        input image, channels-first, spatial flattened
    w1_ref  : (3, 3*C, C)    bf16/f32   conv1 weights * bn1 scale, [kh, kw*Cin + ci, co]
    w2_ref  : (3, 3*C, C)    bf16/f32   conv2 weights * bn2 scale
    bias_ref: (2, C)         f32        rows = (bn1 bias, bn2 bias)
    o_ref   : (1, C, H*W)    f32        output
    xrow_ref: (H+2, W, 3*C)  bf16/f32   VMEM scratch: kw-expanded, row-padded activation
    """
    Hp2, W, _ = xrow_ref.shape
    H = Hp2 - 2
    C = x_ref.shape[1]
    HW = H * W
    mm_dtype = w1_ref.dtype

    x_cf = x_ref[0]                      # (C, HW)  channels-first, as stored in HBM
    x_hwc = jnp.transpose(x_cf)          # (HW, C)  channels-last, VMEM-only transpose

    # Zero ONLY the halo cells (cheap); fill_xrow never writes them and fully
    # overwrites every interior cell, so the interior needs no clearing.
    zero_row = jnp.zeros((1, W, 3 * C), xrow_ref.dtype)
    zero_col = jnp.zeros((H, 1, C), xrow_ref.dtype)
    xrow_ref[0:1, :, :] = zero_row                        # top padding row
    xrow_ref[H + 1:H + 2, :, :] = zero_row                # bottom padding row
    xrow_ref[1:H + 1, 0:1, 0:C] = zero_col                # left pad  (kw = 0 slot)
    xrow_ref[1:H + 1, W - 1:W, 2 * C:3 * C] = zero_col    # right pad (kw = 2 slot)

    def fill_xrow(img_f32):
        """img_f32: (HW, C) f32.  Casts ONCE to the matmul dtype and builds
        xrow[r, w, kw*C:(kw+1)*C] = padded_img[r-1, w+kw-1]."""
        img = img_f32.astype(mm_dtype).reshape(H, W, C)
        xrow_ref[1:H + 1, 1:W, 0:C] = img[:, 0:W - 1, :]            # kw = 0 (left)
        xrow_ref[1:H + 1, :, C:2 * C] = img                         # kw = 1 (center)
        xrow_ref[1:H + 1, 0:W - 1, 2 * C:3 * C] = img[:, 1:W, :]    # kw = 2 (right)

    def conv3x3(w_ref, bias_row):
        """3x3 conv (BN scale pre-folded into w) as 3 fat-K matmuls (K = 3*C)."""
        # Slices are along the outer (un-tiled) dim; reshape merges sublane dims only.
        acc = jnp.dot(xrow_ref[0:H, :, :].reshape(HW, 3 * C), w_ref[0],
                      preferred_element_type=jnp.float32)
        acc = acc + jnp.dot(xrow_ref[1:H + 1, :, :].reshape(HW, 3 * C), w_ref[1],
                            preferred_element_type=jnp.float32)
        acc = acc + jnp.dot(xrow_ref[2:H + 2, :, :].reshape(HW, 3 * C), w_ref[2],
                            preferred_element_type=jnp.float32)
        return acc + bias_row                                        # (HW, C) f32

    # ---- Stage 1: relu(bn1(conv1(x))) -- intermediate never leaves VMEM ----
    fill_xrow(x_hwc)
    y1 = jnp.maximum(conv3x3(w1_ref, bias_ref[0:1, :]), 0.0)

    # ---- Stage 2: relu(bn2(conv2(y1)) + identity) ----
    fill_xrow(y1)
    y2 = conv3x3(w2_ref, bias_ref[1:2, :])                           # (HW, C)
    o_ref[0] = jnp.maximum(jnp.transpose(y2) + x_cf, 0.0).astype(o_ref.dtype)


def _round_up(v, m):
    return (v + m - 1) // m * m


def _vmem_bytes_estimate(C, H, W, mm_itemsize):
    """Rough per-step VMEM footprint with (8,128) padding."""
    def tile_bytes(second_minor, minor, itemsize, outer=1):
        return outer * _round_up(second_minor, 8) * _round_up(minor, 128) * itemsize

    hw = H * W
    x_blk = tile_bytes(C, hw, 4)                            # double-buffered
    o_blk = tile_bytes(C, hw, 4)                            # double-buffered
    w_blk = tile_bytes(3 * C, C, mm_itemsize, outer=3)      # single (whole-array VMEM)
    bias_blk = tile_bytes(2, C, 4)                          # single
    scratch = tile_bytes(W, 3 * C, mm_itemsize, outer=H + 2)
    return 2 * (x_blk + o_blk) + 2 * w_blk + bias_blk + scratch


def _vmem_cap_bytes():
    """~85% of physical VMEM on the current generation (v7x has only 64 MiB)."""
    try:
        cap = int(pltpu.get_tpu_info().vmem_capacity_bytes)
    except Exception:
        cap = 64 * 1024 * 1024   # conservative fallback (v7x per-TC VMEM)
    return int(cap * 0.85)


def init_basic_block_params(key, inplanes, planes):
    """Deterministic synthetic parameters matching BasicBlock.__init__ shapes."""
    ks = jax.random.split(key, 10)
    p = {}
    # PyTorch conv weights are (Cout, Cin, 3, 3); store HWIO for the kernel.
    w1 = jax.random.normal(ks[0], (planes, inplanes, 3, 3), jnp.float32) * 0.1
    w2 = jax.random.normal(ks[1], (planes, planes, 3, 3), jnp.float32) * 0.1
    p["w1"] = jnp.transpose(w1, (2, 3, 1, 0))  # (3,3,Cin,Cout)
    p["w2"] = jnp.transpose(w2, (2, 3, 1, 0))
    p["gamma1"] = 1.0 + 0.1 * jax.random.normal(ks[2], (planes,), jnp.float32)
    p["beta1"] = 0.1 * jax.random.normal(ks[3], (planes,), jnp.float32)
    p["mean1"] = 0.1 * jax.random.normal(ks[4], (planes,), jnp.float32)
    p["var1"] = jnp.abs(1.0 + 0.1 * jax.random.normal(ks[5], (planes,), jnp.float32))
    p["gamma2"] = 1.0 + 0.1 * jax.random.normal(ks[6], (planes,), jnp.float32)
    p["beta2"] = 0.1 * jax.random.normal(ks[7], (planes,), jnp.float32)
    p["mean2"] = 0.1 * jax.random.normal(ks[8], (planes,), jnp.float32)
    p["var2"] = jnp.abs(1.0 + 0.1 * jax.random.normal(ks[9], (planes,), jnp.float32))
    return p


@functools.partial(jax.jit, static_argnames=("matmul_dtype",))
def basic_block_forward(x_nchw, params, *, matmul_dtype=jnp.bfloat16):
    """Pallas implementation of BasicBlock.forward (stride=1, no downsample)."""
    N, C, H, W = x_nchw.shape
    HW = H * W
    # Free re-view of NCHW (identical row-major layout) -- no HBM transpose/pad.
    x_flat = x_nchw.reshape(N, C, HW)

    # Fold inference-mode BN: scale goes into the conv weights, bias stays.
    s1 = params["gamma1"] * jax.lax.rsqrt(params["var1"] + EPS)
    b1 = params["beta1"] - params["mean1"] * s1
    s2 = params["gamma2"] * jax.lax.rsqrt(params["var2"] + EPS)
    b2 = params["beta2"] - params["mean2"] * s2
    bias = jnp.stack([b1, b2], axis=0).astype(jnp.float32)            # (2, C)

    assert params["w1"].shape == (3, 3, C, C), "fused residual path needs inplanes == planes"
    # Fat-K layout (3, 3*Cin, Cout), indexed [kh, kw*Cin + ci, co], scale folded on co.
    w1_fat = (params["w1"] * s1[None, None, None, :]).reshape(3, 3 * C, C).astype(matmul_dtype)
    w2_fat = (params["w2"] * s2[None, None, None, :]).reshape(3, 3 * C, C).astype(matmul_dtype)

    compiler_kwargs = dict(dimension_semantics=("parallel",))
    vmem_need = _vmem_bytes_estimate(C, H, W, jnp.dtype(matmul_dtype).itemsize)
    if vmem_need > 16 * 1024 * 1024:
        # Larger feature maps: raise the scoped-VMEM limit, capped per generation.
        compiler_kwargs["vmem_limit_bytes"] = int(min(2 * vmem_need, _vmem_cap_bytes()))

    out_flat = pl.pallas_call(
        _basic_block_kernel,
        out_shape=jax.ShapeDtypeStruct((N, C, HW), jnp.float32),
        grid=(N,),
        in_specs=[
            pl.BlockSpec((1, C, HW), lambda n: (n, 0, 0)),             # x (pipelined)
            pl.BlockSpec(memory_space=pltpu.MemorySpace.VMEM),         # conv1 w (resident)
            pl.BlockSpec(memory_space=pltpu.MemorySpace.VMEM),         # conv2 w (resident)
            pl.BlockSpec(memory_space=pltpu.MemorySpace.VMEM),         # folded BN biases
        ],
        out_specs=pl.BlockSpec((1, C, HW), lambda n: (n, 0, 0)),
        scratch_shapes=[pltpu.VMEM((H + 2, W, 3 * C), matmul_dtype)],
        compiler_params=pltpu.CompilerParams(**compiler_kwargs),
    )(x_flat, w1_fat, w2_fat, bias)

    return out_flat.reshape(N, C, H, W)        # free re-view back to NCHW


def _reference_forward(x_nchw, params):
    """Pure-JAX (lax.conv) reference for correctness checking."""
    def conv(x, w_hwio):
        w_oihw = jnp.transpose(w_hwio, (3, 2, 0, 1))
        return jax.lax.conv_general_dilated(
            x, w_oihw, window_strides=(1, 1), padding=((1, 1), (1, 1)),
            dimension_numbers=("NCHW", "OIHW", "NCHW"))

    def bn(x, g, b, m, v):
        return (x - m[None, :, None, None]) / jnp.sqrt(v[None, :, None, None] + EPS) \
            * g[None, :, None, None] + b[None, :, None, None]

    out = jax.nn.relu(bn(conv(x_nchw, params["w1"]),
                         params["gamma1"], params["beta1"],
                         params["mean1"], params["var1"]))
    out = bn(conv(out, params["w2"]),
             params["gamma2"], params["beta2"], params["mean2"], params["var2"])
    return jax.nn.relu(out + x_nchw)


if __name__ == "__main__":
    key = jax.random.PRNGKey(0)
    k_x, k_p = jax.random.split(key)

    N, C, H, W = 2, 16, 16, 16          # inplanes == planes == 16 (no downsample)
    x = jax.random.normal(k_x, (N, C, H, W), jnp.float32)
    params = init_basic_block_params(k_p, inplanes=C, planes=C)

    y_ref = _reference_forward(x, params)

    # Strict structural check with f32 MXU operands.
    y_f32 = basic_block_forward(x, params, matmul_dtype=jnp.float32)
    jax.block_until_ready(y_f32)
    assert y_f32.shape == (N, C, H, W)
    assert bool(jnp.allclose(y_f32, y_ref, atol=5e-4, rtol=5e-4)), "f32 kernel mismatch"

    # Default path (bf16 MXU operands + bf16 scratch, f32 accumulation).
    y_bf16 = basic_block_forward(x, params)
    jax.block_until_ready(y_bf16)
    max_err = float(jnp.max(jnp.abs(y_bf16 - y_ref)))
    ref_scale = float(jnp.max(jnp.abs(y_ref)))
    assert max_err <= 0.04 * ref_scale + 0.05, f"bf16 kernel error too large: {max_err}"

    print("KERNEL_OK")
</pallas_src>

<mosaic_0001>
module attributes {stable_mosaic.version = 11 : i64} {
  func.func @_basic_block_kernel(%arg0: i32, %arg1: memref<1x16x256xf32, #tpu.memory_space<vmem>>, %arg2: memref<3x48x16xf32, #tpu.memory_space<vmem>>, %arg3: memref<3x48x16xf32, #tpu.memory_space<vmem>>, %arg4: memref<2x16xf32, #tpu.memory_space<vmem>>, %arg5: memref<1x16x256xf32, #tpu.memory_space<vmem>>, %arg6: memref<18x16x48xf32, #tpu.memory_space<vmem>>) attributes {dimension_semantics = [#tpu.dimension_semantics<parallel>], iteration_bounds = array<i64: 2>, scalar_prefetch = 0 : i64, scratch_operands = 1 : i64, tpu.core_type = #tpu.core_type<tc>, window_params = [{transform_indices = @transform_0, window_bounds = array<i64: 1, 16, 256>}, {pipeline_mode = #tpu.pipeline_mode<synchronous>, transform_indices = @transform_1, window_bounds = array<i64: 3, 48, 16>}, {pipeline_mode = #tpu.pipeline_mode<synchronous>, transform_indices = @transform_2, window_bounds = array<i64: 3, 48, 16>}, {pipeline_mode = #tpu.pipeline_mode<synchronous>, transform_indices = @transform_3, window_bounds = array<i64: 2, 16>}, {transform_indices = @transform_4, window_bounds = array<i64: 1, 16, 256>}]} {
    %c0 = arith.constant 0 : index
    %c0_0 = arith.constant 0 : index
    %c0_1 = arith.constant 0 : index
    %0 = vector.load %arg1[%c0, %c0_0, %c0_1] : memref<1x16x256xf32, #tpu.memory_space<vmem>>, vector<1x16x256xf32>
    %1 = vector.shape_cast %0 : vector<1x16x256xf32> to vector<16x256xf32>
    %2 = tpu.transpose %1, [1, 0] : vector<16x256xf32> -> vector<256x16xf32>
    %cst = arith.constant 0.000000e+00 : f32
    %3 = vector.broadcast %cst : f32 to vector<1x16x48xf32>
    %cst_2 = arith.constant 0.000000e+00 : f32
    %4 = vector.broadcast %cst_2 : f32 to vector<16x1x16xf32>
    %c0_3 = arith.constant 0 : index
    %c0_4 = arith.constant 0 : index
    %c0_5 = arith.constant 0 : index
    %5 = vector.load %arg6[%c0_3, %c0_4, %c0_5] : memref<18x16x48xf32, #tpu.memory_space<vmem>>, vector<1x16x48xf32>
    tpu.vector_store %arg6[%c0_3, %c0_4, %c0_5], %3 {strides = array<i32>} : memref<18x16x48xf32, #tpu.memory_space<vmem>>, vector<1x16x48xf32>,
    %c17 = arith.constant 17 : index
    %c0_6 = arith.constant 0 : index
    %c0_7 = arith.constant 0 : index
    %6 = vector.load %arg6[%c17, %c0_6, %c0_7] : memref<18x16x48xf32, #tpu.memory_space<vmem>>, vector<1x16x48xf32>
    tpu.vector_store %arg6[%c17, %c0_6, %c0_7], %3 {strides = array<i32>} : memref<18x16x48xf32, #tpu.memory_space<vmem>>, vector<1x16x48xf32>,
    %c1 = arith.constant 1 : index
    %c0_8 = arith.constant 0 : index
    %c0_9 = arith.constant 0 : index
    %7 = vector.load %arg6[%c1, %c0_8, %c0_9] : memref<18x16x48xf32, #tpu.memory_space<vmem>>, vector<16x1x16xf32>
    tpu.vector_store %arg6[%c1, %c0_8, %c0_9], %4 {strides = array<i32>} : memref<18x16x48xf32, #tpu.memory_space<vmem>>, vector<16x1x16xf32>,
    %c1_10 = arith.constant 1 : index
    %c15 = arith.constant 15 : index
    %c32 = arith.constant 32 : index
    %8 = vector.load %arg6[%c1_10, %c15, %c32] : memref<18x16x48xf32, #tpu.memory_space<vmem>>, vector<16x1x16xf32>
    tpu.vector_store %arg6[%c1_10, %c15, %c32], %4 {strides = array<i32>} : memref<18x16x48xf32, #tpu.memory_space<vmem>>, vector<16x1x16xf32>,
    %9 = vector.shape_cast %2 : vector<256x16xf32> to vector<16x16x16xf32>
    %10 = vector.extract_strided_slice %9 {offsets = [0, 0, 0], sizes = [16, 15, 16], strides = [1, 1, 1]} : vector<16x16x16xf32> to vector<16x15x16xf32>
    %c1_11 = arith.constant 1 : index
    %c1_12 = arith.constant 1 : index
    %c0_13 = arith.constant 0 : index
    %11 = vector.load %arg6[%c1_11, %c1_12, %c0_13] : memref<18x16x48xf32, #tpu.memory_space<vmem>>, vector<16x15x16xf32>
    tpu.vector_store %arg6[%c1_11, %c1_12, %c0_13], %10 {strides = array<i32>} : memref<18x16x48xf32, #tpu.memory_space<vmem>>, vector<16x15x16xf32>,
    %c1_14 = arith.constant 1 : index
    %c0_15 = arith.constant 0 : index
    %c16 = arith.constant 16 : index
    %12 = vector.load %arg6[%c1_14, %c0_15, %c16] : memref<18x16x48xf32, #tpu.memory_space<vmem>>, vector<16x16x16xf32>
    tpu.vector_store %arg6[%c1_14, %c0_15, %c16], %9 {strides = array<i32>} : memref<18x16x48xf32, #tpu.memory_space<vmem>>, vector<16x16x16xf32>,
    %13 = vector.extract_strided_slice %9 {offsets = [0, 1, 0], sizes = [16, 15, 16], strides = [1, 1, 1]} : vector<16x16x16xf32> to vector<16x15x16xf32>
    %c1_16 = arith.constant 1 : index
    %c0_17 = arith.constant 0 : index
    %c32_18 = arith.constant 32 : index
    %14 = vector.load %arg6[%c1_16, %c0_17, %c32_18] : memref<18x16x48xf32, #tpu.memory_space<vmem>>, vector<16x15x16xf32>
    tpu.vector_store %arg6[%c1_16, %c0_17, %c32_18], %13 {strides = array<i32>} : memref<18x16x48xf32, #tpu.memory_space<vmem>>, vector<16x15x16xf32>,
    %c0_19 = arith.constant 0 : index
    %c0_20 = arith.constant 0 : index
    %15 = vector.load %arg4[%c0_19, %c0_20] : memref<2x16xf32, #tpu.memory_space<vmem>>, vector<1x16xf32>
    %c0_21 = arith.constant 0 : index
    %c0_22 = arith.constant 0 : index
    %c0_23 = arith.constant 0 : index
    %16 = vector.load %arg6[%c0_21, %c0_22, %c0_23] : memref<18x16x48xf32, #tpu.memory_space<vmem>>, vector<16x16x48xf32>
    %17 = vector.shape_cast %16 : vector<16x16x48xf32> to vector<256x48xf32>
    %c0_24 = arith.constant 0 : index
    %c0_25 = arith.constant 0 : index
    %c0_26 = arith.constant 0 : index
    %18 = vector.load %arg2[%c0_24, %c0_25, %c0_26] : memref<3x48x16xf32, #tpu.memory_space<vmem>>, vector<1x48x16xf32>
    %19 = vector.shape_cast %18 : vector<1x48x16xf32> to vector<48x16xf32>
    %cst_27 = arith.constant dense<0.000000e+00> : vector<256x16xf32>
    %20 = tpu.matmul %17, %19, %cst_27 {dimension_numbers = #tpu.dot_dimension_numbers<[1], [0], [0], [1], [0, 0, 1, 1], [], []>} : vector<256x48xf32>, vector<48x16xf32>, vector<256x16xf32> -> vector<256x16xf32>
    %c1_28 = arith.constant 1 : index
    %c0_29 = arith.constant 0 : index
    %c0_30 = arith.constant 0 : index
    %21 = vector.load %arg6[%c1_28, %c0_29, %c0_30] : memref<18x16x48xf32, #tpu.memory_space<vmem>>, vector<16x16x48xf32>
    %22 = vector.shape_cast %21 : vector<16x16x48xf32> to vector<256x48xf32>
    %c1_31 = arith.constant 1 : index
    %c0_32 = arith.constant 0 : index
    %c0_33 = arith.constant 0 : index
    %23 = vector.load %arg2[%c1_31, %c0_32, %c0_33] : memref<3x48x16xf32, #tpu.memory_space<vmem>>, vector<1x48x16xf32>
    %24 = vector.shape_cast %23 : vector<1x48x16xf32> to vector<48x16xf32>
    %cst_34 = arith.constant dense<0.000000e+00> : vector<256x16xf32>
    %25 = tpu.matmul %22, %24, %cst_34 {dimension_numbers = #tpu.dot_dimension_numbers<[1], [0], [0], [1], [0, 0, 1, 1], [], []>} : vector<256x48xf32>, vector<48x16xf32>, vector<256x16xf32> -> vector<256x16xf32>
    %26 = arith.addf %20, %25 : vector<256x16xf32>
    %c2 = arith.constant 2 : index
    %c0_35 = arith.constant 0 : index
    %c0_36 = arith.constant 0 : index
    %27 = vector.load %arg6[%c2, %c0_35, %c0_36] : memref<18x16x48xf32, #tpu.memory_space<vmem>>, vector<16x16x48xf32>
    %28 = vector.shape_cast %27 : vector<16x16x48xf32> to vector<256x48xf32>
    %c2_37 = arith.constant 2 : index
    %c0_38 = arith.constant 0 : index
    %c0_39 = arith.constant 0 : index
    %29 = vector.load %arg2[%c2_37, %c0_38, %c0_39] : memref<3x48x16xf32, #tpu.memory_space<vmem>>, vector<1x48x16xf32>
    %30 = vector.shape_cast %29 : vector<1x48x16xf32> to vector<48x16xf32>
    %cst_40 = arith.constant dense<0.000000e+00> : vector<256x16xf32>
    %31 = tpu.matmul %28, %30, %cst_40 {dimension_numbers = #tpu.dot_dimension_numbers<[1], [0], [0], [1], [0, 0, 1, 1], [], []>} : vector<256x48xf32>, vector<48x16xf32>, vector<256x16xf32> -> vector<256x16xf32>
    %32 = arith.addf %26, %31 : vector<256x16xf32>
    %33 = vector.broadcast %15 : vector<1x16xf32> to vector<256x16xf32>
    %34 = arith.addf %32, %33 : vector<256x16xf32>
    %cst_41 = arith.constant 0.000000e+00 : f32
    %35 = vector.broadcast %cst_41 : f32 to vector<256x16xf32>
    %36 = arith.maximumf %34, %35 : vector<256x16xf32>
    %37 = vector.shape_cast %36 : vector<256x16xf32> to vector<16x16x16xf32>
    %38 = vector.extract_strided_slice %37 {offsets = [0, 0, 0], sizes = [16, 15, 16], strides = [1, 1, 1]} : vector<16x16x16xf32> to vector<16x15x16xf32>
    %c1_42 = arith.constant 1 : index
    %c1_43 = arith.constant 1 : index
    %c0_44 = arith.constant 0 : index
    %39 = vector.load %arg6[%c1_42, %c1_43, %c0_44] : memref<18x16x48xf32, #tpu.memory_space<vmem>>, vector<16x15x16xf32>
    tpu.vector_store %arg6[%c1_42, %c1_43, %c0_44], %38 {strides = array<i32>} : memref<18x16x48xf32, #tpu.memory_space<vmem>>, vector<16x15x16xf32>,
    %c1_45 = arith.constant 1 : index
    %c0_46 = arith.constant 0 : index
    %c16_47 = arith.constant 16 : index
    %40 = vector.load %arg6[%c1_45, %c0_46, %c16_47] : memref<18x16x48xf32, #tpu.memory_space<vmem>>, vector<16x16x16xf32>
    tpu.vector_store %arg6[%c1_45, %c0_46, %c16_47], %37 {strides = array<i32>} : memref<18x16x48xf32, #tpu.memory_space<vmem>>, vector<16x16x16xf32>,
    %41 = vector.extract_strided_slice %37 {offsets = [0, 1, 0], sizes = [16, 15, 16], strides = [1, 1, 1]} : vector<16x16x16xf32> to vector<16x15x16xf32>
    %c1_48 = arith.constant 1 : index
    %c0_49 = arith.constant 0 : index
    %c32_50 = arith.constant 32 : index
    %42 = vector.load %arg6[%c1_48, %c0_49, %c32_50] : memref<18x16x48xf32, #tpu.memory_space<vmem>>, vector<16x15x16xf32>
    tpu.vector_store %arg6[%c1_48, %c0_49, %c32_50], %41 {strides = array<i32>} : memref<18x16x48xf32, #tpu.memory_space<vmem>>, vector<16x15x16xf32>,
    %c1_51 = arith.constant 1 : index
    %c0_52 = arith.constant 0 : index
    %43 = vector.load %arg4[%c1_51, %c0_52] : memref<2x16xf32, #tpu.memory_space<vmem>>, vector<1x16xf32>
    %c0_53 = arith.constant 0 : index
    %c0_54 = arith.constant 0 : index
    %c0_55 = arith.constant 0 : index
    %44 = vector.load %arg6[%c0_53, %c0_54, %c0_55] : memref<18x16x48xf32, #tpu.memory_space<vmem>>, vector<16x16x48xf32>
    %45 = vector.shape_cast %44 : vector<16x16x48xf32> to vector<256x48xf32>
    %c0_56 = arith.constant 0 : index
    %c0_57 = arith.constant 0 : index
    %c0_58 = arith.constant 0 : index
    %46 = vector.load %arg3[%c0_56, %c0_57, %c0_58] : memref<3x48x16xf32, #tpu.memory_space<vmem>>, vector<1x48x16xf32>
    %47 = vector.shape_cast %46 : vector<1x48x16xf32> to vector<48x16xf32>
    %cst_59 = arith.constant dense<0.000000e+00> : vector<256x16xf32>
    %48 = tpu.matmul %45, %47, %cst_59 {dimension_numbers = #tpu.dot_dimension_numbers<[1], [0], [0], [1], [0, 0, 1, 1], [], []>} : vector<256x48xf32>, vector<48x16xf32>, vector<256x16xf32> -> vector<256x16xf32>
    %c1_60 = arith.constant 1 : index
    %c0_61 = arith.constant 0 : index
    %c0_62 = arith.constant 0 : index
    %49 = vector.load %arg6[%c1_60, %c0_61, %c0_62] : memref<18x16x48xf32, #tpu.memory_space<vmem>>, vector<16x16x48xf32>
    %50 = vector.shape_cast %49 : vector<16x16x48xf32> to vector<256x48xf32>
    %c1_63 = arith.constant 1 : index
    %c0_64 = arith.constant 0 : index
    %c0_65 = arith.constant 0 : index
    %51 = vector.load %arg3[%c1_63, %c0_64, %c0_65] : memref<3x48x16xf32, #tpu.memory_space<vmem>>, vector<1x48x16xf32>
    %52 = vector.shape_cast %51 : vector<1x48x16xf32> to vector<48x16xf32>
    %cst_66 = arith.constant dense<0.000000e+00> : vector<256x16xf32>
    %53 = tpu.matmul %50, %52, %cst_66 {dimension_numbers = #tpu.dot_dimension_numbers<[1], [0], [0], [1], [0, 0, 1, 1], [], []>} : vector<256x48xf32>, vector<48x16xf32>, vector<256x16xf32> -> vector<256x16xf32>
    %54 = arith.addf %48, %53 : vector<256x16xf32>
    %c2_67 = arith.constant 2 : index
    %c0_68 = arith.constant 0 : index
    %c0_69 = arith.constant 0 : index
    %55 = vector.load %arg6[%c2_67, %c0_68, %c0_69] : memref<18x16x48xf32, #tpu.memory_space<vmem>>, vector<16x16x48xf32>
    %56 = vector.shape_cast %55 : vector<16x16x48xf32> to vector<256x48xf32>
    %c2_70 = arith.constant 2 : index
    %c0_71 = arith.constant 0 : index
    %c0_72 = arith.constant 0 : index
    %57 = vector.load %arg3[%c2_70, %c0_71, %c0_72] : memref<3x48x16xf32, #tpu.memory_space<vmem>>, vector<1x48x16xf32>
    %58 = vector.shape_cast %57 : vector<1x48x16xf32> to vector<48x16xf32>
    %cst_73 = arith.constant dense<0.000000e+00> : vector<256x16xf32>
    %59 = tpu.matmul %56, %58, %cst_73 {dimension_numbers = #tpu.dot_dimension_numbers<[1], [0], [0], [1], [0, 0, 1, 1], [], []>} : vector<256x48xf32>, vector<48x16xf32>, vector<256x16xf32> -> vector<256x16xf32>
    %60 = arith.addf %54, %59 : vector<256x16xf32>
    %61 = vector.broadcast %43 : vector<1x16xf32> to vector<256x16xf32>
    %62 = arith.addf %60, %61 : vector<256x16xf32>
    %63 = tpu.transpose %62, [1, 0] : vector<256x16xf32> -> vector<16x256xf32>
    %64 = arith.addf %63, %1 : vector<16x256xf32>
    %cst_74 = arith.constant 0.000000e+00 : f32
    %65 = vector.broadcast %cst_74 : f32 to vector<16x256xf32>
    %66 = arith.maximumf %64, %65 : vector<16x256xf32>
    %c0_75 = arith.constant 0 : index
    %c0_76 = arith.constant 0 : index
    %c0_77 = arith.constant 0 : index
    %67 = vector.load %arg5[%c0_75, %c0_76, %c0_77] : memref<1x16x256xf32, #tpu.memory_space<vmem>>, vector<1x16x256xf32>
    %68 = vector.shape_cast %67 : vector<1x16x256xf32> to vector<16x256xf32>
    %69 = vector.shape_cast %66 : vector<16x256xf32> to vector<1x16x256xf32>
    tpu.vector_store %arg5[%c0_75, %c0_76, %c0_77], %69 {strides = array<i32>} : memref<1x16x256xf32, #tpu.memory_space<vmem>>, vector<1x16x256xf32>,
    return
  }
  func.func @transform_0(%arg0: i32) -> (i32, i32, i32) {
    %c0_i32 = arith.constant 0 : i32
    %c0_i32_0 = arith.constant 0 : i32
    %c0_i32_1 = arith.constant 0 : i32
    return %arg0, %c0_i32, %c0_i32_0 : i32, i32, i32
  }
  func.func @transform_1(%arg0: i32) -> (i32, i32, i32) {
    %c0_i32 = arith.constant 0 : i32
    %c0_i32_0 = arith.constant 0 : i32
    %c0_i32_1 = arith.constant 0 : i32
    %c0_i32_2 = arith.constant 0 : i32
    return %c0_i32, %c0_i32_0, %c0_i32_1 : i32, i32, i32
  }
  func.func @transform_2(%arg0: i32) -> (i32, i32, i32) {
    %c0_i32 = arith.constant 0 : i32
    %c0_i32_0 = arith.constant 0 : i32
    %c0_i32_1 = arith.constant 0 : i32
    %c0_i32_2 = arith.constant 0 : i32
    return %c0_i32, %c0_i32_0, %c0_i32_1 : i32, i32, i32
  }
  func.func @transform_3(%arg0: i32) -> (i32, i32) {
    %c0_i32 = arith.constant 0 : i32
    %c0_i32_0 = arith.constant 0 : i32
    %c0_i32_1 = arith.constant 0 : i32
    return %c0_i32, %c0_i32_0 : i32, i32
  }
  func.func @transform_4(%arg0: i32) -> (i32, i32, i32) {
    %c0_i32 = arith.constant 0 : i32
    %c0_i32_0 = arith.constant 0 : i32
    %c0_i32_1 = arith.constant 0 : i32
    return %arg0, %c0_i32, %c0_i32_0 : i32, i32, i32
  }
}

</mosaic_0001>

<llo_original>
// kernel: basic_block_forward.1
$region0: #{basic_block_forward.1}
  #allocation0 [shape = 'u32[]', space=smem, size = 0x4, offset = 0x4, fixed_abs, tag = 'smem constant byte address 0x4 - core index']
  #allocation1 [shape = 'u32[144,128]{1,0:T(1,128)}', space=vmem, size = 0x12000, scoped, tag = 'internal scratch']
  #allocation2 [shape = 'f32[18,16,48]{2,1,0:T(8,128)}', space=vmem, size = 0x24000, scoped, tag = 'scratch operand']
  %s0 = inlined_call_operand.vmem [shape: f32[2,16,256], index: 0, kind: input, shape index: {}]
  %s1 = inlined_call_operand.vmem [shape: f32[3,48,16], index: 1, kind: input, shape index: {}]
  %s2 = inlined_call_operand.vmem [shape: f32[3,48,16], index: 2, kind: input, shape index: {}]
  %s3 = inlined_call_operand.vmem [shape: f32[2,16], index: 3, kind: input, shape index: {}]
  %s4 = inlined_call_operand.vmem [shape: f32[2,16,256], index: 4, kind: output, shape index: {}]
  %s5 = sld [smem:[#allocation0]]
  $region49: #{basic_block_forward.1} parent=0
    _
  %s7 = ssub.s32 1, %s5
  %s8 = scalar_select 0, %s7, %s5
  loop: start=0, step=1, limit=4
  $region2: #{basic_block_forward.1} parent=0 // loop_pre_header
    _
  $region3: #{basic_block_forward.1} parent=0 // loop_header
    %s10 = sphi 0, %s14
    %p11 = scmp.ge.s32.totalorder %s10, 4
    %s20 = sphi 0, %s22
    %s23 = sphi 0, %s20
    %s24 = sphi 0, %s23
    %s40 = sphi 0, %s24
    %s44 = sphi 0, %s44
    %s46 = sphi 0, %s44
    %s47 = sphi 0, %s46
    %s61 = sphi 0, %s47
    %s65 = sphi 0, %s65
    %s67 = sphi 0, %s65
    %s68 = sphi 0, %s67
    %s82 = sphi 0, %s68
    %s86 = sphi 0, %s86
    %s88 = sphi 0, %s86
    %s89 = sphi 0, %s88
    %s103 = sphi 0, %s89
    %s109 = sphi 0, %s111
    %s112 = sphi 0, %s109
    %s113 = sphi 0, %s112
    %s129 = sphi 0, %s113
  $region4: #{basic_block_forward.1} parent=0 // loop_header_branch
    %13 = sbr.rel (%p11) target = $region8
  $region5: #{basic_block_forward.1} parent=0 // loop_body
    %s15 = ssub.s32 %s10, 1
    %s16 = ssub.s32 %s10, 2
    %s17 = sadd.s32 %s10, 1
    %s18 = ssub.s32 %s10, %s17
    %p19 = scmp.eq.s32.totalorder %s18, 0
    %s21 = sadd.s32 %s20, 1
    %s22 = scalar_select %p19, %s20, %s21
    %p25 = pneg %p19
    %p26 = scmp.eq.s32.totalorder %s10, 1
    %p27 = por %p25, %p26
    %p28 = scmp.ne.s32.totalorder %s20, %s23
    %p29 = scmp.eq.s32.totalorder %s10, 0
    %p30 = por %p28, %p29
    %p31 = scmp.ne.s32.totalorder %s20, %s23
    %p32 = scmp.eq.s32.totalorder %s15, 1
    %p33 = por %p31, %p32
    %p34 = scmp.ne.s32.totalorder %s23, %s24
    %p35 = scmp.eq.s32.totalorder %s15, 0
    %p36 = por %p34, %p35
    %p37 = scmp.ne.s32.totalorder %s23, %s24
    %p38 = scmp.eq.s32.totalorder %s16, 1
    %p39 = por %p37, %p38
    %p41 = scmp.ne.s32.totalorder %s24, %s40
    %p42 = scmp.eq.s32.totalorder %s16, 0
    %p43 = por %p41, %p42
    %s45 = sadd.s32 %s44, 1
    %p48 = scmp.eq.s32.totalorder %s10, 1
    %p49 = scmp.ne.s32.totalorder %s44, %s46
    %p50 = scmp.eq.s32.totalorder %s10, 0
    %p51 = por %p49, %p50
    %p52 = scmp.ne.s32.totalorder %s44, %s46
    %p53 = scmp.eq.s32.totalorder %s15, 1
    %p54 = por %p52, %p53
    %p55 = scmp.ne.s32.totalorder %s46, %s47
    %p56 = scmp.eq.s32.totalorder %s15, 0
    %p57 = por %p55, %p56
    %p58 = scmp.ne.s32.totalorder %s46, %s47
    %p59 = scmp.eq.s32.totalorder %s16, 1
    %p60 = por %p58, %p59
    %p62 = scmp.ne.s32.totalorder %s47, %s61
    %p63 = scmp.eq.s32.totalorder %s16, 0
    %p64 = por %p62, %p63
    %s66 = sadd.s32 %s65, 1
    %p69 = scmp.eq.s32.totalorder %s10, 1
    %p70 = scmp.ne.s32.totalorder %s65, %s67
    %p71 = scmp.eq.s32.totalorder %s10, 0
    %p72 = por %p70, %p71
    %p73 = scmp.ne.s32.totalorder %s65, %s67
    %p74 = scmp.eq.s32.totalorder %s15, 1
    %p75 = por %p73, %p74
    %p76 = scmp.ne.s32.totalorder %s67, %s68
    %p77 = scmp.eq.s32.totalorder %s15, 0
    %p78 = por %p76, %p77
    %p79 = scmp.ne.s32.totalorder %s67, %s68
    %p80 = scmp.eq.s32.totalorder %s16, 1
    %p81 = por %p79, %p80
    %p83 = scmp.ne.s32.totalorder %s68, %s82
    %p84 = scmp.eq.s32.totalorder %s16, 0
    %p85 = por %p83, %p84
    %s87 = sadd.s32 %s86, 1
    %p90 = scmp.eq.s32.totalorder %s10, 1
    %p91 = scmp.ne.s32.totalorder %s86, %s88
    %p92 = scmp.eq.s32.totalorder %s10, 0
    %p93 = por %p91, %p92
    %p94 = scmp.ne.s32.totalorder %s86, %s88
    %p95 = scmp.eq.s32.totalorder %s15, 1
    %p96 = por %p94, %p95
    %p97 = scmp.ne.s32.totalorder %s88, %s89
    %p98 = scmp.eq.s32.totalorder %s15, 0
    %p99 = por %p97, %p98
    %p100 = scmp.ne.s32.totalorder %s88, %s89
    %p101 = scmp.eq.s32.totalorder %s16, 1
    %p102 = por %p100, %p101
    %p104 = scmp.ne.s32.totalorder %s89, %s103
    %p105 = scmp.eq.s32.totalorder %s16, 0
    %p106 = por %p104, %p105
    %s107 = ssub.s32 %s10, %s17
    %p108 = scmp.eq.s32.totalorder %s107, 0
    %s110 = sadd.s32 %s109, 1
    %s111 = scalar_select %p108, %s109, %s110
    %p114 = pneg %p108
    %p115 = scmp.eq.s32.totalorder %s10, 1
    %p116 = por %p114, %p115
    %p117 = scmp.ne.s32.totalorder %s109, %s112
    %p118 = scmp.eq.s32.totalorder %s10, 0
    %p119 = por %p117, %p118
    %p120 = scmp.ne.s32.totalorder %s109, %s112
    %p121 = scmp.eq.s32.totalorder %s15, 1
    %p122 = por %p120, %p121
    %p123 = scmp.ne.s32.totalorder %s112, %s113
    %p124 = scmp.eq.s32.totalorder %s15, 0
    %p125 = por %p123, %p124
    %p126 = scmp.ne.s32.totalorder %s112, %s113
    %p127 = scmp.eq.s32.totalorder %s16, 1
    %p128 = por %p126, %p127
    %p130 = scmp.ne.s32.totalorder %s113, %s129
    %p131 = scmp.eq.s32.totalorder %s16, 0
    %p132 = por %p130, %p131
    %p133 = scmp.le.s32.totalorder 1, %s10
    %p134 = scmp.lt.s32.totalorder %s10, 3
    %p135 = pnand %p133, %p134
    %p136 = pneg %p135
    // Predicated region
    $region9: #{basic_block_forward.1} parent=5 // pred_check
      _
    $region10: #{basic_block_forward.1} parent=5 // pred_check_branch
      %138 = sbr.rel (%p135) target = $region12
    $region11: #{basic_block_forward.1} parent=5 // pred_region
      %s139 = ssub.s32 %s10, 1
      // Predicated region
      $region13: #{basic_block_forward.1} parent=11 // pred_check
        %p140 = pneg %p57
      $region14: #{basic_block_forward.1} parent=11 // pred_check_branch
        %142 = sbr.rel (%p140) target = $region16
      $region15: #{basic_block_forward.1} parent=11 // pred_region
        _
      $region16: #{basic_block_forward.1} parent=11 // pred_fallthru
        _
      // Predicated region
      $region17: #{basic_block_forward.1} parent=11 // pred_check
        %p143 = pneg %p78
      $region18: #{basic_block_forward.1} parent=11 // pred_check_branch
        %145 = sbr.rel (%p143) target = $region20
      $region19: #{basic_block_forward.1} parent=11 // pred_region
        _
      $region20: #{basic_block_forward.1} parent=11 // pred_fallthru
        _
      // Predicated region
      $region21: #{basic_block_forward.1} parent=11 // pred_check
        %p146 = pneg %p99
      $region22: #{basic_block_forward.1} parent=11 // pred_check_branch
        %148 = sbr.rel (%p146) target = $region24
      $region23: #{basic_block_forward.1} parent=11 // pred_region
        _
      $region24: #{basic_block_forward.1} parent=11 // pred_fallthru
        _
    $region12: #{basic_block_forward.1} parent=5 // pred_fallthru
      _
    %p149 = scmp.lt.s32.totalorder %s10, 2
    // Predicated region
    $region25: #{basic_block_forward.1} parent=5 // pred_check
      %p150 = pneg %p149
    $region26: #{basic_block_forward.1} parent=5 // pred_check_branch
      %152 = sbr.rel (%p150) target = $region28
    $region27: #{basic_block_forward.1} parent=5 // pred_region
      // Predicated region
      $region29: #{basic_block_forward.1} parent=27 // pred_check
        %p153 = pneg %p30
      $region30: #{basic_block_forward.1} parent=27 // pred_check_branch
        %155 = sbr.rel (%p153) target = $region32
      $region31: #{basic_block_forward.1} parent=27 // pred_region
        %p156 = scmp.lt.s32.totalorder %s10, 1
        %s157 = scalar_select %p156, %s10, 1
        %s158 = smul.addr %s157, 4
        %s159 = smul.addr %s158, 8
        %s160 = scalar_lea.vmem %s0, %s159
      $region32: #{basic_block_forward.1} parent=27 // pred_fallthru
        _
    $region28: #{basic_block_forward.1} parent=5 // pred_fallthru
      _
    %p161 = scmp.le.s32.totalorder 1, %s10
    %p162 = scmp.lt.s32.totalorder %s10, 3
    %p163 = pnand %p161, %p162
    %p164 = pneg %p163
    // Predicated region
    $region33: #{basic_block_forward.1} parent=5 // pred_check
      _
    $region34: #{basic_block_forward.1} parent=5 // pred_check_branch
      %166 = sbr.rel (%p163) target = $region36
    $region35: #{basic_block_forward.1} parent=5 // pred_region
      %s167 = ssub.s32 %s10, 1
      %p168 = scmp.lt.s32.totalorder %s15, 1
      %s169 = scalar_select %p168, %s15, 1
      %s170 = smul.addr %s169, 4
      %s171 = smul.addr %s170, 8
      %s172 = scalar_lea.vmem %s0, %s171
      %p173 = pneg %p36
      %p174 = pneg %p33
      %p175 = pneg %p57
      %p176 = pneg %p54
      %p177 = pneg %p78
      %p178 = pneg %p75
      %p179 = pneg %p99
      %p180 = pneg %p96
      %p181 = pneg %p125
      %p182 = pneg %p122
      %p183 = scmp.lt.s32.totalorder %s15, 1
      %s184 = scalar_select %p183, %s15, 1
      %s185 = smul.addr %s184, 4
      %s186 = smul.addr %s185, 8
      %s187 = scalar_lea.vmem %s4, %s186
      %p188 = scmp.lt.s32.totalorder %s15, 1
      %s189 = scalar_select %p188, %s15, 1
      %s190 = smul.addr %s189, 4
      %s191 = smul.addr %s190, 8
      %s192 = scalar_lea.vmem %s0, %s191
      %p193 = scmp.lt.s32.totalorder %s15, 1
      %s194 = scalar_select %p193, %s15, 1
      %s195 = smul.addr %s194, 4
      %s196 = smul.addr %s195, 8
      %s197 = scalar_lea.vmem %s4, %s196
      %v198 = vld [vmem:[%s192] sm:$0xff]
      %v199 = vld [vmem:[%s192 + $0x8] sm:$0xff]
      %v200 = vld [vmem:[%s192 + $0x10] sm:$0xff]
      %v201 = vld [vmem:[%s192 + $0x18] sm:$0xff]
      %202 = vxpose.xlu0.b32.start [1/16] %v198, 128
      %203 = vxpose.xlu0.b32.cont [2/16] %v200, 128
      %204 = vxpose.xlu0.b32.cont [3/16] 0.0, 128
      %205 = vxpose.xlu0.b32.cont [4/16] 0.0, 128
      %206 = vxpose.xlu0.b32.cont [5/16] 0.0, 128
      %207 = vxpose.xlu0.b32.cont [6/16] 0.0, 128
      %208 = vxpose.xlu0.b32.cont [7/16] 0.0, 128
      %209 = vxpose.xlu0.b32.cont [8/16] 0.0, 128
      %210 = vxpose.xlu0.b32.cont [9/16] 0.0, 128
      %211 = vxpose.xlu0.b32.cont [10/16] 0.0, 128
      %212 = vxpose.xlu0.b32.cont [11/16] 0.0, 128
      %213 = vxpose.xlu0.b32.cont [12/16] 0.0, 128
      %214 = vxpose.xlu0.b32.cont [13/16] 0.0, 128
      %215 = vxpose.xlu0.b32.cont [14/16] 0.0, 128
      %216 = vxpose.xlu0.b32.cont [15/16] 0.0, 128
      %217 = vxpose.xlu0.b32.end [16/16] 0.0, 128
      %v218 = vpop.trf.xlu0
      %v219 = vpop.trf.xlu0
      %v220 = vpop.trf.xlu0
      %v221 = vpop.trf.xlu0
      %v222 = vpop.trf.xlu0
      %v223 = vpop.trf.xlu0
      %v224 = vpop.trf.xlu0
      %v225 = vpop.trf.xlu0
      %v226 = vpop.trf.xlu0
      %v227 = vpop.trf.xlu0
      %v228 = vpop.trf.xlu0
      %v229 = vpop.trf.xlu0
      %v230 = vpop.trf.xlu0
      %v231 = vpop.trf.xlu0
      %v232 = vpop.trf.xlu0
      %v233 = vpop.trf.xlu0
      %234 = vxpose.xlu0.b32.start [1/16] %v199, 128
      %235 = vxpose.xlu0.b32.cont [2/16] %v201, 128
      %236 = vxpose.xlu0.b32.cont [3/16] 0.0, 128
      %237 = vxpose.xlu0.b32.cont [4/16] 0.0, 128
      %238 = vxpose.xlu0.b32.cont [5/16] 0.0, 128
      %239 = vxpose.xlu0.b32.cont [6/16] 0.0, 128
      %240 = vxpose.xlu0.b32.cont [7/16] 0.0, 128
      %241 = vxpose.xlu0.b32.cont [8/16] 0.0, 128
      %242 = vxpose.xlu0.b32.cont [9/16] 0.0, 128
      %243 = vxpose.xlu0.b32.cont [10/16] 0.0, 128
      %244 = vxpose.xlu0.b32.cont [11/16] 0.0, 128
      %245 = vxpose.xlu0.b32.cont [12/16] 0.0, 128
      %246 = vxpose.xlu0.b32.cont [13/16] 0.0, 128
      %247 = vxpose.xlu0.b32.cont [14/16] 0.0, 128
      %248 = vxpose.xlu0.b32.cont [15/16] 0.0, 128
      %249 = vxpose.xlu0.b32.end [16/16] 0.0, 128
      %v250 = vpop.trf.xlu0
      %v251 = vpop.trf.xlu0
      %v252 = vpop.trf.xlu0
      %v253 = vpop.trf.xlu0
      %v254 = vpop.trf.xlu0
      %v255 = vpop.trf.xlu0
      %v256 = vpop.trf.xlu0
      %v257 = vpop.trf.xlu0
      %v258 = vpop.trf.xlu0
      %v259 = vpop.trf.xlu0
      %v260 = vpop.trf.xlu0
      %v261 = vpop.trf.xlu0
      %v262 = vpop.trf.xlu0
      %v263 = vpop.trf.xlu0
      %v264 = vpop.trf.xlu0
      %v265 = vpop.trf.xlu0
      %vm266 = vcmask 392192
      %267 = vst.msk [vmem:[#allocation2] sm:$0xff] %vm266, 0.0
      %268 = vst.msk [vmem:[#allocation2 + $0x8] sm:$0xff] %vm266, 0.0
      %s269 = scalar_lea.vmem [#allocation2], 272
      %270 = vst.msk [vmem:[%s269] sm:$0xff] %vm266, 0.0
      %271 = vst.msk [vmem:[%s269 + $0x8] sm:$0xff] %vm266, 0.0
      %s272 = scalar_lea.vmem [#allocation2], 16
      %vm273 = vcmask 122880
      %274 = vst.msk [vmem:[%s272] sm:$0x1] %vm273, 0.0
      %275 = vst.msk [vmem:[%s272 + $0x10] sm:$0x1] %vm273, 0.0
      %276 = vst.msk [vmem:[%s272 + $0x20] sm:$0x1] %vm273, 0.0
      %277 = vst.msk [vmem:[%s272 + $0x30] sm:$0x1] %vm273, 0.0
      %278 = vst.msk [vmem:[%s272 + $0x40] sm:$0x1] %vm273, 0.0
      %279 = vst.msk [vmem:[%s272 + $0x50] sm:$0x1] %vm273, 0.0
      %280 = vst.msk [vmem:[%s272 + $0x60] sm:$0x1] %vm273, 0.0
      %281 = vst.msk [vmem:[%s272 + $0x70] sm:$0x1] %vm273, 0.0
      %282 = vst.msk [vmem:[%s272 + $0x80] sm:$0x1] %vm273, 0.0
      %283 = vst.msk [vmem:[%s272 + $0x90] sm:$0x1] %vm273, 0.0
      %284 = vst.msk [vmem:[%s272 + $0xa0] sm:$0x1] %vm273, 0.0
      %285 = vst.msk [vmem:[%s272 + $0xb0] sm:$0x1] %vm273, 0.0
      %286 = vst.msk [vmem:[%s272 + $0xc0] sm:$0x1] %vm273, 0.0
      %287 = vst.msk [vmem:[%s272 + $0xd0] sm:$0x1] %vm273, 0.0
      %288 = vst.msk [vmem:[%s272 + $0xe0] sm:$0x1] %vm273, 0.0
      %289 = vst.msk [vmem:[%s272 + $0xf0] sm:$0x1] %vm273, 0.0
      %vm290 = vcmask 385280
      %291 = vst.msk [vmem:[%s272 + $0xf] sm:$0x1] %vm290, 0.0
      %292 = vst.msk [vmem:[%s272 + $0x1f] sm:$0x1] %vm290, 0.0
      %293 = vst.msk [vmem:[%s272 + $0x2f] sm:$0x1] %vm290, 0.0
      %294 = vst.msk [vmem:[%s272 + $0x3f] sm:$0x1] %vm290, 0.0
      %295 = vst.msk [vmem:[%s272 + $0x4f] sm:$0x1] %vm290, 0.0
      %296 = vst.msk [vmem:[%s272 + $0x5f] sm:$0x1] %vm290, 0.0
      %297 = vst.msk [vmem:[%s272 + $0x6f] sm:$0x1] %vm290, 0.0
      %298 = vst.msk [vmem:[%s272 + $0x7f] sm:$0x1] %vm290, 0.0
      %299 = vst.msk [vmem:[%s272 + $0x8f] sm:$0x1] %vm290, 0.0
      %300 = vst.msk [vmem:[%s272 + $0x9f] sm:$0x1] %vm290, 0.0
      %301 = vst.msk [vmem:[%s272 + $0xaf] sm:$0x1] %vm290, 0.0
      %302 = vst.msk [vmem:[%s272 + $0xbf] sm:$0x1] %vm290, 0.0
      %303 = vst.msk [vmem:[%s272 + $0xcf] sm:$0x1] %vm290, 0.0
      %304 = vst.msk [vmem:[%s272 + $0xdf] sm:$0x1] %vm290, 0.0
      %305 = vst.msk [vmem:[%s272 + $0xef] sm:$0x1] %vm290, 0.0
      %306 = vst.msk [vmem:[%s272 + $0xff] sm:$0x1] %vm290, 0.0
      %vm307 = vcmask 130048
      %308 = vst.msk [vmem:[%s272 + $0x1] sm:$0xff] %vm307, %v218
      %vm309 = vcmask 129024
      %310 = vst.msk [vmem:[%s272 + $0x9] sm:$0x7f] %vm309, %v219
      %311 = vst.msk [vmem:[%s272 + $0x11] sm:$0xff] %vm307, %v220
      %312 = vst.msk [vmem:[%s272 + $0x19] sm:$0x7f] %vm309, %v221
      %313 = vst.msk [vmem:[%s272 + $0x21] sm:$0xff] %vm307, %v222
      %314 = vst.msk [vmem:[%s272 + $0x29] sm:$0x7f] %vm309, %v223
      %315 = vst.msk [vmem:[%s272 + $0x31] sm:$0xff] %vm307, %v224
      %316 = vst.msk [vmem:[%s272 + $0x39] sm:$0x7f] %vm309, %v225
      %317 = vst.msk [vmem:[%s272 + $0x41] sm:$0xff] %vm307, %v226
      %318 = vst.msk [vmem:[%s272 + $0x49] sm:$0x7f] %vm309, %v227
      %319 = vst.msk [vmem:[%s272 + $0x51] sm:$0xff] %vm307, %v228
      %320 = vst.msk [vmem:[%s272 + $0x59] sm:$0x7f] %vm309, %v229
      %321 = vst.msk [vmem:[%s272 + $0x61] sm:$0xff] %vm307, %v230
      %322 = vst.msk [vmem:[%s272 + $0x69] sm:$0x7f] %vm309, %v231
      %323 = vst.msk [vmem:[%s272 + $0x71] sm:$0xff] %vm307, %v232
      %324 = vst.msk [vmem:[%s272 + $0x79] sm:$0x7f] %vm309, %v233
      %325 = vst.msk [vmem:[%s272 + $0x81] sm:$0xff] %vm307, %v250
      %326 = vst.msk [vmem:[%s272 + $0x89] sm:$0x7f] %vm309, %v251
      %327 = vst.msk [vmem:[%s272 + $0x91] sm:$0xff] %vm307, %v252
      %328 = vst.msk [vmem:[%s272 + $0x99] sm:$0x7f] %vm309, %v253
      %329 = vst.msk [vmem:[%s272 + $0xa1] sm:$0xff] %vm307, %v254
      %330 = vst.msk [vmem:[%s272 + $0xa9] sm:$0x7f] %vm309, %v255
      %331 = vst.msk [vmem:[%s272 + $0xb1] sm:$0xff] %vm307, %v256
      %332 = vst.msk [vmem:[%s272 + $0xb9] sm:$0x7f] %vm309, %v257
      %333 = vst.msk [vmem:[%s272 + $0xc1] sm:$0xff] %vm307, %v258
      %334 = vst.msk [vmem:[%s272 + $0xc9] sm:$0x7f] %vm309, %v259
      %335 = vst.msk [vmem:[%s272 + $0xd1] sm:$0xff] %vm307, %v260
      %336 = vst.msk [vmem:[%s272 + $0xd9] sm:$0x7f] %vm309, %v261
      %337 = vst.msk [vmem:[%s272 + $0xe1] sm:$0xff] %vm307, %v262
      %338 = vst.msk [vmem:[%s272 + $0xe9] sm:$0x7f] %vm309, %v263
      %339 = vst.msk [vmem:[%s272 + $0xf1] sm:$0xff] %vm307, %v264
      %340 = vst.msk [vmem:[%s272 + $0xf9] sm:$0x7f] %vm309, %v265
      %373 = vrot.lane.b32.xlu0 %v218, 16
      %v374 = vpop.permute.xlu0 %373
      %375 = vrot.lane.b32.xlu0 %v219, 16
      %v376 = vpop.permute.xlu0 %375
      %377 = vrot.lane.b32.xlu0 %v220, 16
      %v378 = vpop.permute.xlu0 %377
      %379 = vrot.lane.b32.xlu0 %v221, 16
      %v380 = vpop.permute.xlu0 %379
      %381 = vrot.lane.b32.xlu0 %v222, 16
      %v382 = vpop.permute.xlu0 %381
      %383 = vrot.lane.b32.xlu0 %v223, 16
      %v384 = vpop.permute.xlu0 %383
      %385 = vrot.lane.b32.xlu0 %v224, 16
      %v386 = vpop.permute.xlu0 %385
      %387 = vrot.lane.b32.xlu0 %v225, 16
      %v388 = vpop.permute.xlu0 %387
      %389 = vrot.lane.b32.xlu0 %v226, 16
      %v390 = vpop.permute.xlu0 %389
      %391 = vrot.lane.b32.xlu0 %v227, 16
      %v392 = vpop.permute.xlu0 %391
      %393 = vrot.lane.b32.xlu0 %v228, 16
      %v394 = vpop.permute.xlu0 %393
      %395 = vrot.lane.b32.xlu0 %v229, 16
      %v396 = vpop.permute.xlu0 %395
      %397 = vrot.lane.b32.xlu0 %v230, 16
      %v398 = vpop.permute.xlu0 %397
      %399 = vrot.lane.b32.xlu0 %v231, 16
      %v400 = vpop.permute.xlu0 %399
      %401 = vrot.lane.b32.xlu0 %v232, 16
      %v402 = vpop.permute.xlu0 %401
      %403 = vrot.lane.b32.xlu0 %v233, 16
      %v404 = vpop.permute.xlu0 %403
      %405 = vrot.lane.b32.xlu0 %v250, 16
      %v406 = vpop.permute.xlu0 %405
      %407 = vrot.lane.b32.xlu0 %v251, 16
      %v408 = vpop.permute.xlu0 %407
      %409 = vrot.lane.b32.xlu0 %v252, 16
      %v410 = vpop.permute.xlu0 %409
      %411 = vrot.lane.b32.xlu0 %v253, 16
      %v412 = vpop.permute.xlu0 %411
      %413 = vrot.lane.b32.xlu0 %v254, 16
      %v414 = vpop.permute.xlu0 %413
      %415 = vrot.lane.b32.xlu0 %v255, 16
      %v416 = vpop.permute.xlu0 %415
      %417 = vrot.lane.b32.xlu0 %v256, 16
      %v418 = vpop.permute.xlu0 %417
      %419 = vrot.lane.b32.xlu0 %v257, 16
      %v420 = vpop.permute.xlu0 %419
      %421 = vrot.lane.b32.xlu0 %v258, 16
      %v422 = vpop.permute.xlu0 %421
      %423 = vrot.lane.b32.xlu0 %v259, 16
      %v424 = vpop.permute.xlu0 %423
      %425 = vrot.lane.b32.xlu0 %v260, 16
      %v426 = vpop.permute.xlu0 %425
      %427 = vrot.lane.b32.xlu0 %v261, 16
      %v428 = vpop.permute.xlu0 %427
      %429 = vrot.lane.b32.xlu0 %v262, 16
      %v430 = vpop.permute.xlu0 %429
      %431 = vrot.lane.b32.xlu0 %v263, 16
      %v432 = vpop.permute.xlu0 %431
      %433 = vrot.lane.b32.xlu0 %v264, 16
      %v434 = vpop.permute.xlu0 %433
      %435 = vrot.lane.b32.xlu0 %v265, 16
      %v436 = vpop.permute.xlu0 %435
      %vm469 = vcmask 261248
      %470 = vst.msk [vmem:[%s272] sm:$0xff] %vm469, %v374
      %471 = vst.msk [vmem:[%s272 + $0x8] sm:$0xff] %vm469, %v376
      %472 = vst.msk [vmem:[%s272 + $0x10] sm:$0xff] %vm469, %v378
      %473 = vst.msk [vmem:[%s272 + $0x18] sm:$0xff] %vm469, %v380
      %474 = vst.msk [vmem:[%s272 + $0x20] sm:$0xff] %vm469, %v382
      %475 = vst.msk [vmem:[%s272 + $0x28] sm:$0xff] %vm469, %v384
      %476 = vst.msk [vmem:[%s272 + $0x30] sm:$0xff] %vm469, %v386
      %477 = vst.msk [vmem:[%s272 + $0x38] sm:$0xff] %vm469, %v388
      %478 = vst.msk [vmem:[%s272 + $0x40] sm:$0xff] %vm469, %v390
      %479 = vst.msk [vmem:[%s272 + $0x48] sm:$0xff] %vm469, %v392
      %480 = vst.msk [vmem:[%s272 + $0x50] sm:$0xff] %vm469, %v394
      %481 = vst.msk [vmem:[%s272 + $0x58] sm:$0xff] %vm469, %v396
      %482 = vst.msk [vmem:[%s272 + $0x60] sm:$0xff] %vm469, %v398
      %483 = vst.msk [vmem:[%s272 + $0x68] sm:$0xff] %vm469, %v400
      %484 = vst.msk [vmem:[%s272 + $0x70] sm:$0xff] %vm469, %v402
      %485 = vst.msk [vmem:[%s272 + $0x78] sm:$0xff] %vm469, %v404
      %486 = vst.msk [vmem:[%s272 + $0x80] sm:$0xff] %vm469, %v406
      %487 = vst.msk [vmem:[%s272 + $0x88] sm:$0xff] %vm469, %v408
      %488 = vst.msk [vmem:[%s272 + $0x90] sm:$0xff] %vm469, %v410
      %489 = vst.msk [vmem:[%s272 + $0x98] sm:$0xff] %vm469, %v412
      %490 = vst.msk [vmem:[%s272 + $0xa0] sm:$0xff] %vm469, %v414
      %491 = vst.msk [vmem:[%s272 + $0xa8] sm:$0xff] %vm469, %v416
      %492 = vst.msk [vmem:[%s272 + $0xb0] sm:$0xff] %vm469, %v418
      %493 = vst.msk [vmem:[%s272 + $0xb8] sm:$0xff] %vm469, %v420
      %494 = vst.msk [vmem:[%s272 + $0xc0] sm:$0xff] %vm469, %v422
      %495 = vst.msk [vmem:[%s272 + $0xc8] sm:$0xff] %vm469, %v424
      %496 = vst.msk [vmem:[%s272 + $0xd0] sm:$0xff] %vm469, %v426
      %497 = vst.msk [vmem:[%s272 + $0xd8] sm:$0xff] %vm469, %v428
      %498 = vst.msk [vmem:[%s272 + $0xe0] sm:$0xff] %vm469, %v430
      %499 = vst.msk [vmem:[%s272 + $0xe8] sm:$0xff] %vm469, %v432
      %500 = vst.msk [vmem:[%s272 + $0xf0] sm:$0xff] %vm469, %v434
      %501 = vst.msk [vmem:[%s272 + $0xf8] sm:$0xff] %vm469, %v436
      %502 = vrot.lane.b32.xlu0 %v218, 32
      %v503 = vpop.permute.xlu0 %502
      %504 = vrot.lane.b32.xlu0 %v219, 32
      %v505 = vpop.permute.xlu0 %504
      %506 = vrot.lane.b32.xlu0 %v220, 32
      %v507 = vpop.permute.xlu0 %506
      %508 = vrot.lane.b32.xlu0 %v221, 32
      %v509 = vpop.permute.xlu0 %508
      %510 = vrot.lane.b32.xlu0 %v222, 32
      %v511 = vpop.permute.xlu0 %510
      %512 = vrot.lane.b32.xlu0 %v223, 32
      %v513 = vpop.permute.xlu0 %512
      %514 = vrot.lane.b32.xlu0 %v224, 32
      %v515 = vpop.permute.xlu0 %514
      %516 = vrot.lane.b32.xlu0 %v225, 32
      %v517 = vpop.permute.xlu0 %516
      %518 = vrot.lane.b32.xlu0 %v226, 32
      %v519 = vpop.permute.xlu0 %518
      %520 = vrot.lane.b32.xlu0 %v227, 32
      %v521 = vpop.permute.xlu0 %520
      %522 = vrot.lane.b32.xlu0 %v228, 32
      %v523 = vpop.permute.xlu0 %522
      %524 = vrot.lane.b32.xlu0 %v229, 32
      %v525 = vpop.permute.xlu0 %524
      %526 = vrot.lane.b32.xlu0 %v230, 32
      %v527 = vpop.permute.xlu0 %526
      %528 = vrot.lane.b32.xlu0 %v231, 32
      %v529 = vpop.permute.xlu0 %528
      %530 = vrot.lane.b32.xlu0 %v232, 32
      %v531 = vpop.permute.xlu0 %530
      %532 = vrot.lane.b32.xlu0 %v233, 32
      %v533 = vpop.permute.xlu0 %532
      %534 = vrot.lane.b32.xlu0 %v250, 32
      %v535 = vpop.permute.xlu0 %534
      %536 = vrot.lane.b32.xlu0 %v251, 32
      %v537 = vpop.permute.xlu0 %536
      %538 = vrot.lane.b32.xlu0 %v252, 32
      %v539 = vpop.permute.xlu0 %538
      %540 = vrot.lane.b32.xlu0 %v253, 32
      %v541 = vpop.permute.xlu0 %540
      %542 = vrot.lane.b32.xlu0 %v254, 32
      %v543 = vpop.permute.xlu0 %542
      %544 = vrot.lane.b32.xlu0 %v255, 32
      %v545 = vpop.permute.xlu0 %544
      %546 = vrot.lane.b32.xlu0 %v256, 32
      %v547 = vpop.permute.xlu0 %546
      %548 = vrot.lane.b32.xlu0 %v257, 32
      %v549 = vpop.permute.xlu0 %548
      %550 = vrot.lane.b32.xlu0 %v258, 32
      %v551 = vpop.permute.xlu0 %550
      %552 = vrot.lane.b32.xlu0 %v259, 32
      %v553 = vpop.permute.xlu0 %552
      %554 = vrot.lane.b32.xlu0 %v260, 32
      %v555 = vpop.permute.xlu0 %554
      %556 = vrot.lane.b32.xlu0 %v261, 32
      %v557 = vpop.permute.xlu0 %556
      %558 = vrot.lane.b32.xlu0 %v262, 32
      %v559 = vpop.permute.xlu0 %558
      %560 = vrot.lane.b32.xlu0 %v263, 32
      %v561 = vpop.permute.xlu0 %560
      %562 = vrot.lane.b32.xlu0 %v264, 32
      %v563 = vpop.permute.xlu0 %562
      %564 = vrot.lane.b32.xlu0 %v265, 32
      %v565 = vpop.permute.xlu0 %564
      %vm598 = vcmask 392449
      %599 = vst.msk [vmem:[%s272 - $0x1] sm:$0xfe] %vm598, %v503
      %vm600 = vcmask 392448
      %601 = vst.msk [vmem:[%s272 + $0x7] sm:$0xff] %vm600, %v505
      %602 = vst.msk [vmem:[%s272 + $0xf] sm:$0xfe] %vm598, %v507
      %603 = vst.msk [vmem:[%s272 + $0x17] sm:$0xff] %vm600, %v509
      %604 = vst.msk [vmem:[%s272 + $0x1f] sm:$0xfe] %vm598, %v511
      %605 = vst.msk [vmem:[%s272 + $0x27] sm:$0xff] %vm600, %v513
      %606 = vst.msk [vmem:[%s272 + $0x2f] sm:$0xfe] %vm598, %v515
      %607 = vst.msk [vmem:[%s272 + $0x37] sm:$0xff] %vm600, %v517
      %608 = vst.msk [vmem:[%s272 + $0x3f] sm:$0xfe] %vm598, %v519
      %609 = vst.msk [vmem:[%s272 + $0x47] sm:$0xff] %vm600, %v521
      %610 = vst.msk [vmem:[%s272 + $0x4f] sm:$0xfe] %vm598, %v523
      %611 = vst.msk [vmem:[%s272 + $0x57] sm:$0xff] %vm600, %v525
      %612 = vst.msk [vmem:[%s272 + $0x5f] sm:$0xfe] %vm598, %v527
      %613 = vst.msk [vmem:[%s272 + $0x67] sm:$0xff] %vm600, %v529
      %614 = vst.msk [vmem:[%s272 + $0x6f] sm:$0xfe] %vm598, %v531
      %615 = vst.msk [vmem:[%s272 + $0x77] sm:$0xff] %vm600, %v533
      %616 = vst.msk [vmem:[%s272 + $0x7f] sm:$0xfe] %vm598, %v535
      %617 = vst.msk [vmem:[%s272 + $0x87] sm:$0xff] %vm600, %v537
      %618 = vst.msk [vmem:[%s272 + $0x8f] sm:$0xfe] %vm598, %v539
      %619 = vst.msk [vmem:[%s272 + $0x97] sm:$0xff] %vm600, %v541
      %620 = vst.msk [vmem:[%s272 + $0x9f] sm:$0xfe] %vm598, %v543
      %621 = vst.msk [vmem:[%s272 + $0xa7] sm:$0xff] %vm600, %v545
      %622 = vst.msk [vmem:[%s272 + $0xaf] sm:$0xfe] %vm598, %v547
      %623 = vst.msk [vmem:[%s272 + $0xb7] sm:$0xff] %vm600, %v549
      %624 = vst.msk [vmem:[%s272 + $0xbf] sm:$0xfe] %vm598, %v551
      %625 = vst.msk [vmem:[%s272 + $0xc7] sm:$0xff] %vm600, %v553
      %626 = vst.msk [vmem:[%s272 + $0xcf] sm:$0xfe] %vm598, %v555
      %627 = vst.msk [vmem:[%s272 + $0xd7] sm:$0xff] %vm600, %v557
      %628 = vst.msk [vmem:[%s272 + $0xdf] sm:$0xfe] %vm598, %v559
      %629 = vst.msk [vmem:[%s272 + $0xe7] sm:$0xff] %vm600, %v561
      %630 = vst.msk [vmem:[%s272 + $0xef] sm:$0xfe] %vm598, %v563
      %631 = vst.msk [vmem:[%s272 + $0xf7] sm:$0xff] %vm600, %v565
      %v632 = vld [vmem:[%s3] sm:$0x1]
      %v633 = vld [vmem:[#allocation2] sm:$0xff]
      %v634 = vld [vmem:[#allocation2 + $0x8] sm:$0xff]
      %v635 = vld [vmem:[#allocation2 + $0x10] sm:$0xff]
      %v636 = vld [vmem:[#allocation2 + $0x18] sm:$0xff]
      %v637 = vld [vmem:[#allocation2 + $0x20] sm:$0xff]
      %v638 = vld [vmem:[#allocation2 + $0x28] sm:$0xff]
      %v639 = vld [vmem:[#allocation2 + $0x30] sm:$0xff]
      %v640 = vld [vmem:[#allocation2 + $0x38] sm:$0xff]
      %v641 = vld [vmem:[#allocation2 + $0x40] sm:$0xff]
      %v642 = vld [vmem:[#allocation2 + $0x48] sm:$0xff]
      %v643 = vld [vmem:[#allocation2 + $0x50] sm:$0xff]
      %v644 = vld [vmem:[#allocation2 + $0x58] sm:$0xff]
      %v645 = vld [vmem:[#allocation2 + $0x60] sm:$0xff]
      %v646 = vld [vmem:[#allocation2 + $0x68] sm:$0xff]
      %v647 = vld [vmem:[#allocation2 + $0x70] sm:$0xff]
      %v648 = vld [vmem:[#allocation2 + $0x78] sm:$0xff]
      %v649 = vld [vmem:[#allocation2 + $0x80] sm:$0xff]
      %v650 = vld [vmem:[#allocation2 + $0x88] sm:$0xff]
      %v651 = vld [vmem:[#allocation2 + $0x90] sm:$0xff]
      %v652 = vld [vmem:[#allocation2 + $0x98] sm:$0xff]
      %v653 = vld [vmem:[#allocation2 + $0xa0] sm:$0xff]
      %v654 = vld [vmem:[#allocation2 + $0xa8] sm:$0xff]
      %v655 = vld [vmem:[#allocation2 + $0xb0] sm:$0xff]
      %v656 = vld [vmem:[#allocation2 + $0xb8] sm:$0xff]
      %v657 = vld [vmem:[#allocation2 + $0xc0] sm:$0xff]
      %v658 = vld [vmem:[#allocation2 + $0xc8] sm:$0xff]
      %v659 = vld [vmem:[#allocation2 + $0xd0] sm:$0xff]
      %v660 = vld [vmem:[#allocation2 + $0xd8] sm:$0xff]
      %v661 = vld [vmem:[#allocation2 + $0xe0] sm:$0xff]
      %v662 = vld [vmem:[#allocation2 + $0xe8] sm:$0xff]
      %v663 = vld [vmem:[#allocation2 + $0xf0] sm:$0xff]
      %v664 = vld [vmem:[#allocation2 + $0xf8] sm:$0xff]
      %v665 = vld [vmem:[%s1] sm:$0xff]
      %v666 = vld [vmem:[%s1 + $0x8] sm:$0xff]
      %v667 = vld [vmem:[%s1 + $0x10] sm:$0xff]
      %v668 = vld [vmem:[%s1 + $0x18] sm:$0xff]
      %v669 = vld [vmem:[%s1 + $0x20] sm:$0xff]
      %v670 = vld [vmem:[%s1 + $0x28] sm:$0xff]
      %v671 = vld [vmem:[%s272] sm:$0xff]
      %v672 = vld [vmem:[%s272 + $0x8] sm:$0xff]
      %v673 = vld [vmem:[%s272 + $0x10] sm:$0xff]
      %v674 = vld [vmem:[%s272 + $0x18] sm:$0xff]
      %v675 = vld [vmem:[%s272 + $0x20] sm:$0xff]
      %v676 = vld [vmem:[%s272 + $0x28] sm:$0xff]
      %v677 = vld [vmem:[%s272 + $0x30] sm:$0xff]
      %v678 = vld [vmem:[%s272 + $0x38] sm:$0xff]
      %v679 = vld [vmem:[%s272 + $0x40] sm:$0xff]
      %v680 = vld [vmem:[%s272 + $0x48] sm:$0xff]
      %v681 = vld [vmem:[%s272 + $0x50] sm:$0xff]
      %v682 = vld [vmem:[%s272 + $0x58] sm:$0xff]
      %v683 = vld [vmem:[%s272 + $0x60] sm:$0xff]
      %v684 = vld [vmem:[%s272 + $0x68] sm:$0xff]
      %v685 = vld [vmem:[%s272 + $0x70] sm:$0xff]
      %v686 = vld [vmem:[%s272 + $0x78] sm:$0xff]
      %v687 = vld [vmem:[%s272 + $0x80] sm:$0xff]
      %v688 = vld [vmem:[%s272 + $0x88] sm:$0xff]
      %v689 = vld [vmem:[%s272 + $0x90] sm:$0xff]
      %v690 = vld [vmem:[%s272 + $0x98] sm:$0xff]
      %v691 = vld [vmem:[%s272 + $0xa0] sm:$0xff]
      %v692 = vld [vmem:[%s272 + $0xa8] sm:$0xff]
      %v693 = vld [vmem:[%s272 + $0xb0] sm:$0xff]
      %v694 = vld [vmem:[%s272 + $0xb8] sm:$0xff]
      %v695 = vld [vmem:[%s272 + $0xc0] sm:$0xff]
      %v696 = vld [vmem:[%s272 + $0xc8] sm:$0xff]
      %v697 = vld [vmem:[%s272 + $0xd0] sm:$0xff]
      %v698 = vld [vmem:[%s272 + $0xd8] sm:$0xff]
      %v699 = vld [vmem:[%s272 + $0xe0] sm:$0xff]
      %v700 = vld [vmem:[%s272 + $0xe8] sm:$0xff]
      %v701 = vld [vmem:[%s272 + $0xf0] sm:$0xff]
      %v702 = vld [vmem:[%s272 + $0xf8] sm:$0xff]
      %s703 = scalar_lea.vmem %s1, 48
      %v704 = vld [vmem:[%s703] sm:$0xff]
      %v705 = vld [vmem:[%s703 + $0x8] sm:$0xff]
      %v706 = vld [vmem:[%s703 + $0x10] sm:$0xff]
      %v707 = vld [vmem:[%s703 + $0x18] sm:$0xff]
      %v708 = vld [vmem:[%s703 + $0x20] sm:$0xff]
      %v709 = vld [vmem:[%s703 + $0x28] sm:$0xff]
      %v711 = vsel %vm266, %v671, 0
      %v714 = vsel %vm266, %v672, 0
      %v717 = vsel %vm266, %v673, 0
      %v720 = vsel %vm266, %v674, 0
      %v723 = vsel %vm266, %v675, 0
      %v726 = vsel %vm266, %v676, 0
      %v729 = vsel %vm266, %v677, 0
      %v732 = vsel %vm266, %v678, 0
      %v735 = vsel %vm266, %v679, 0
      %v738 = vsel %vm266, %v680, 0
      %v741 = vsel %vm266, %v681, 0
      %v744 = vsel %vm266, %v682, 0
      %v747 = vsel %vm266, %v683, 0
      %v750 = vsel %vm266, %v684, 0
      %v753 = vsel %vm266, %v685, 0
      %v756 = vsel %vm266, %v686, 0
      %v759 = vsel %vm266, %v687, 0
      %v762 = vsel %vm266, %v688, 0
      %v765 = vsel %vm266, %v689, 0
      %v768 = vsel %vm266, %v690, 0
      %v771 = vsel %vm266, %v691, 0
      %v774 = vsel %vm266, %v692, 0
      %v777 = vsel %vm266, %v693, 0
      %v780 = vsel %vm266, %v694, 0
      %v783 = vsel %vm266, %v695, 0
      %v786 = vsel %vm266, %v696, 0
      %v789 = vsel %vm266, %v697, 0
      %v792 = vsel %vm266, %v698, 0
      %v795 = vsel %vm266, %v699, 0
      %v798 = vsel %vm266, %v700, 0
      %v801 = vsel %vm266, %v701, 0
      %v804 = vsel %vm266, %v702, 0
      %806 = vmatprep.subr.mxu0 0.0
      %807 = vmatpush1.msra.mxu0 0.0
      %808 = vmatprep.subr.mxu0 0.0
      %809 = vmatpush1.msra.mxu0 0.0
      %810 = vmatprep.subr.mxu0 0.0
      %811 = vmatpush1.msra.mxu0 0.0
      %812 = vmatprep.subr.mxu0 0.0
      %813 = vmatpush1.msra.mxu0 0.0
      %814 = vmatprep.subr.mxu0 0.0
      %815 = vmatpush1.msra.mxu0 0.0
      %816 = vmatprep.subr.mxu0 0.0
      %817 = vmatpush1.msra.mxu0 0.0
      %818 = vmatprep.subr.mxu0 0.0
      %819 = vmatpush1.msra.mxu0 0.0
      %820 = vmatprep.subr.mxu0 0.0
      %821 = vmatpush1.msra.mxu0 0.0
      %822 = vmatprep.subr.mxu0 0.0
      %823 = vmatpush1.msra.mxu0 0.0
      %824 = vmatprep.subr.mxu0 0.0
      %825 = vmatpush1.msra.mxu0 0.0
      %826 = vmatprep.subr.mxu0 0.0
      %827 = vmatpush1.msra.mxu0 %v709
      %828 = vmatprep.subr.mxu0 0.0
      %829 = vmatpush1.msra.mxu0 %v708
      %830 = vmatprep.subr.mxu0 0.0
      %831 = vmatpush1.msra.mxu0 %v707
      %832 = vmatprep.subr.mxu0 0.0
      %833 = vmatpush1.msra.mxu0 %v706
      %834 = vmatprep.subr.mxu0 0.0
      %835 = vmatpush1.msra.mxu0 %v705
      %836 = vmatprep.subr.mxu0 0.0
      %837 = vmatpush1.msra.mxu0 %v704
      %838 = vmatprep.subr.mxu0 0.0
      %839 = vmatpush2.msra.mxu0 0.0
      %840 = vmatprep.subr.mxu0 0.0
      %841 = vmatpush2.msra.mxu0 0.0
      %842 = vmatprep.subr.mxu0 0.0
      %843 = vmatpush2.msra.mxu0 0.0
      %844 = vmatprep.subr.mxu0 0.0
      %845 = vmatpush2.msra.mxu0 0.0
      %846 = vmatprep.subr.mxu0 0.0
      %847 = vmatpush2.msra.mxu0 0.0
      %848 = vmatprep.subr.mxu0 0.0
      %849 = vmatpush2.msra.mxu0 0.0
      %850 = vmatprep.subr.mxu0 0.0
      %851 = vmatpush2.msra.mxu0 0.0
      %852 = vmatprep.subr.mxu0 0.0
      %853 = vmatpush2.msra.mxu0 0.0
      %854 = vmatprep.subr.mxu0 0.0
      %855 = vmatpush2.msra.mxu0 0.0
      %856 = vmatprep.subr.mxu0 0.0
      %857 = vmatpush2.msra.mxu0 0.0
      %858 = vmatprep.subr.mxu0 0.0
      %859 = vmatpush2.msra.mxu0 0.0
      %860 = vmatprep.subr.mxu0 0.0
      %861 = vmatpush2.msra.mxu0 0.0
      %862 = vmatprep.subr.mxu0 0.0
      %863 = vmatpush2.msra.mxu0 0.0
      %864 = vmatprep.subr.mxu0 0.0
      %865 = vmatpush2.msra.mxu0 0.0
      %866 = vmatprep.subr.mxu0 0.0
      %867 = vmatpush2.msra.mxu0 0.0
      %868 = vmatprep.subr.mxu0 0.0
      %869 = vmatpush2.msra.mxu0 0.0
      %870 = vmatprep.mubr.f32.mxu0 0.0
      %871 = vmatmul.mubr.f32.gmra.mxu0 %v711
      %v872 = vpop.f32.mrf.mxu0
      %v873 = vadd.f32 0.0, %v872
      %v874 = vpop.f32.mrf.mxu0
      %875 = vmatprep.mubr.f32.mxu0 0.0
      %876 = vmatmul.mubr.f32.gmra.mxu0 %v714
      %v877 = vpop.f32.mrf.mxu0
      %v878 = vadd.f32 0.0, %v877
      %v879 = vpop.f32.mrf.mxu0
      %880 = vmatprep.mubr.f32.mxu0 0.0
      %881 = vmatmul.mubr.f32.gmra.mxu0 %v717
      %v882 = vpop.f32.mrf.mxu0
      %v883 = vadd.f32 0.0, %v882
      %v884 = vpop.f32.mrf.mxu0
      %885 = vmatprep.mubr.f32.mxu0 0.0
      %886 = vmatmul.mubr.f32.gmra.mxu0 %v720
      %v887 = vpop.f32.mrf.mxu0
      %v888 = vadd.f32 0.0, %v887
      %v889 = vpop.f32.mrf.mxu0
      %890 = vmatprep.mubr.f32.mxu0 0.0
      %891 = vmatmul.mubr.f32.gmra.mxu0 %v723
      %v892 = vpop.f32.mrf.mxu0
      %v893 = vadd.f32 0.0, %v892
      %v894 = vpop.f32.mrf.mxu0
      %895 = vmatprep.mubr.f32.mxu0 0.0
      %896 = vmatmul.mubr.f32.gmra.mxu0 %v726
      %v897 = vpop.f32.mrf.mxu0
      %v898 = vadd.f32 0.0, %v897
      %v899 = vpop.f32.mrf.mxu0
      %900 = vmatprep.mubr.f32.mxu0 0.0
      %901 = vmatmul.mubr.f32.gmra.mxu0 %v729
      %v902 = vpop.f32.mrf.mxu0
      %v903 = vadd.f32 0.0, %v902
      %v904 = vpop.f32.mrf.mxu0
      %905 = vmatprep.mubr.f32.mxu0 0.0
      %906 = vmatmul.mubr.f32.gmra.mxu0 %v732
      %v907 = vpop.f32.mrf.mxu0
      %v908 = vadd.f32 0.0, %v907
      %v909 = vpop.f32.mrf.mxu0
      %910 = vmatprep.mubr.f32.mxu0 0.0
      %911 = vmatmul.mubr.f32.gmra.mxu0 %v735
      %v912 = vpop.f32.mrf.mxu0
      %v913 = vadd.f32 0.0, %v912
      %v914 = vpop.f32.mrf.mxu0
      %915 = vmatprep.mubr.f32.mxu0 0.0
      %916 = vmatmul.mubr.f32.gmra.mxu0 %v738
      %v917 = vpop.f32.mrf.mxu0
      %v918 = vadd.f32 0.0, %v917
      %v919 = vpop.f32.mrf.mxu0
      %920 = vmatprep.mubr.f32.mxu0 0.0
      %921 = vmatmul.mubr.f32.gmra.mxu0 %v741
      %v922 = vpop.f32.mrf.mxu0
      %v923 = vadd.f32 0.0, %v922
      %v924 = vpop.f32.mrf.mxu0
      %925 = vmatprep.mubr.f32.mxu0 0.0
      %926 = vmatmul.mubr.f32.gmra.mxu0 %v744
      %v927 = vpop.f32.mrf.mxu0
      %v928 = vadd.f32 0.0, %v927
      %v929 = vpop.f32.mrf.mxu0
      %930 = vmatprep.mubr.f32.mxu0 0.0
      %931 = vmatmul.mubr.f32.gmra.mxu0 %v747
      %v932 = vpop.f32.mrf.mxu0
      %v933 = vadd.f32 0.0, %v932
      %v934 = vpop.f32.mrf.mxu0
      %935 = vmatprep.mubr.f32.mxu0 0.0
      %936 = vmatmul.mubr.f32.gmra.mxu0 %v750
      %v937 = vpop.f32.mrf.mxu0
      %v938 = vadd.f32 0.0, %v937
      %v939 = vpop.f32.mrf.mxu0
      %940 = vmatprep.mubr.f32.mxu0 0.0
      %941 = vmatmul.mubr.f32.gmra.mxu0 %v753
      %v942 = vpop.f32.mrf.mxu0
      %v943 = vadd.f32 0.0, %v942
      %v944 = vpop.f32.mrf.mxu0
      %945 = vmatprep.mubr.f32.mxu0 0.0
      %946 = vmatmul.mubr.f32.gmra.mxu0 %v756
      %v947 = vpop.f32.mrf.mxu0
      %v948 = vadd.f32 0.0, %v947
      %v949 = vpop.f32.mrf.mxu0
      %950 = vmatprep.mubr.f32.mxu0 0.0
      %951 = vmatmul.mubr.f32.gmra.mxu0 %v759
      %v952 = vpop.f32.mrf.mxu0
      %v953 = vadd.f32 0.0, %v952
      %v954 = vpop.f32.mrf.mxu0
      %955 = vmatprep.mubr.f32.mxu0 0.0
      %956 = vmatmul.mubr.f32.gmra.mxu0 %v762
      %v957 = vpop.f32.mrf.mxu0
      %v958 = vadd.f32 0.0, %v957
      %v959 = vpop.f32.mrf.mxu0
      %960 = vmatprep.mubr.f32.mxu0 0.0
      %961 = vmatmul.mubr.f32.gmra.mxu0 %v765
      %v962 = vpop.f32.mrf.mxu0
      %v963 = vadd.f32 0.0, %v962
      %v964 = vpop.f32.mrf.mxu0
      %965 = vmatprep.mubr.f32.mxu0 0.0
      %966 = vmatmul.mubr.f32.gmra.mxu0 %v768
      %v967 = vpop.f32.mrf.mxu0
      %v968 = vadd.f32 0.0, %v967
      %v969 = vpop.f32.mrf.mxu0
      %970 = vmatprep.mubr.f32.mxu0 0.0
      %971 = vmatmul.mubr.f32.gmra.mxu0 %v771
      %v972 = vpop.f32.mrf.mxu0
      %v973 = vadd.f32 0.0, %v972
      %v974 = vpop.f32.mrf.mxu0
      %975 = vmatprep.mubr.f32.mxu0 0.0
      %976 = vmatmul.mubr.f32.gmra.mxu0 %v774
      %v977 = vpop.f32.mrf.mxu0
      %v978 = vadd.f32 0.0, %v977
      %v979 = vpop.f32.mrf.mxu0
      %980 = vmatprep.mubr.f32.mxu0 0.0
      %981 = vmatmul.mubr.f32.gmra.mxu0 %v777
      %v982 = vpop.f32.mrf.mxu0
      %v983 = vadd.f32 0.0, %v982
      %v984 = vpop.f32.mrf.mxu0
      %985 = vmatprep.mubr.f32.mxu0 0.0
      %986 = vmatmul.mubr.f32.gmra.mxu0 %v780
      %v987 = vpop.f32.mrf.mxu0
      %v988 = vadd.f32 0.0, %v987
      %v989 = vpop.f32.mrf.mxu0
      %990 = vmatprep.mubr.f32.mxu0 0.0
      %991 = vmatmul.mubr.f32.gmra.mxu0 %v783
      %v992 = vpop.f32.mrf.mxu0
      %v993 = vadd.f32 0.0, %v992
      %v994 = vpop.f32.mrf.mxu0
      %995 = vmatprep.mubr.f32.mxu0 0.0
      %996 = vmatmul.mubr.f32.gmra.mxu0 %v786
      %v997 = vpop.f32.mrf.mxu0
      %v998 = vadd.f32 0.0, %v997
      %v999 = vpop.f32.mrf.mxu0
      %1000 = vmatprep.mubr.f32.mxu0 0.0
      %1001 = vmatmul.mubr.f32.gmra.mxu0 %v789
      %v1002 = vpop.f32.mrf.mxu0
      %v1003 = vadd.f32 0.0, %v1002
      %v1004 = vpop.f32.mrf.mxu0
      %1005 = vmatprep.mubr.f32.mxu0 0.0
      %1006 = vmatmul.mubr.f32.gmra.mxu0 %v792
      %v1007 = vpop.f32.mrf.mxu0
      %v1008 = vadd.f32 0.0, %v1007
      %v1009 = vpop.f32.mrf.mxu0
      %1010 = vmatprep.mubr.f32.mxu0 0.0
      %1011 = vmatmul.mubr.f32.gmra.mxu0 %v795
      %v1012 = vpop.f32.mrf.mxu0
      %v1013 = vadd.f32 0.0, %v1012
      %v1014 = vpop.f32.mrf.mxu0
      %1015 = vmatprep.mubr.f32.mxu0 0.0
      %1016 = vmatmul.mubr.f32.gmra.mxu0 %v798
      %v1017 = vpop.f32.mrf.mxu0
      %v1018 = vadd.f32 0.0, %v1017
      %v1019 = vpop.f32.mrf.mxu0
      %1020 = vmatprep.mubr.f32.mxu0 0.0
      %1021 = vmatmul.mubr.f32.gmra.mxu0 %v801
      %v1022 = vpop.f32.mrf.mxu0
      %v1023 = vadd.f32 0.0, %v1022
      %v1024 = vpop.f32.mrf.mxu0
      %1025 = vmatprep.mubr.f32.mxu0 0.0
      %1026 = vmatmul.mubr.f32.gmra.mxu0 %v804
      %v1027 = vpop.f32.mrf.mxu0
      %v1028 = vadd.f32 0.0, %v1027
      %v1029 = vpop.f32.mrf.mxu0
      %1030 = vdwg.mxu0
      %v1032 = vsel %vm266, %v633, 0
      %v1035 = vsel %vm266, %v634, 0
      %v1038 = vsel %vm266, %v635, 0
      %v1041 = vsel %vm266, %v636, 0
      %v1044 = vsel %vm266, %v637, 0
      %v1047 = vsel %vm266, %v638, 0
      %v1050 = vsel %vm266, %v639, 0
      %v1053 = vsel %vm266, %v640, 0
      %v1056 = vsel %vm266, %v641, 0
      %v1059 = vsel %vm266, %v642, 0
      %v1062 = vsel %vm266, %v643, 0
      %v1065 = vsel %vm266, %v644, 0
      %v1068 = vsel %vm266, %v645, 0
      %v1071 = vsel %vm266, %v646, 0
      %v1074 = vsel %vm266, %v647, 0
      %v1077 = vsel %vm266, %v648, 0
      %v1080 = vsel %vm266, %v649, 0
      %v1083 = vsel %vm266, %v650, 0
      %v1086 = vsel %vm266, %v651, 0
      %v1089 = vsel %vm266, %v652, 0
      %v1092 = vsel %vm266, %v653, 0
      %v1095 = vsel %vm266, %v654, 0
      %v1098 = vsel %vm266, %v655, 0
      %v1101 = vsel %vm266, %v656, 0
      %v1104 = vsel %vm266, %v657, 0
      %v1107 = vsel %vm266, %v658, 0
      %v1110 = vsel %vm266, %v659, 0
      %v1113 = vsel %vm266, %v660, 0
      %v1116 = vsel %vm266, %v661, 0
      %v1119 = vsel %vm266, %v662, 0
      %v1122 = vsel %vm266, %v663, 0
      %v1125 = vsel %vm266, %v664, 0
      %1127 = vmatprep.subr.mxu0 0.0
      %1128 = vmatpush1.msra.mxu0 0.0
      %1129 = vmatprep.subr.mxu0 0.0
      %1130 = vmatpush1.msra.mxu0 0.0
      %1131 = vmatprep.subr.mxu0 0.0
      %1132 = vmatpush1.msra.mxu0 0.0
      %1133 = vmatprep.subr.mxu0 0.0
      %1134 = vmatpush1.msra.mxu0 0.0
      %1135 = vmatprep.subr.mxu0 0.0
      %1136 = vmatpush1.msra.mxu0 0.0
      %1137 = vmatprep.subr.mxu0 0.0
      %1138 = vmatpush1.msra.mxu0 0.0
      %1139 = vmatprep.subr.mxu0 0.0
      %1140 = vmatpush1.msra.mxu0 0.0
      %1141 = vmatprep.subr.mxu0 0.0
      %1142 = vmatpush1.msra.mxu0 0.0
      %1143 = vmatprep.subr.mxu0 0.0
      %1144 = vmatpush1.msra.mxu0 0.0
      %1145 = vmatprep.subr.mxu0 0.0
      %1146 = vmatpush1.msra.mxu0 0.0
      %1147 = vmatprep.subr.mxu0 0.0
      %1148 = vmatpush1.msra.mxu0 %v670
      %1149 = vmatprep.subr.mxu0 0.0
      %1150 = vmatpush1.msra.mxu0 %v669
      %1151 = vmatprep.subr.mxu0 0.0
      %1152 = vmatpush1.msra.mxu0 %v668
      %1153 = vmatprep.subr.mxu0 0.0
      %1154 = vmatpush1.msra.mxu0 %v667
      %1155 = vmatprep.subr.mxu0 0.0
      %1156 = vmatpush1.msra.mxu0 %v666
      %1157 = vmatprep.subr.mxu0 0.0
      %1158 = vmatpush1.msra.mxu0 %v665
      %1159 = vmatprep.subr.mxu0 0.0
      %1160 = vmatpush2.msra.mxu0 0.0
      %1161 = vmatprep.subr.mxu0 0.0
      %1162 = vmatpush2.msra.mxu0 0.0
      %1163 = vmatprep.subr.mxu0 0.0
      %1164 = vmatpush2.msra.mxu0 0.0
      %1165 = vmatprep.subr.mxu0 0.0
      %1166 = vmatpush2.msra.mxu0 0.0
      %1167 = vmatprep.subr.mxu0 0.0
      %1168 = vmatpush2.msra.mxu0 0.0
      %1169 = vmatprep.subr.mxu0 0.0
      %1170 = vmatpush2.msra.mxu0 0.0
      %1171 = vmatprep.subr.mxu0 0.0
      %1172 = vmatpush2.msra.mxu0 0.0
      %1173 = vmatprep.subr.mxu0 0.0
      %1174 = vmatpush2.msra.mxu0 0.0
      %1175 = vmatprep.subr.mxu0 0.0
      %1176 = vmatpush2.msra.mxu0 0.0
      %1177 = vmatprep.subr.mxu0 0.0
      %1178 = vmatpush2.msra.mxu0 0.0
      %1179 = vmatprep.subr.mxu0 0.0
      %1180 = vmatpush2.msra.mxu0 0.0
      %1181 = vmatprep.subr.mxu0 0.0
      %1182 = vmatpush2.msra.mxu0 0.0
      %1183 = vmatprep.subr.mxu0 0.0
      %1184 = vmatpush2.msra.mxu0 0.0
      %1185 = vmatprep.subr.mxu0 0.0
      %1186 = vmatpush2.msra.mxu0 0.0
      %1187 = vmatprep.subr.mxu0 0.0
      %1188 = vmatpush2.msra.mxu0 0.0
      %1189 = vmatprep.subr.mxu0 0.0
      %1190 = vmatpush2.msra.mxu0 0.0
      %1191 = vmatprep.mubr.f32.mxu0 0.0
      %1192 = vmatmul.mubr.f32.gmra.mxu0 %v1032
      %v1193 = vpop.f32.mrf.mxu0
      %v1194 = vadd.f32 %v873, %v1193
      %v1195 = vpop.f32.mrf.mxu0
      %1196 = vmatprep.mubr.f32.mxu0 0.0
      %1197 = vmatmul.mubr.f32.gmra.mxu0 %v1035
      %v1198 = vpop.f32.mrf.mxu0
      %v1199 = vadd.f32 %v878, %v1198
      %v1200 = vpop.f32.mrf.mxu0
      %1201 = vmatprep.mubr.f32.mxu0 0.0
      %1202 = vmatmul.mubr.f32.gmra.mxu0 %v1038
      %v1203 = vpop.f32.mrf.mxu0
      %v1204 = vadd.f32 %v883, %v1203
      %v1205 = vpop.f32.mrf.mxu0
      %1206 = vmatprep.mubr.f32.mxu0 0.0
      %1207 = vmatmul.mubr.f32.gmra.mxu0 %v1041
      %v1208 = vpop.f32.mrf.mxu0
      %v1209 = vadd.f32 %v888, %v1208
      %v1210 = vpop.f32.mrf.mxu0
      %1211 = vmatprep.mubr.f32.mxu0 0.0
      %1212 = vmatmul.mubr.f32.gmra.mxu0 %v1044
      %v1213 = vpop.f32.mrf.mxu0
      %v1214 = vadd.f32 %v893, %v1213
      %v1215 = vpop.f32.mrf.mxu0
      %1216 = vmatprep.mubr.f32.mxu0 0.0
      %1217 = vmatmul.mubr.f32.gmra.mxu0 %v1047
      %v1218 = vpop.f32.mrf.mxu0
      %v1219 = vadd.f32 %v898, %v1218
      %v1220 = vpop.f32.mrf.mxu0
      %1221 = vmatprep.mubr.f32.mxu0 0.0
      %1222 = vmatmul.mubr.f32.gmra.mxu0 %v1050
      %v1223 = vpop.f32.mrf.mxu0
      %v1224 = vadd.f32 %v903, %v1223
      %v1225 = vpop.f32.mrf.mxu0
      %1226 = vmatprep.mubr.f32.mxu0 0.0
      %1227 = vmatmul.mubr.f32.gmra.mxu0 %v1053
      %v1228 = vpop.f32.mrf.mxu0
      %v1229 = vadd.f32 %v908, %v1228
      %v1230 = vpop.f32.mrf.mxu0
      %1231 = vmatprep.mubr.f32.mxu0 0.0
      %1232 = vmatmul.mubr.f32.gmra.mxu0 %v1056
      %v1233 = vpop.f32.mrf.mxu0
      %v1234 = vadd.f32 %v913, %v1233
      %v1235 = vpop.f32.mrf.mxu0
      %1236 = vmatprep.mubr.f32.mxu0 0.0
      %1237 = vmatmul.mubr.f32.gmra.mxu0 %v1059
      %v1238 = vpop.f32.mrf.mxu0
      %v1239 = vadd.f32 %v918, %v1238
      %v1240 = vpop.f32.mrf.mxu0
      %1241 = vmatprep.mubr.f32.mxu0 0.0
      %1242 = vmatmul.mubr.f32.gmra.mxu0 %v1062
      %v1243 = vpop.f32.mrf.mxu0
      %v1244 = vadd.f32 %v923, %v1243
      %v1245 = vpop.f32.mrf.mxu0
      %1246 = vmatprep.mubr.f32.mxu0 0.0
      %1247 = vmatmul.mubr.f32.gmra.mxu0 %v1065
      %v1248 = vpop.f32.mrf.mxu0
      %v1249 = vadd.f32 %v928, %v1248
      %v1250 = vpop.f32.mrf.mxu0
      %1251 = vmatprep.mubr.f32.mxu0 0.0
      %1252 = vmatmul.mubr.f32.gmra.mxu0 %v1068
      %v1253 = vpop.f32.mrf.mxu0
      %v1254 = vadd.f32 %v933, %v1253
      %v1255 = vpop.f32.mrf.mxu0
      %1256 = vmatprep.mubr.f32.mxu0 0.0
      %1257 = vmatmul.mubr.f32.gmra.mxu0 %v1071
      %v1258 = vpop.f32.mrf.mxu0
      %v1259 = vadd.f32 %v938, %v1258
      %v1260 = vpop.f32.mrf.mxu0
      %1261 = vmatprep.mubr.f32.mxu0 0.0
      %1262 = vmatmul.mubr.f32.gmra.mxu0 %v1074
      %v1263 = vpop.f32.mrf.mxu0
      %v1264 = vadd.f32 %v943, %v1263
      %v1265 = vpop.f32.mrf.mxu0
      %1266 = vmatprep.mubr.f32.mxu0 0.0
      %1267 = vmatmul.mubr.f32.gmra.mxu0 %v1077
      %v1268 = vpop.f32.mrf.mxu0
      %v1269 = vadd.f32 %v948, %v1268
      %v1270 = vpop.f32.mrf.mxu0
      %1271 = vmatprep.mubr.f32.mxu0 0.0
      %1272 = vmatmul.mubr.f32.gmra.mxu0 %v1080
      %v1273 = vpop.f32.mrf.mxu0
      %v1274 = vadd.f32 %v953, %v1273
      %v1275 = vpop.f32.mrf.mxu0
      %1276 = vmatprep.mubr.f32.mxu0 0.0
      %1277 = vmatmul.mubr.f32.gmra.mxu0 %v1083
      %v1278 = vpop.f32.mrf.mxu0
      %v1279 = vadd.f32 %v958, %v1278
      %v1280 = vpop.f32.mrf.mxu0
      %1281 = vmatprep.mubr.f32.mxu0 0.0
      %1282 = vmatmul.mubr.f32.gmra.mxu0 %v1086
      %v1283 = vpop.f32.mrf.mxu0
      %v1284 = vadd.f32 %v963, %v1283
      %v1285 = vpop.f32.mrf.mxu0
      %1286 = vmatprep.mubr.f32.mxu0 0.0
      %1287 = vmatmul.mubr.f32.gmra.mxu0 %v1089
      %v1288 = vpop.f32.mrf.mxu0
      %v1289 = vadd.f32 %v968, %v1288
      %v1290 = vpop.f32.mrf.mxu0
      %1291 = vmatprep.mubr.f32.mxu0 0.0
      %1292 = vmatmul.mubr.f32.gmra.mxu0 %v1092
      %v1293 = vpop.f32.mrf.mxu0
      %v1294 = vadd.f32 %v973, %v1293
      %v1295 = vpop.f32.mrf.mxu0
      %1296 = vmatprep.mubr.f32.mxu0 0.0
      %1297 = vmatmul.mubr.f32.gmra.mxu0 %v1095
      %v1298 = vpop.f32.mrf.mxu0
      %v1299 = vadd.f32 %v978, %v1298
      %v1300 = vpop.f32.mrf.mxu0
      %1301 = vmatprep.mubr.f32.mxu0 0.0
      %1302 = vmatmul.mubr.f32.gmra.mxu0 %v1098
      %v1303 = vpop.f32.mrf.mxu0
      %v1304 = vadd.f32 %v983, %v1303
      %v1305 = vpop.f32.mrf.mxu0
      %1306 = vmatprep.mubr.f32.mxu0 0.0
      %1307 = vmatmul.mubr.f32.gmra.mxu0 %v1101
      %v1308 = vpop.f32.mrf.mxu0
      %v1309 = vadd.f32 %v988, %v1308
      %v1310 = vpop.f32.mrf.mxu0
      %1311 = vmatprep.mubr.f32.mxu0 0.0
      %1312 = vmatmul.mubr.f32.gmra.mxu0 %v1104
      %v1313 = vpop.f32.mrf.mxu0
      %v1314 = vadd.f32 %v993, %v1313
      %v1315 = vpop.f32.mrf.mxu0
      %1316 = vmatprep.mubr.f32.mxu0 0.0
      %1317 = vmatmul.mubr.f32.gmra.mxu0 %v1107
      %v1318 = vpop.f32.mrf.mxu0
      %v1319 = vadd.f32 %v998, %v1318
      %v1320 = vpop.f32.mrf.mxu0
      %1321 = vmatprep.mubr.f32.mxu0 0.0
      %1322 = vmatmul.mubr.f32.gmra.mxu0 %v1110
      %v1323 = vpop.f32.mrf.mxu0
      %v1324 = vadd.f32 %v1003, %v1323
      %v1325 = vpop.f32.mrf.mxu0
      %1326 = vmatprep.mubr.f32.mxu0 0.0
      %1327 = vmatmul.mubr.f32.gmra.mxu0 %v1113
      %v1328 = vpop.f32.mrf.mxu0
      %v1329 = vadd.f32 %v1008, %v1328
      %v1330 = vpop.f32.mrf.mxu0
      %1331 = vmatprep.mubr.f32.mxu0 0.0
      %1332 = vmatmul.mubr.f32.gmra.mxu0 %v1116
      %v1333 = vpop.f32.mrf.mxu0
      %v1334 = vadd.f32 %v1013, %v1333
      %v1335 = vpop.f32.mrf.mxu0
      %1336 = vmatprep.mubr.f32.mxu0 0.0
      %1337 = vmatmul.mubr.f32.gmra.mxu0 %v1119
      %v1338 = vpop.f32.mrf.mxu0
      %v1339 = vadd.f32 %v1018, %v1338
      %v1340 = vpop.f32.mrf.mxu0
      %1341 = vmatprep.mubr.f32.mxu0 0.0
      %1342 = vmatmul.mubr.f32.gmra.mxu0 %v1122
      %v1343 = vpop.f32.mrf.mxu0
      %v1344 = vadd.f32 %v1023, %v1343
      %v1345 = vpop.f32.mrf.mxu0
      %1346 = vmatprep.mubr.f32.mxu0 0.0
      %1347 = vmatmul.mubr.f32.gmra.mxu0 %v1125
      %v1348 = vpop.f32.mrf.mxu0
      %v1349 = vadd.f32 %v1028, %v1348
      %v1350 = vpop.f32.mrf.mxu0
      %1351 = vdwg.mxu0
      %s1352 = scalar_lea.vmem [#allocation2], 32
      %v1353 = vld [vmem:[%s1352] sm:$0xff]
      %v1354 = vld [vmem:[%s1352 + $0x8] sm:$0xff]
      %v1355 = vld [vmem:[%s1352 + $0x10] sm:$0xff]
      %v1356 = vld [vmem:[%s1352 + $0x18] sm:$0xff]
      %v1357 = vld [vmem:[%s1352 + $0x20] sm:$0xff]
      %v1358 = vld [vmem:[%s1352 + $0x28] sm:$0xff]
      %v1359 = vld [vmem:[%s1352 + $0x30] sm:$0xff]
      %v1360 = vld [vmem:[%s1352 + $0x38] sm:$0xff]
      %v1361 = vld [vmem:[%s1352 + $0x40] sm:$0xff]
      %v1362 = vld [vmem:[%s1352 + $0x48] sm:$0xff]
      %v1363 = vld [vmem:[%s1352 + $0x50] sm:$0xff]
      %v1364 = vld [vmem:[%s1352 + $0x58] sm:$0xff]
      %v1365 = vld [vmem:[%s1352 + $0x60] sm:$0xff]
      %v1366 = vld [vmem:[%s1352 + $0x68] sm:$0xff]
      %v1367 = vld [vmem:[%s1352 + $0x70] sm:$0xff]
      %v1368 = vld [vmem:[%s1352 + $0x78] sm:$0xff]
      %v1369 = vld [vmem:[%s1352 + $0x80] sm:$0xff]
      %v1370 = vld [vmem:[%s1352 + $0x88] sm:$0xff]
      %v1371 = vld [vmem:[%s1352 + $0x90] sm:$0xff]
      %v1372 = vld [vmem:[%s1352 + $0x98] sm:$0xff]
      %v1373 = vld [vmem:[%s1352 + $0xa0] sm:$0xff]
      %v1374 = vld [vmem:[%s1352 + $0xa8] sm:$0xff]
      %v1375 = vld [vmem:[%s1352 + $0xb0] sm:$0xff]
      %v1376 = vld [vmem:[%s1352 + $0xb8] sm:$0xff]
      %v1377 = vld [vmem:[%s1352 + $0xc0] sm:$0xff]
      %v1378 = vld [vmem:[%s1352 + $0xc8] sm:$0xff]
      %v1379 = vld [vmem:[%s1352 + $0xd0] sm:$0xff]
      %v1380 = vld [vmem:[%s1352 + $0xd8] sm:$0xff]
      %v1381 = vld [vmem:[%s1352 + $0xe0] sm:$0xff]
      %v1382 = vld [vmem:[%s1352 + $0xe8] sm:$0xff]
      %v1383 = vld [vmem:[%s1352 + $0xf0] sm:$0xff]
      %v1384 = vld [vmem:[%s1352 + $0xf8] sm:$0xff]
      %s1385 = scalar_lea.vmem %s1, 96
      %v1386 = vld [vmem:[%s1385] sm:$0xff]
      %v1387 = vld [vmem:[%s1385 + $0x8] sm:$0xff]
      %v1388 = vld [vmem:[%s1385 + $0x10] sm:$0xff]
      %v1389 = vld [vmem:[%s1385 + $0x18] sm:$0xff]
      %v1390 = vld [vmem:[%s1385 + $0x20] sm:$0xff]
      %v1391 = vld [vmem:[%s1385 + $0x28] sm:$0xff]
      %v1393 = vsel %vm266, %v1353, 0
      %v1396 = vsel %vm266, %v1354, 0
      %v1399 = vsel %vm266, %v1355, 0
      %v1402 = vsel %vm266, %v1356, 0
      %v1405 = vsel %vm266, %v1357, 0
      %v1408 = vsel %vm266, %v1358, 0
      %v1411 = vsel %vm266, %v1359, 0
      %v1414 = vsel %vm266, %v1360, 0
      %v1417 = vsel %vm266, %v1361, 0
      %v1420 = vsel %vm266, %v1362, 0
      %v1423 = vsel %vm266, %v1363, 0
      %v1426 = vsel %vm266, %v1364, 0
      %v1429 = vsel %vm266, %v1365, 0
      %v1432 = vsel %vm266, %v1366, 0
      %v1435 = vsel %vm266, %v1367, 0
      %v1438 = vsel %vm266, %v1368, 0
      %v1441 = vsel %vm266, %v1369, 0
      %v1444 = vsel %vm266, %v1370, 0
      %v1447 = vsel %vm266, %v1371, 0
      %v1450 = vsel %vm266, %v1372, 0
      %v1453 = vsel %vm266, %v1373, 0
      %v1456 = vsel %vm266, %v1374, 0
      %v1459 = vsel %vm266, %v1375, 0
      %v1462 = vsel %vm266, %v1376, 0
      %v1465 = vsel %vm266, %v1377, 0
      %v1468 = vsel %vm266, %v1378, 0
      %v1471 = vsel %vm266, %v1379, 0
      %v1474 = vsel %vm266, %v1380, 0
      %v1477 = vsel %vm266, %v1381, 0
      %v1480 = vsel %vm266, %v1382, 0
      %v1483 = vsel %vm266, %v1383, 0
      %v1486 = vsel %vm266, %v1384, 0
      %1488 = vmatprep.subr.mxu0 0.0
      %1489 = vmatpush1.msra.mxu0 0.0
      %1490 = vmatprep.subr.mxu0 0.0
      %1491 = vmatpush1.msra.mxu0 0.0
      %1492 = vmatprep.subr.mxu0 0.0
      %1493 = vmatpush1.msra.mxu0 0.0
      %1494 = vmatprep.subr.mxu0 0.0
      %1495 = vmatpush1.msra.mxu0 0.0
      %1496 = vmatprep.subr.mxu0 0.0
      %1497 = vmatpush1.msra.mxu0 0.0
      %1498 = vmatprep.subr.mxu0 0.0
      %1499 = vmatpush1.msra.mxu0 0.0
      %1500 = vmatprep.subr.mxu0 0.0
      %1501 = vmatpush1.msra.mxu0 0.0
      %1502 = vmatprep.subr.mxu0 0.0
      %1503 = vmatpush1.msra.mxu0 0.0
      %1504 = vmatprep.subr.mxu0 0.0
      %1505 = vmatpush1.msra.mxu0 0.0
      %1506 = vmatprep.subr.mxu0 0.0
      %1507 = vmatpush1.msra.mxu0 0.0
      %1508 = vmatprep.subr.mxu0 0.0
      %1509 = vmatpush1.msra.mxu0 %v1391
      %1510 = vmatprep.subr.mxu0 0.0
      %1511 = vmatpush1.msra.mxu0 %v1390
      %1512 = vmatprep.subr.mxu0 0.0
      %1513 = vmatpush1.msra.mxu0 %v1389
      %1514 = vmatprep.subr.mxu0 0.0
      %1515 = vmatpush1.msra.mxu0 %v1388
      %1516 = vmatprep.subr.mxu0 0.0
      %1517 = vmatpush1.msra.mxu0 %v1387
      %1518 = vmatprep.subr.mxu0 0.0
      %1519 = vmatpush1.msra.mxu0 %v1386
      %1520 = vmatprep.subr.mxu0 0.0
      %1521 = vmatpush2.msra.mxu0 0.0
      %1522 = vmatprep.subr.mxu0 0.0
      %1523 = vmatpush2.msra.mxu0 0.0
      %1524 = vmatprep.subr.mxu0 0.0
      %1525 = vmatpush2.msra.mxu0 0.0
      %1526 = vmatprep.subr.mxu0 0.0
      %1527 = vmatpush2.msra.mxu0 0.0
      %1528 = vmatprep.subr.mxu0 0.0
      %1529 = vmatpush2.msra.mxu0 0.0
      %1530 = vmatprep.subr.mxu0 0.0
      %1531 = vmatpush2.msra.mxu0 0.0
      %1532 = vmatprep.subr.mxu0 0.0
      %1533 = vmatpush2.msra.mxu0 0.0
      %1534 = vmatprep.subr.mxu0 0.0
      %1535 = vmatpush2.msra.mxu0 0.0
      %1536 = vmatprep.subr.mxu0 0.0
      %1537 = vmatpush2.msra.mxu0 0.0
      %1538 = vmatprep.subr.mxu0 0.0
      %1539 = vmatpush2.msra.mxu0 0.0
      %1540 = vmatprep.subr.mxu0 0.0
      %1541 = vmatpush2.msra.mxu0 0.0
      %1542 = vmatprep.subr.mxu0 0.0
      %1543 = vmatpush2.msra.mxu0 0.0
      %1544 = vmatprep.subr.mxu0 0.0
      %1545 = vmatpush2.msra.mxu0 0.0
      %1546 = vmatprep.subr.mxu0 0.0
      %1547 = vmatpush2.msra.mxu0 0.0
      %1548 = vmatprep.subr.mxu0 0.0
      %1549 = vmatpush2.msra.mxu0 0.0
      %1550 = vmatprep.subr.mxu0 0.0
      %1551 = vmatpush2.msra.mxu0 0.0
      %1552 = vmatprep.mubr.f32.mxu0 0.0
      %1553 = vmatmul.mubr.f32.gmra.mxu0 %v1393
      %v1554 = vpop.f32.mrf.mxu0
      %v1555 = vadd.f32 0.0, %v1554
      %v1556 = vpop.f32.mrf.mxu0
      %1557 = vmatprep.mubr.f32.mxu0 0.0
      %1558 = vmatmul.mubr.f32.gmra.mxu0 %v1396
      %v1559 = vpop.f32.mrf.mxu0
      %v1560 = vadd.f32 0.0, %v1559
      %v1561 = vpop.f32.mrf.mxu0
      %1562 = vmatprep.mubr.f32.mxu0 0.0
      %1563 = vmatmul.mubr.f32.gmra.mxu0 %v1399
      %v1564 = vpop.f32.mrf.mxu0
      %v1565 = vadd.f32 0.0, %v1564
      %v1566 = vpop.f32.mrf.mxu0
      %1567 = vmatprep.mubr.f32.mxu0 0.0
      %1568 = vmatmul.mubr.f32.gmra.mxu0 %v1402
      %v1569 = vpop.f32.mrf.mxu0
      %v1570 = vadd.f32 0.0, %v1569
      %v1571 = vpop.f32.mrf.mxu0
      %1572 = vmatprep.mubr.f32.mxu0 0.0
      %1573 = vmatmul.mubr.f32.gmra.mxu0 %v1405
      %v1574 = vpop.f32.mrf.mxu0
      %v1575 = vadd.f32 0.0, %v1574
      %v1576 = vpop.f32.mrf.mxu0
      %1577 = vmatprep.mubr.f32.mxu0 0.0
      %1578 = vmatmul.mubr.f32.gmra.mxu0 %v1408
      %v1579 = vpop.f32.mrf.mxu0
      %v1580 = vadd.f32 0.0, %v1579
      %v1581 = vpop.f32.mrf.mxu0
      %1582 = vmatprep.mubr.f32.mxu0 0.0
      %1583 = vmatmul.mubr.f32.gmra.mxu0 %v1411
      %v1584 = vpop.f32.mrf.mxu0
      %v1585 = vadd.f32 0.0, %v1584
      %v1586 = vpop.f32.mrf.mxu0
      %1587 = vmatprep.mubr.f32.mxu0 0.0
      %1588 = vmatmul.mubr.f32.gmra.mxu0 %v1414
      %v1589 = vpop.f32.mrf.mxu0
      %v1590 = vadd.f32 0.0, %v1589
      %v1591 = vpop.f32.mrf.mxu0
      %1592 = vmatprep.mubr.f32.mxu0 0.0
      %1593 = vmatmul.mubr.f32.gmra.mxu0 %v1417
      %v1594 = vpop.f32.mrf.mxu0
      %v1595 = vadd.f32 0.0, %v1594
      %v1596 = vpop.f32.mrf.mxu0
      %1597 = vmatprep.mubr.f32.mxu0 0.0
      %1598 = vmatmul.mubr.f32.gmra.mxu0 %v1420
      %v1599 = vpop.f32.mrf.mxu0
      %v1600 = vadd.f32 0.0, %v1599
      %v1601 = vpop.f32.mrf.mxu0
      %1602 = vmatprep.mubr.f32.mxu0 0.0
      %1603 = vmatmul.mubr.f32.gmra.mxu0 %v1423
      %v1604 = vpop.f32.mrf.mxu0
      %v1605 = vadd.f32 0.0, %v1604
      %v1606 = vpop.f32.mrf.mxu0
      %1607 = vmatprep.mubr.f32.mxu0 0.0
      %1608 = vmatmul.mubr.f32.gmra.mxu0 %v1426
      %v1609 = vpop.f32.mrf.mxu0
      %v1610 = vadd.f32 0.0, %v1609
      %v1611 = vpop.f32.mrf.mxu0
      %1612 = vmatprep.mubr.f32.mxu0 0.0
      %1613 = vmatmul.mubr.f32.gmra.mxu0 %v1429
      %v1614 = vpop.f32.mrf.mxu0
      %v1615 = vadd.f32 0.0, %v1614
      %v1616 = vpop.f32.mrf.mxu0
      %1617 = vmatprep.mubr.f32.mxu0 0.0
      %1618 = vmatmul.mubr.f32.gmra.mxu0 %v1432
      %v1619 = vpop.f32.mrf.mxu0
      %v1620 = vadd.f32 0.0, %v1619
      %v1621 = vpop.f32.mrf.mxu0
      %1622 = vmatprep.mubr.f32.mxu0 0.0
      %1623 = vmatmul.mubr.f32.gmra.mxu0 %v1435
      %v1624 = vpop.f32.mrf.mxu0
      %v1625 = vadd.f32 0.0, %v1624
      %v1626 = vpop.f32.mrf.mxu0
      %1627 = vmatprep.mubr.f32.mxu0 0.0
      %1628 = vmatmul.mubr.f32.gmra.mxu0 %v1438
      %v1629 = vpop.f32.mrf.mxu0
      %v1630 = vadd.f32 0.0, %v1629
      %v1631 = vpop.f32.mrf.mxu0
      %1632 = vmatprep.mubr.f32.mxu0 0.0
      %1633 = vmatmul.mubr.f32.gmra.mxu0 %v1441
      %v1634 = vpop.f32.mrf.mxu0
      %v1635 = vadd.f32 0.0, %v1634
      %v1636 = vpop.f32.mrf.mxu0
      %1637 = vmatprep.mubr.f32.mxu0 0.0
      %1638 = vmatmul.mubr.f32.gmra.mxu0 %v1444
      %v1639 = vpop.f32.mrf.mxu0
      %v1640 = vadd.f32 0.0, %v1639
      %v1641 = vpop.f32.mrf.mxu0
      %1642 = vmatprep.mubr.f32.mxu0 0.0
      %1643 = vmatmul.mubr.f32.gmra.mxu0 %v1447
      %v1644 = vpop.f32.mrf.mxu0
      %v1645 = vadd.f32 0.0, %v1644
      %v1646 = vpop.f32.mrf.mxu0
      %1647 = vmatprep.mubr.f32.mxu0 0.0
      %1648 = vmatmul.mubr.f32.gmra.mxu0 %v1450
      %v1649 = vpop.f32.mrf.mxu0
      %v1650 = vadd.f32 0.0, %v1649
      %v1651 = vpop.f32.mrf.mxu0
      %1652 = vmatprep.mubr.f32.mxu0 0.0
      %1653 = vmatmul.mubr.f32.gmra.mxu0 %v1453
      %v1654 = vpop.f32.mrf.mxu0
      %v1655 = vadd.f32 0.0, %v1654
      %v1656 = vpop.f32.mrf.mxu0
      %1657 = vmatprep.mubr.f32.mxu0 0.0
      %1658 = vmatmul.mubr.f32.gmra.mxu0 %v1456
      %v1659 = vpop.f32.mrf.mxu0
      %v1660 = vadd.f32 0.0, %v1659
      %v1661 = vpop.f32.mrf.mxu0
      %1662 = vmatprep.mubr.f32.mxu0 0.0
      %1663 = vmatmul.mubr.f32.gmra.mxu0 %v1459
      %v1664 = vpop.f32.mrf.mxu0
      %v1665 = vadd.f32 0.0, %v1664
      %v1666 = vpop.f32.mrf.mxu0
      %1667 = vmatprep.mubr.f32.mxu0 0.0
      %1668 = vmatmul.mubr.f32.gmra.mxu0 %v1462
      %v1669 = vpop.f32.mrf.mxu0
      %v1670 = vadd.f32 0.0, %v1669
      %v1671 = vpop.f32.mrf.mxu0
      %1672 = vmatprep.mubr.f32.mxu0 0.0
      %1673 = vmatmul.mubr.f32.gmra.mxu0 %v1465
      %v1674 = vpop.f32.mrf.mxu0
      %v1675 = vadd.f32 0.0, %v1674
      %v1676 = vpop.f32.mrf.mxu0
      %1677 = vmatprep.mubr.f32.mxu0 0.0
      %1678 = vmatmul.mubr.f32.gmra.mxu0 %v1468
      %v1679 = vpop.f32.mrf.mxu0
      %v1680 = vadd.f32 0.0, %v1679
      %v1681 = vpop.f32.mrf.mxu0
      %1682 = vmatprep.mubr.f32.mxu0 0.0
      %1683 = vmatmul.mubr.f32.gmra.mxu0 %v1471
      %v1684 = vpop.f32.mrf.mxu0
      %v1685 = vadd.f32 0.0, %v1684
      %v1686 = vpop.f32.mrf.mxu0
      %1687 = vmatprep.mubr.f32.mxu0 0.0
      %1688 = vmatmul.mubr.f32.gmra.mxu0 %v1474
      %v1689 = vpop.f32.mrf.mxu0
      %v1690 = vadd.f32 0.0, %v1689
      %v1691 = vpop.f32.mrf.mxu0
      %1692 = vmatprep.mubr.f32.mxu0 0.0
      %1693 = vmatmul.mubr.f32.gmra.mxu0 %v1477
      %v1694 = vpop.f32.mrf.mxu0
      %v1695 = vadd.f32 0.0, %v1694
      %v1696 = vpop.f32.mrf.mxu0
      %1697 = vmatprep.mubr.f32.mxu0 0.0
      %1698 = vmatmul.mubr.f32.gmra.mxu0 %v1480
      %v1699 = vpop.f32.mrf.mxu0
      %v1700 = vadd.f32 0.0, %v1699
      %v1701 = vpop.f32.mrf.mxu0
      %1702 = vmatprep.mubr.f32.mxu0 0.0
      %1703 = vmatmul.mubr.f32.gmra.mxu0 %v1483
      %v1704 = vpop.f32.mrf.mxu0
      %v1705 = vadd.f32 0.0, %v1704
      %v1706 = vpop.f32.mrf.mxu0
      %1707 = vmatprep.mubr.f32.mxu0 0.0
      %1708 = vmatmul.mubr.f32.gmra.mxu0 %v1486
      %v1709 = vpop.f32.mrf.mxu0
      %v1710 = vadd.f32 0.0, %v1709
      %v1711 = vpop.f32.mrf.mxu0
      %1712 = vdwg.mxu0
      %v1713 = vadd.f32 %v1194, %v1555
      %v1714 = vadd.f32 %v1199, %v1560
      %v1715 = vadd.f32 %v1204, %v1565
      %v1716 = vadd.f32 %v1209, %v1570
      %v1717 = vadd.f32 %v1214, %v1575
      %v1718 = vadd.f32 %v1219, %v1580
      %v1719 = vadd.f32 %v1224, %v1585
      %v1720 = vadd.f32 %v1229, %v1590
      %v1721 = vadd.f32 %v1234, %v1595
      %v1722 = vadd.f32 %v1239, %v1600
      %v1723 = vadd.f32 %v1244, %v1605
      %v1724 = vadd.f32 %v1249, %v1610
      %v1725 = vadd.f32 %v1254, %v1615
      %v1726 = vadd.f32 %v1259, %v1620
      %v1727 = vadd.f32 %v1264, %v1625
      %v1728 = vadd.f32 %v1269, %v1630
      %v1729 = vadd.f32 %v1274, %v1635
      %v1730 = vadd.f32 %v1279, %v1640
      %v1731 = vadd.f32 %v1284, %v1645
      %v1732 = vadd.f32 %v1289, %v1650
      %v1733 = vadd.f32 %v1294, %v1655
      %v1734 = vadd.f32 %v1299, %v1660
      %v1735 = vadd.f32 %v1304, %v1665
      %v1736 = vadd.f32 %v1309, %v1670
      %v1737 = vadd.f32 %v1314, %v1675
      %v1738 = vadd.f32 %v1319, %v1680
      %v1739 = vadd.f32 %v1324, %v1685
      %v1740 = vadd.f32 %v1329, %v1690
      %v1741 = vadd.f32 %v1334, %v1695
      %v1742 = vadd.f32 %v1339, %v1700
      %v1743 = vadd.f32 %v1344, %v1705
      %v1744 = vadd.f32 %v1349, %v1710
      %v1745 = vlaneseq
      %v1746 = vshrl.u32 %v1745, 7
      %v1747 = vsub.s32 0, %v1746
      %v1748 = vrot.slane %v632, %v1747
      %v1749 = vadd.f32 %v1713, %v1748
      %v1750 = vadd.f32 %v1714, %v1748
      %v1751 = vadd.f32 %v1715, %v1748
      %v1752 = vadd.f32 %v1716, %v1748
      %v1753 = vadd.f32 %v1717, %v1748
      %v1754 = vadd.f32 %v1718, %v1748
      %v1755 = vadd.f32 %v1719, %v1748
      %v1756 = vadd.f32 %v1720, %v1748
      %v1757 = vadd.f32 %v1721, %v1748
      %v1758 = vadd.f32 %v1722, %v1748
      %v1759 = vadd.f32 %v1723, %v1748
      %v1760 = vadd.f32 %v1724, %v1748
      %v1761 = vadd.f32 %v1725, %v1748
      %v1762 = vadd.f32 %v1726, %v1748
      %v1763 = vadd.f32 %v1727, %v1748
      %v1764 = vadd.f32 %v1728, %v1748
      %v1765 = vadd.f32 %v1729, %v1748
      %v1766 = vadd.f32 %v1730, %v1748
      %v1767 = vadd.f32 %v1731, %v1748
      %v1768 = vadd.f32 %v1732, %v1748
      %v1769 = vadd.f32 %v1733, %v1748
      %v1770 = vadd.f32 %v1734, %v1748
      %v1771 = vadd.f32 %v1735, %v1748
      %v1772 = vadd.f32 %v1736, %v1748
      %v1773 = vadd.f32 %v1737, %v1748
      %v1774 = vadd.f32 %v1738, %v1748
      %v1775 = vadd.f32 %v1739, %v1748
      %v1776 = vadd.f32 %v1740, %v1748
      %v1777 = vadd.f32 %v1741, %v1748
      %v1778 = vadd.f32 %v1742, %v1748
      %v1779 = vadd.f32 %v1743, %v1748
      %v1780 = vadd.f32 %v1744, %v1748
      %v1781 = vmax.f32 %v1749, 0.0
      %v1782 = vmax.f32 %v1750, 0.0
      %v1783 = vmax.f32 %v1751, 0.0
      %v1784 = vmax.f32 %v1752, 0.0
      %v1785 = vmax.f32 %v1753, 0.0
      %v1786 = vmax.f32 %v1754, 0.0
      %v1787 = vmax.f32 %v1755, 0.0
      %v1788 = vmax.f32 %v1756, 0.0
      %v1789 = vmax.f32 %v1757, 0.0
      %v1790 = vmax.f32 %v1758, 0.0
      %v1791 = vmax.f32 %v1759, 0.0
      %v1792 = vmax.f32 %v1760, 0.0
      %v1793 = vmax.f32 %v1761, 0.0
      %v1794 = vmax.f32 %v1762, 0.0
      %v1795 = vmax.f32 %v1763, 0.0
      %v1796 = vmax.f32 %v1764, 0.0
      %v1797 = vmax.f32 %v1765, 0.0
      %v1798 = vmax.f32 %v1766, 0.0
      %v1799 = vmax.f32 %v1767, 0.0
      %v1800 = vmax.f32 %v1768, 0.0
      %v1801 = vmax.f32 %v1769, 0.0
      %v1802 = vmax.f32 %v1770, 0.0
      %v1803 = vmax.f32 %v1771, 0.0
      %v1804 = vmax.f32 %v1772, 0.0
      %v1805 = vmax.f32 %v1773, 0.0
      %v1806 = vmax.f32 %v1774, 0.0
      %v1807 = vmax.f32 %v1775, 0.0
      %v1808 = vmax.f32 %v1776, 0.0
      %v1809 = vmax.f32 %v1777, 0.0
      %v1810 = vmax.f32 %v1778, 0.0
      %v1811 = vmax.f32 %v1779, 0.0
      %v1812 = vmax.f32 %v1780, 0.0
      %1813 = vst.msk [vmem:[%s272 + $0x1] sm:$0xff] %vm307, %v1781
      %1814 = vst.msk [vmem:[%s272 + $0x9] sm:$0x7f] %vm309, %v1782
      %1815 = vst.msk [vmem:[%s272 + $0x11] sm:$0xff] %vm307, %v1783
      %1816 = vst.msk [vmem:[%s272 + $0x19] sm:$0x7f] %vm309, %v1784
      %1817 = vst.msk [vmem:[%s272 + $0x21] sm:$0xff] %vm307, %v1785
      %1818 = vst.msk [vmem:[%s272 + $0x29] sm:$0x7f] %vm309, %v1786
      %1819 = vst.msk [vmem:[%s272 + $0x31] sm:$0xff] %vm307, %v1787
      %1820 = vst.msk [vmem:[%s272 + $0x39] sm:$0x7f] %vm309, %v1788
      %1821 = vst.msk [vmem:[%s272 + $0x41] sm:$0xff] %vm307, %v1789
      %1822 = vst.msk [vmem:[%s272 + $0x49] sm:$0x7f] %vm309, %v1790
      %1823 = vst.msk [vmem:[%s272 + $0x51] sm:$0xff] %vm307, %v1791
      %1824 = vst.msk [vmem:[%s272 + $0x59] sm:$0x7f] %vm309, %v1792
      %1825 = vst.msk [vmem:[%s272 + $0x61] sm:$0xff] %vm307, %v1793
      %1826 = vst.msk [vmem:[%s272 + $0x69] sm:$0x7f] %vm309, %v1794
      %1827 = vst.msk [vmem:[%s272 + $0x71] sm:$0xff] %vm307, %v1795
      %1828 = vst.msk [vmem:[%s272 + $0x79] sm:$0x7f] %vm309, %v1796
      %1829 = vst.msk [vmem:[%s272 + $0x81] sm:$0xff] %vm307, %v1797
      %1830 = vst.msk [vmem:[%s272 + $0x89] sm:$0x7f] %vm309, %v1798
      %1831 = vst.msk [vmem:[%s272 + $0x91] sm:$0xff] %vm307, %v1799
      %1832 = vst.msk [vmem:[%s272 + $0x99] sm:$0x7f] %vm309, %v1800
      %1833 = vst.msk [vmem:[%s272 + $0xa1] sm:$0xff] %vm307, %v1801
      %1834 = vst.msk [vmem:[%s272 + $0xa9] sm:$0x7f] %vm309, %v1802
      %1835 = vst.msk [vmem:[%s272 + $0xb1] sm:$0xff] %vm307, %v1803
      %1836 = vst.msk [vmem:[%s272 + $0xb9] sm:$0x7f] %vm309, %v1804
      %1837 = vst.msk [vmem:[%s272 + $0xc1] sm:$0xff] %vm307, %v1805
      %1838 = vst.msk [vmem:[%s272 + $0xc9] sm:$0x7f] %vm309, %v1806
      %1839 = vst.msk [vmem:[%s272 + $0xd1] sm:$0xff] %vm307, %v1807
      %1840 = vst.msk [vmem:[%s272 + $0xd9] sm:$0x7f] %vm309, %v1808
      %1841 = vst.msk [vmem:[%s272 + $0xe1] sm:$0xff] %vm307, %v1809
      %1842 = vst.msk [vmem:[%s272 + $0xe9] sm:$0x7f] %vm309, %v1810
      %1843 = vst.msk [vmem:[%s272 + $0xf1] sm:$0xff] %vm307, %v1811
      %1844 = vst.msk [vmem:[%s272 + $0xf9] sm:$0x7f] %vm309, %v1812
      %1877 = vrot.lane.b32.xlu0 %v1781, 16
      %v1878 = vpop.permute.xlu0 %1877
      %1879 = vrot.lane.b32.xlu0 %v1782, 16
      %v1880 = vpop.permute.xlu0 %1879
      %1881 = vrot.lane.b32.xlu0 %v1783, 16
      %v1882 = vpop.permute.xlu0 %1881
      %1883 = vrot.lane.b32.xlu0 %v1784, 16
      %v1884 = vpop.permute.xlu0 %1883
      %1885 = vrot.lane.b32.xlu0 %v1785, 16
      %v1886 = vpop.permute.xlu0 %1885
      %1887 = vrot.lane.b32.xlu0 %v1786, 16
      %v1888 = vpop.permute.xlu0 %1887
      %1889 = vrot.lane.b32.xlu0 %v1787, 16
      %v1890 = vpop.permute.xlu0 %1889
      %1891 = vrot.lane.b32.xlu0 %v1788, 16
      %v1892 = vpop.permute.xlu0 %1891
      %1893 = vrot.lane.b32.xlu0 %v1789, 16
      %v1894 = vpop.permute.xlu0 %1893
      %1895 = vrot.lane.b32.xlu0 %v1790, 16
      %v1896 = vpop.permute.xlu0 %1895
      %1897 = vrot.lane.b32.xlu0 %v1791, 16
      %v1898 = vpop.permute.xlu0 %1897
      %1899 = vrot.lane.b32.xlu0 %v1792, 16
      %v1900 = vpop.permute.xlu0 %1899
      %1901 = vrot.lane.b32.xlu0 %v1793, 16
      %v1902 = vpop.permute.xlu0 %1901
      %1903 = vrot.lane.b32.xlu0 %v1794, 16
      %v1904 = vpop.permute.xlu0 %1903
      %1905 = vrot.lane.b32.xlu0 %v1795, 16
      %v1906 = vpop.permute.xlu0 %1905
      %1907 = vrot.lane.b32.xlu0 %v1796, 16
      %v1908 = vpop.permute.xlu0 %1907
      %1909 = vrot.lane.b32.xlu0 %v1797, 16
      %v1910 = vpop.permute.xlu0 %1909
      %1911 = vrot.lane.b32.xlu0 %v1798, 16
      %v1912 = vpop.permute.xlu0 %1911
      %1913 = vrot.lane.b32.xlu0 %v1799, 16
      %v1914 = vpop.permute.xlu0 %1913
      %1915 = vrot.lane.b32.xlu0 %v1800, 16
      %v1916 = vpop.permute.xlu0 %1915
      %1917 = vrot.lane.b32.xlu0 %v1801, 16
      %v1918 = vpop.permute.xlu0 %1917
      %1919 = vrot.lane.b32.xlu0 %v1802, 16
      %v1920 = vpop.permute.xlu0 %1919
      %1921 = vrot.lane.b32.xlu0 %v1803, 16
      %v1922 = vpop.permute.xlu0 %1921
      %1923 = vrot.lane.b32.xlu0 %v1804, 16
      %v1924 = vpop.permute.xlu0 %1923
      %1925 = vrot.lane.b32.xlu0 %v1805, 16
      %v1926 = vpop.permute.xlu0 %1925
      %1927 = vrot.lane.b32.xlu0 %v1806, 16
      %v1928 = vpop.permute.xlu0 %1927
      %1929 = vrot.lane.b32.xlu0 %v1807, 16
      %v1930 = vpop.permute.xlu0 %1929
      %1931 = vrot.lane.b32.xlu0 %v1808, 16
      %v1932 = vpop.permute.xlu0 %1931
      %1933 = vrot.lane.b32.xlu0 %v1809, 16
      %v1934 = vpop.permute.xlu0 %1933
      %1935 = vrot.lane.b32.xlu0 %v1810, 16
      %v1936 = vpop.permute.xlu0 %1935
      %1937 = vrot.lane.b32.xlu0 %v1811, 16
      %v1938 = vpop.permute.xlu0 %1937
      %1939 = vrot.lane.b32.xlu0 %v1812, 16
      %v1940 = vpop.permute.xlu0 %1939
      %1973 = vst.msk [vmem:[%s272] sm:$0xff] %vm469, %v1878
      %1974 = vst.msk [vmem:[%s272 + $0x8] sm:$0xff] %vm469, %v1880
      %1975 = vst.msk [vmem:[%s272 + $0x10] sm:$0xff] %vm469, %v1882
      %1976 = vst.msk [vmem:[%s272 + $0x18] sm:$0xff] %vm469, %v1884
      %1977 = vst.msk [vmem:[%s272 + $0x20] sm:$0xff] %vm469, %v1886
      %1978 = vst.msk [vmem:[%s272 + $0x28] sm:$0xff] %vm469, %v1888
      %1979 = vst.msk [vmem:[%s272 + $0x30] sm:$0xff] %vm469, %v1890
      %1980 = vst.msk [vmem:[%s272 + $0x38] sm:$0xff] %vm469, %v1892
      %1981 = vst.msk [vmem:[%s272 + $0x40] sm:$0xff] %vm469, %v1894
      %1982 = vst.msk [vmem:[%s272 + $0x48] sm:$0xff] %vm469, %v1896
      %1983 = vst.msk [vmem:[%s272 + $0x50] sm:$0xff] %vm469, %v1898
      %1984 = vst.msk [vmem:[%s272 + $0x58] sm:$0xff] %vm469, %v1900
      %1985 = vst.msk [vmem:[%s272 + $0x60] sm:$0xff] %vm469, %v1902
      %1986 = vst.msk [vmem:[%s272 + $0x68] sm:$0xff] %vm469, %v1904
      %1987 = vst.msk [vmem:[%s272 + $0x70] sm:$0xff] %vm469, %v1906
      %1988 = vst.msk [vmem:[%s272 + $0x78] sm:$0xff] %vm469, %v1908
      %1989 = vst.msk [vmem:[%s272 + $0x80] sm:$0xff] %vm469, %v1910
      %1990 = vst.msk [vmem:[%s272 + $0x88] sm:$0xff] %vm469, %v1912
      %1991 = vst.msk [vmem:[%s272 + $0x90] sm:$0xff] %vm469, %v1914
      %1992 = vst.msk [vmem:[%s272 + $0x98] sm:$0xff] %vm469, %v1916
      %1993 = vst.msk [vmem:[%s272 + $0xa0] sm:$0xff] %vm469, %v1918
      %1994 = vst.msk [vmem:[%s272 + $0xa8] sm:$0xff] %vm469, %v1920
      %1995 = vst.msk [vmem:[%s272 + $0xb0] sm:$0xff] %vm469, %v1922
      %1996 = vst.msk [vmem:[%s272 + $0xb8] sm:$0xff] %vm469, %v1924
      %1997 = vst.msk [vmem:[%s272 + $0xc0] sm:$0xff] %vm469, %v1926
      %1998 = vst.msk [vmem:[%s272 + $0xc8] sm:$0xff] %vm469, %v1928
      %1999 = vst.msk [vmem:[%s272 + $0xd0] sm:$0xff] %vm469, %v1930
      %2000 = vst.msk [vmem:[%s272 + $0xd8] sm:$0xff] %vm469, %v1932
      %2001 = vst.msk [vmem:[%s272 + $0xe0] sm:$0xff] %vm469, %v1934
      %2002 = vst.msk [vmem:[%s272 + $0xe8] sm:$0xff] %vm469, %v1936
      %2003 = vst.msk [vmem:[%s272 + $0xf0] sm:$0xff] %vm469, %v1938
      %2004 = vst.msk [vmem:[%s272 + $0xf8] sm:$0xff] %vm469, %v1940
      %2005 = vrot.lane.b32.xlu0 %v1781, 32
      %v2006 = vpop.permute.xlu0 %2005
      %2007 = vrot.lane.b32.xlu0 %v1782, 32
      %v2008 = vpop.permute.xlu0 %2007
      %2009 = vrot.lane.b32.xlu0 %v1783, 32
      %v2010 = vpop.permute.xlu0 %2009
      %2011 = vrot.lane.b32.xlu0 %v1784, 32
      %v2012 = vpop.permute.xlu0 %2011
      %2013 = vrot.lane.b32.xlu0 %v1785, 32
      %v2014 = vpop.permute.xlu0 %2013
      %2015 = vrot.lane.b32.xlu0 %v1786, 32
      %v2016 = vpop.permute.xlu0 %2015
      %2017 = vrot.lane.b32.xlu0 %v1787, 32
      %v2018 = vpop.permute.xlu0 %2017
      %2019 = vrot.lane.b32.xlu0 %v1788, 32
      %v2020 = vpop.permute.xlu0 %2019
      %2021 = vrot.lane.b32.xlu0 %v1789, 32
      %v2022 = vpop.permute.xlu0 %2021
      %2023 = vrot.lane.b32.xlu0 %v1790, 32
      %v2024 = vpop.permute.xlu0 %2023
      %2025 = vrot.lane.b32.xlu0 %v1791, 32
      %v2026 = vpop.permute.xlu0 %2025
      %2027 = vrot.lane.b32.xlu0 %v1792, 32
      %v2028 = vpop.permute.xlu0 %2027
      %2029 = vrot.lane.b32.xlu0 %v1793, 32
      %v2030 = vpop.permute.xlu0 %2029
      %2031 = vrot.lane.b32.xlu0 %v1794, 32
      %v2032 = vpop.permute.xlu0 %2031
      %2033 = vrot.lane.b32.xlu0 %v1795, 32
      %v2034 = vpop.permute.xlu0 %2033
      %2035 = vrot.lane.b32.xlu0 %v1796, 32
      %v2036 = vpop.permute.xlu0 %2035
      %2037 = vrot.lane.b32.xlu0 %v1797, 32
      %v2038 = vpop.permute.xlu0 %2037
      %2039 = vrot.lane.b32.xlu0 %v1798, 32
      %v2040 = vpop.permute.xlu0 %2039
      %2041 = vrot.lane.b32.xlu0 %v1799, 32
      %v2042 = vpop.permute.xlu0 %2041
      %2043 = vrot.lane.b32.xlu0 %v1800, 32
      %v2044 = vpop.permute.xlu0 %2043
      %2045 = vrot.lane.b32.xlu0 %v1801, 32
      %v2046 = vpop.permute.xlu0 %2045
      %2047 = vrot.lane.b32.xlu0 %v1802, 32
      %v2048 = vpop.permute.xlu0 %2047
      %2049 = vrot.lane.b32.xlu0 %v1803, 32
      %v2050 = vpop.permute.xlu0 %2049
      %2051 = vrot.lane.b32.xlu0 %v1804, 32
      %v2052 = vpop.permute.xlu0 %2051
      %2053 = vrot.lane.b32.xlu0 %v1805, 32
      %v2054 = vpop.permute.xlu0 %2053
      %2055 = vrot.lane.b32.xlu0 %v1806, 32
      %v2056 = vpop.permute.xlu0 %2055
      %2057 = vrot.lane.b32.xlu0 %v1807, 32
      %v2058 = vpop.permute.xlu0 %2057
      %2059 = vrot.lane.b32.xlu0 %v1808, 32
      %v2060 = vpop.permute.xlu0 %2059
      %2061 = vrot.lane.b32.xlu0 %v1809, 32
      %v2062 = vpop.permute.xlu0 %2061
      %2063 = vrot.lane.b32.xlu0 %v1810, 32
      %v2064 = vpop.permute.xlu0 %2063
      %2065 = vrot.lane.b32.xlu0 %v1811, 32
      %v2066 = vpop.permute.xlu0 %2065
      %2067 = vrot.lane.b32.xlu0 %v1812, 32
      %v2068 = vpop.permute.xlu0 %2067
      %2101 = vst.msk [vmem:[%s272 - $0x1] sm:$0xfe] %vm598, %v2006
      %2102 = vst.msk [vmem:[%s272 + $0x7] sm:$0xff] %vm600, %v2008
      %2103 = vst.msk [vmem:[%s272 + $0xf] sm:$0xfe] %vm598, %v2010
      %2104 = vst.msk [vmem:[%s272 + $0x17] sm:$0xff] %vm600, %v2012
      %2105 = vst.msk [vmem:[%s272 + $0x1f] sm:$0xfe] %vm598, %v2014
      %2106 = vst.msk [vmem:[%s272 + $0x27] sm:$0xff] %vm600, %v2016
      %2107 = vst.msk [vmem:[%s272 + $0x2f] sm:$0xfe] %vm598, %v2018
      %2108 = vst.msk [vmem:[%s272 + $0x37] sm:$0xff] %vm600, %v2020
      %2109 = vst.msk [vmem:[%s272 + $0x3f] sm:$0xfe] %vm598, %v2022
      %2110 = vst.msk [vmem:[%s272 + $0x47] sm:$0xff] %vm600, %v2024
      %2111 = vst.msk [vmem:[%s272 + $0x4f] sm:$0xfe] %vm598, %v2026
      %2112 = vst.msk [vmem:[%s272 + $0x57] sm:$0xff] %vm600, %v2028
      %2113 = vst.msk [vmem:[%s272 + $0x5f] sm:$0xfe] %vm598, %v2030
      %2114 = vst.msk [vmem:[%s272 + $0x67] sm:$0xff] %vm600, %v2032
      %2115 = vst.msk [vmem:[%s272 + $0x6f] sm:$0xfe] %vm598, %v2034
      %2116 = vst.msk [vmem:[%s272 + $0x77] sm:$0xff] %vm600, %v2036
      %2117 = vst.msk [vmem:[%s272 + $0x7f] sm:$0xfe] %vm598, %v2038
      %2118 = vst.msk [vmem:[%s272 + $0x87] sm:$0xff] %vm600, %v2040
      %2119 = vst.msk [vmem:[%s272 + $0x8f] sm:$0xfe] %vm598, %v2042
      %2120 = vst.msk [vmem:[%s272 + $0x97] sm:$0xff] %vm600, %v2044
      %2121 = vst.msk [vmem:[%s272 + $0x9f] sm:$0xfe] %vm598, %v2046
      %2122 = vst.msk [vmem:[%s272 + $0xa7] sm:$0xff] %vm600, %v2048
      %2123 = vst.msk [vmem:[%s272 + $0xaf] sm:$0xfe] %vm598, %v2050
      %2124 = vst.msk [vmem:[%s272 + $0xb7] sm:$0xff] %vm600, %v2052
      %2125 = vst.msk [vmem:[%s272 + $0xbf] sm:$0xfe] %vm598, %v2054
      %2126 = vst.msk [vmem:[%s272 + $0xc7] sm:$0xff] %vm600, %v2056
      %2127 = vst.msk [vmem:[%s272 + $0xcf] sm:$0xfe] %vm598, %v2058
      %2128 = vst.msk [vmem:[%s272 + $0xd7] sm:$0xff] %vm600, %v2060
      %2129 = vst.msk [vmem:[%s272 + $0xdf] sm:$0xfe] %vm598, %v2062
      %2130 = vst.msk [vmem:[%s272 + $0xe7] sm:$0xff] %vm600, %v2064
      %2131 = vst.msk [vmem:[%s272 + $0xef] sm:$0xfe] %vm598, %v2066
      %2132 = vst.msk [vmem:[%s272 + $0xf7] sm:$0xff] %vm600, %v2068
      %v2133 = vld [vmem:[%s3 + $0x1] sm:$0x1]
      %v2134 = vld [vmem:[#allocation2] sm:$0xff]
      %v2135 = vld [vmem:[#allocation2 + $0x8] sm:$0xff]
      %v2136 = vld [vmem:[#allocation2 + $0x10] sm:$0xff]
      %v2137 = vld [vmem:[#allocation2 + $0x18] sm:$0xff]
      %v2138 = vld [vmem:[#allocation2 + $0x20] sm:$0xff]
      %v2139 = vld [vmem:[#allocation2 + $0x28] sm:$0xff]
      %v2140 = vld [vmem:[#allocation2 + $0x30] sm:$0xff]
      %v2141 = vld [vmem:[#allocation2 + $0x38] sm:$0xff]
      %v2142 = vld [vmem:[#allocation2 + $0x40] sm:$0xff]
      %v2143 = vld [vmem:[#allocation2 + $0x48] sm:$0xff]
      %v2144 = vld [vmem:[#allocation2 + $0x50] sm:$0xff]
      %v2145 = vld [vmem:[#allocation2 + $0x58] sm:$0xff]
      %v2146 = vld [vmem:[#allocation2 + $0x60] sm:$0xff]
      %v2147 = vld [vmem:[#allocation2 + $0x68] sm:$0xff]
      %v2148 = vld [vmem:[#allocation2 + $0x70] sm:$0xff]
      %v2149 = vld [vmem:[#allocation2 + $0x78] sm:$0xff]
      %v2150 = vld [vmem:[#allocation2 + $0x80] sm:$0xff]
      %v2151 = vld [vmem:[#allocation2 + $0x88] sm:$0xff]
      %v2152 = vld [vmem:[#allocation2 + $0x90] sm:$0xff]
      %v2153 = vld [vmem:[#allocation2 + $0x98] sm:$0xff]
      %v2154 = vld [vmem:[#allocation2 + $0xa0] sm:$0xff]
      %v2155 = vld [vmem:[#allocation2 + $0xa8] sm:$0xff]
      %v2156 = vld [vmem:[#allocation2 + $0xb0] sm:$0xff]
      %v2157 = vld [vmem:[#allocation2 + $0xb8] sm:$0xff]
      %v2158 = vld [vmem:[#allocation2 + $0xc0] sm:$0xff]
      %v2159 = vld [vmem:[#allocation2 + $0xc8] sm:$0xff]
      %v2160 = vld [vmem:[#allocation2 + $0xd0] sm:$0xff]
      %v2161 = vld [vmem:[#allocation2 + $0xd8] sm:$0xff]
      %v2162 = vld [vmem:[#allocation2 + $0xe0] sm:$0xff]
      %v2163 = vld [vmem:[#allocation2 + $0xe8] sm:$0xff]
      %v2164 = vld [vmem:[#allocation2 + $0xf0] sm:$0xff]
      %v2165 = vld [vmem:[#allocation2 + $0xf8] sm:$0xff]
      %v2166 = vld [vmem:[%s2] sm:$0xff]
      %v2167 = vld [vmem:[%s2 + $0x8] sm:$0xff]
      %v2168 = vld [vmem:[%s2 + $0x10] sm:$0xff]
      %v2169 = vld [vmem:[%s2 + $0x18] sm:$0xff]
      %v2170 = vld [vmem:[%s2 + $0x20] sm:$0xff]
      %v2171 = vld [vmem:[%s2 + $0x28] sm:$0xff]
      %v2172 = vld [vmem:[%s272] sm:$0xff]
      %v2173 = vld [vmem:[%s272 + $0x8] sm:$0xff]
      %v2174 = vld [vmem:[%s272 + $0x10] sm:$0xff]
      %v2175 = vld [vmem:[%s272 + $0x18] sm:$0xff]
      %v2176 = vld [vmem:[%s272 + $0x20] sm:$0xff]
      %v2177 = vld [vmem:[%s272 + $0x28] sm:$0xff]
      %v2178 = vld [vmem:[%s272 + $0x30] sm:$0xff]
      %v2179 = vld [vmem:[%s272 + $0x38] sm:$0xff]
      %v2180 = vld [vmem:[%s272 + $0x40] sm:$0xff]
      %v2181 = vld [vmem:[%s272 + $0x48] sm:$0xff]
      %v2182 = vld [vmem:[%s272 + $0x50] sm:$0xff]
      %v2183 = vld [vmem:[%s272 + $0x58] sm:$0xff]
      %v2184 = vld [vmem:[%s272 + $0x60] sm:$0xff]
      %v2185 = vld [vmem:[%s272 + $0x68] sm:$0xff]
      %v2186 = vld [vmem:[%s272 + $0x70] sm:$0xff]
      %v2187 = vld [vmem:[%s272 + $0x78] sm:$0xff]
      %v2188 = vld [vmem:[%s272 + $0x80] sm:$0xff]
      %v2189 = vld [vmem:[%s272 + $0x88] sm:$0xff]
      %v2190 = vld [vmem:[%s272 + $0x90] sm:$0xff]
      %v2191 = vld [vmem:[%s272 + $0x98] sm:$0xff]
      %v2192 = vld [vmem:[%s272 + $0xa0] sm:$0xff]
      %v2193 = vld [vmem:[%s272 + $0xa8] sm:$0xff]
      %v2194 = vld [vmem:[%s272 + $0xb0] sm:$0xff]
      %v2195 = vld [vmem:[%s272 + $0xb8] sm:$0xff]
      %v2196 = vld [vmem:[%s272 + $0xc0] sm:$0xff]
      %v2197 = vld [vmem:[%s272 + $0xc8] sm:$0xff]
      %v2198 = vld [vmem:[%s272 + $0xd0] sm:$0xff]
      %v2199 = vld [vmem:[%s272 + $0xd8] sm:$0xff]
      %v2200 = vld [vmem:[%s272 + $0xe0] sm:$0xff]
      %v2201 = vld [vmem:[%s272 + $0xe8] sm:$0xff]
      %v2202 = vld [vmem:[%s272 + $0xf0] sm:$0xff]
      %v2203 = vld [vmem:[%s272 + $0xf8] sm:$0xff]
      %s2204 = scalar_lea.vmem %s2, 48
      %v2205 = vld [vmem:[%s2204] sm:$0xff]
      %v2206 = vld [vmem:[%s2204 + $0x8] sm:$0xff]
      %v2207 = vld [vmem:[%s2204 + $0x10] sm:$0xff]
      %v2208 = vld [vmem:[%s2204 + $0x18] sm:$0xff]
      %v2209 = vld [vmem:[%s2204 + $0x20] sm:$0xff]
      %v2210 = vld [vmem:[%s2204 + $0x28] sm:$0xff]
      %v2212 = vsel %vm266, %v2172, 0
      %v2215 = vsel %vm266, %v2173, 0
      %v2218 = vsel %vm266, %v2174, 0
      %v2221 = vsel %vm266, %v2175, 0
      %v2224 = vsel %vm266, %v2176, 0
      %v2227 = vsel %vm266, %v2177, 0
      %v2230 = vsel %vm266, %v2178, 0
      %v2233 = vsel %vm266, %v2179, 0
      %v2236 = vsel %vm266, %v2180, 0
      %v2239 = vsel %vm266, %v2181, 0
      %v2242 = vsel %vm266, %v2182, 0
      %v2245 = vsel %vm266, %v2183, 0
      %v2248 = vsel %vm266, %v2184, 0
      %v2251 = vsel %vm266, %v2185, 0
      %v2254 = vsel %vm266, %v2186, 0
      %v2257 = vsel %vm266, %v2187, 0
      %v2260 = vsel %vm266, %v2188, 0
      %v2263 = vsel %vm266, %v2189, 0
      %v2266 = vsel %vm266, %v2190, 0
      %v2269 = vsel %vm266, %v2191, 0
      %v2272 = vsel %vm266, %v2192, 0
      %v2275 = vsel %vm266, %v2193, 0
      %v2278 = vsel %vm266, %v2194, 0
      %v2281 = vsel %vm266, %v2195, 0
      %v2284 = vsel %vm266, %v2196, 0
      %v2287 = vsel %vm266, %v2197, 0
      %v2290 = vsel %vm266, %v2198, 0
      %v2293 = vsel %vm266, %v2199, 0
      %v2296 = vsel %vm266, %v2200, 0
      %v2299 = vsel %vm266, %v2201, 0
      %v2302 = vsel %vm266, %v2202, 0
      %v2305 = vsel %vm266, %v2203, 0
      %2307 = vmatprep.subr.mxu0 0.0
      %2308 = vmatpush1.msra.mxu0 0.0
      %2309 = vmatprep.subr.mxu0 0.0
      %2310 = vmatpush1.msra.mxu0 0.0
      %2311 = vmatprep.subr.mxu0 0.0
      %2312 = vmatpush1.msra.mxu0 0.0
      %2313 = vmatprep.subr.mxu0 0.0
      %2314 = vmatpush1.msra.mxu0 0.0
      %2315 = vmatprep.subr.mxu0 0.0
      %2316 = vmatpush1.msra.mxu0 0.0
      %2317 = vmatprep.subr.mxu0 0.0
      %2318 = vmatpush1.msra.mxu0 0.0
      %2319 = vmatprep.subr.mxu0 0.0
      %2320 = vmatpush1.msra.mxu0 0.0
      %2321 = vmatprep.subr.mxu0 0.0
      %2322 = vmatpush1.msra.mxu0 0.0
      %2323 = vmatprep.subr.mxu0 0.0
      %2324 = vmatpush1.msra.mxu0 0.0
      %2325 = vmatprep.subr.mxu0 0.0
      %2326 = vmatpush1.msra.mxu0 0.0
      %2327 = vmatprep.subr.mxu0 0.0
      %2328 = vmatpush1.msra.mxu0 %v2210
      %2329 = vmatprep.subr.mxu0 0.0
      %2330 = vmatpush1.msra.mxu0 %v2209
      %2331 = vmatprep.subr.mxu0 0.0
      %2332 = vmatpush1.msra.mxu0 %v2208
      %2333 = vmatprep.subr.mxu0 0.0
      %2334 = vmatpush1.msra.mxu0 %v2207
      %2335 = vmatprep.subr.mxu0 0.0
      %2336 = vmatpush1.msra.mxu0 %v2206
      %2337 = vmatprep.subr.mxu0 0.0
      %2338 = vmatpush1.msra.mxu0 %v2205
      %2339 = vmatprep.subr.mxu0 0.0
      %2340 = vmatpush2.msra.mxu0 0.0
      %2341 = vmatprep.subr.mxu0 0.0
      %2342 = vmatpush2.msra.mxu0 0.0
      %2343 = vmatprep.subr.mxu0 0.0
      %2344 = vmatpush2.msra.mxu0 0.0
      %2345 = vmatprep.subr.mxu0 0.0
      %2346 = vmatpush2.msra.mxu0 0.0
      %2347 = vmatprep.subr.mxu0 0.0
      %2348 = vmatpush2.msra.mxu0 0.0
      %2349 = vmatprep.subr.mxu0 0.0
      %2350 = vmatpush2.msra.mxu0 0.0
      %2351 = vmatprep.subr.mxu0 0.0
      %2352 = vmatpush2.msra.mxu0 0.0
      %2353 = vmatprep.subr.mxu0 0.0
      %2354 = vmatpush2.msra.mxu0 0.0
      %2355 = vmatprep.subr.mxu0 0.0
      %2356 = vmatpush2.msra.mxu0 0.0
      %2357 = vmatprep.subr.mxu0 0.0
      %2358 = vmatpush2.msra.mxu0 0.0
      %2359 = vmatprep.subr.mxu0 0.0
      %2360 = vmatpush2.msra.mxu0 0.0
      %2361 = vmatprep.subr.mxu0 0.0
      %2362 = vmatpush2.msra.mxu0 0.0
      %2363 = vmatprep.subr.mxu0 0.0
      %2364 = vmatpush2.msra.mxu0 0.0
      %2365 = vmatprep.subr.mxu0 0.0
      %2366 = vmatpush2.msra.mxu0 0.0
      %2367 = vmatprep.subr.mxu0 0.0
      %2368 = vmatpush2.msra.mxu0 0.0
      %2369 = vmatprep.subr.mxu0 0.0
      %2370 = vmatpush2.msra.mxu0 0.0
      %2371 = vmatprep.mubr.f32.mxu0 0.0
      %2372 = vmatmul.mubr.f32.gmra.mxu0 %v2212
      %v2373 = vpop.f32.mrf.mxu0
      %v2374 = vadd.f32 0.0, %v2373
      %v2375 = vpop.f32.mrf.mxu0
      %2376 = vmatprep.mubr.f32.mxu0 0.0
      %2377 = vmatmul.mubr.f32.gmra.mxu0 %v2215
      %v2378 = vpop.f32.mrf.mxu0
      %v2379 = vadd.f32 0.0, %v2378
      %v2380 = vpop.f32.mrf.mxu0
      %2381 = vmatprep.mubr.f32.mxu0 0.0
      %2382 = vmatmul.mubr.f32.gmra.mxu0 %v2218
      %v2383 = vpop.f32.mrf.mxu0
      %v2384 = vadd.f32 0.0, %v2383
      %v2385 = vpop.f32.mrf.mxu0
      %2386 = vmatprep.mubr.f32.mxu0 0.0
      %2387 = vmatmul.mubr.f32.gmra.mxu0 %v2221
      %v2388 = vpop.f32.mrf.mxu0
      %v2389 = vadd.f32 0.0, %v2388
      %v2390 = vpop.f32.mrf.mxu0
      %2391 = vmatprep.mubr.f32.mxu0 0.0
      %2392 = vmatmul.mubr.f32.gmra.mxu0 %v2224
      %v2393 = vpop.f32.mrf.mxu0
      %v2394 = vadd.f32 0.0, %v2393
      %v2395 = vpop.f32.mrf.mxu0
      %2396 = vmatprep.mubr.f32.mxu0 0.0
      %2397 = vmatmul.mubr.f32.gmra.mxu0 %v2227
      %v2398 = vpop.f32.mrf.mxu0
      %v2399 = vadd.f32 0.0, %v2398
      %v2400 = vpop.f32.mrf.mxu0
      %2401 = vmatprep.mubr.f32.mxu0 0.0
      %2402 = vmatmul.mubr.f32.gmra.mxu0 %v2230
      %v2403 = vpop.f32.mrf.mxu0
      %v2404 = vadd.f32 0.0, %v2403
      %v2405 = vpop.f32.mrf.mxu0
      %2406 = vmatprep.mubr.f32.mxu0 0.0
      %2407 = vmatmul.mubr.f32.gmra.mxu0 %v2233
      %v2408 = vpop.f32.mrf.mxu0
      %v2409 = vadd.f32 0.0, %v2408
      %v2410 = vpop.f32.mrf.mxu0
      %2411 = vmatprep.mubr.f32.mxu0 0.0
      %2412 = vmatmul.mubr.f32.gmra.mxu0 %v2236
      %v2413 = vpop.f32.mrf.mxu0
      %v2414 = vadd.f32 0.0, %v2413
      %v2415 = vpop.f32.mrf.mxu0
      %2416 = vmatprep.mubr.f32.mxu0 0.0
      %2417 = vmatmul.mubr.f32.gmra.mxu0 %v2239
      %v2418 = vpop.f32.mrf.mxu0
      %v2419 = vadd.f32 0.0, %v2418
      %v2420 = vpop.f32.mrf.mxu0
      %2421 = vmatprep.mubr.f32.mxu0 0.0
      %2422 = vmatmul.mubr.f32.gmra.mxu0 %v2242
      %v2423 = vpop.f32.mrf.mxu0
      %v2424 = vadd.f32 0.0, %v2423
      %v2425 = vpop.f32.mrf.mxu0
      %2426 = vmatprep.mubr.f32.mxu0 0.0
      %2427 = vmatmul.mubr.f32.gmra.mxu0 %v2245
      %v2428 = vpop.f32.mrf.mxu0
      %v2429 = vadd.f32 0.0, %v2428
      %v2430 = vpop.f32.mrf.mxu0
      %2431 = vmatprep.mubr.f32.mxu0 0.0
      %2432 = vmatmul.mubr.f32.gmra.mxu0 %v2248
      %v2433 = vpop.f32.mrf.mxu0
      %v2434 = vadd.f32 0.0, %v2433
      %v2435 = vpop.f32.mrf.mxu0
      %2436 = vmatprep.mubr.f32.mxu0 0.0
      %2437 = vmatmul.mubr.f32.gmra.mxu0 %v2251
      %v2438 = vpop.f32.mrf.mxu0
      %v2439 = vadd.f32 0.0, %v2438
      %v2440 = vpop.f32.mrf.mxu0
      %2441 = vmatprep.mubr.f32.mxu0 0.0
      %2442 = vmatmul.mubr.f32.gmra.mxu0 %v2254
      %v2443 = vpop.f32.mrf.mxu0
      %v2444 = vadd.f32 0.0, %v2443
      %v2445 = vpop.f32.mrf.mxu0
      %2446 = vmatprep.mubr.f32.mxu0 0.0
      %2447 = vmatmul.mubr.f32.gmra.mxu0 %v2257
      %v2448 = vpop.f32.mrf.mxu0
      %v2449 = vadd.f32 0.0, %v2448
      %v2450 = vpop.f32.mrf.mxu0
      %2451 = vmatprep.mubr.f32.mxu0 0.0
      %2452 = vmatmul.mubr.f32.gmra.mxu0 %v2260
      %v2453 = vpop.f32.mrf.mxu0
      %v2454 = vadd.f32 0.0, %v2453
      %v2455 = vpop.f32.mrf.mxu0
      %2456 = vmatprep.mubr.f32.mxu0 0.0
      %2457 = vmatmul.mubr.f32.gmra.mxu0 %v2263
      %v2458 = vpop.f32.mrf.mxu0
      %v2459 = vadd.f32 0.0, %v2458
      %v2460 = vpop.f32.mrf.mxu0
      %2461 = vmatprep.mubr.f32.mxu0 0.0
      %2462 = vmatmul.mubr.f32.gmra.mxu0 %v2266
      %v2463 = vpop.f32.mrf.mxu0
      %v2464 = vadd.f32 0.0, %v2463
      %v2465 = vpop.f32.mrf.mxu0
      %2466 = vmatprep.mubr.f32.mxu0 0.0
      %2467 = vmatmul.mubr.f32.gmra.mxu0 %v2269
      %v2468 = vpop.f32.mrf.mxu0
      %v2469 = vadd.f32 0.0, %v2468
      %v2470 = vpop.f32.mrf.mxu0
      %2471 = vmatprep.mubr.f32.mxu0 0.0
      %2472 = vmatmul.mubr.f32.gmra.mxu0 %v2272
      %v2473 = vpop.f32.mrf.mxu0
      %v2474 = vadd.f32 0.0, %v2473
      %v2475 = vpop.f32.mrf.mxu0
      %2476 = vmatprep.mubr.f32.mxu0 0.0
      %2477 = vmatmul.mubr.f32.gmra.mxu0 %v2275
      %v2478 = vpop.f32.mrf.mxu0
      %v2479 = vadd.f32 0.0, %v2478
      %v2480 = vpop.f32.mrf.mxu0
      %2481 = vmatprep.mubr.f32.mxu0 0.0
      %2482 = vmatmul.mubr.f32.gmra.mxu0 %v2278
      %v2483 = vpop.f32.mrf.mxu0
      %v2484 = vadd.f32 0.0, %v2483
      %v2485 = vpop.f32.mrf.mxu0
      %2486 = vmatprep.mubr.f32.mxu0 0.0
      %2487 = vmatmul.mubr.f32.gmra.mxu0 %v2281
      %v2488 = vpop.f32.mrf.mxu0
      %v2489 = vadd.f32 0.0, %v2488
      %v2490 = vpop.f32.mrf.mxu0
      %2491 = vmatprep.mubr.f32.mxu0 0.0
      %2492 = vmatmul.mubr.f32.gmra.mxu0 %v2284
      %v2493 = vpop.f32.mrf.mxu0
      %v2494 = vadd.f32 0.0, %v2493
      %v2495 = vpop.f32.mrf.mxu0
      %2496 = vmatprep.mubr.f32.mxu0 0.0
      %2497 = vmatmul.mubr.f32.gmra.mxu0 %v2287
      %v2498 = vpop.f32.mrf.mxu0
      %v2499 = vadd.f32 0.0, %v2498
      %v2500 = vpop.f32.mrf.mxu0
      %2501 = vmatprep.mubr.f32.mxu0 0.0
      %2502 = vmatmul.mubr.f32.gmra.mxu0 %v2290
      %v2503 = vpop.f32.mrf.mxu0
      %v2504 = vadd.f32 0.0, %v2503
      %v2505 = vpop.f32.mrf.mxu0
      %2506 = vmatprep.mubr.f32.mxu0 0.0
      %2507 = vmatmul.mubr.f32.gmra.mxu0 %v2293
      %v2508 = vpop.f32.mrf.mxu0
      %v2509 = vadd.f32 0.0, %v2508
      %v2510 = vpop.f32.mrf.mxu0
      %2511 = vmatprep.mubr.f32.mxu0 0.0
      %2512 = vmatmul.mubr.f32.gmra.mxu0 %v2296
      %v2513 = vpop.f32.mrf.mxu0
      %v2514 = vadd.f32 0.0, %v2513
      %v2515 = vpop.f32.mrf.mxu0
      %2516 = vmatprep.mubr.f32.mxu0 0.0
      %2517 = vmatmul.mubr.f32.gmra.mxu0 %v2299
      %v2518 = vpop.f32.mrf.mxu0
      %v2519 = vadd.f32 0.0, %v2518
      %v2520 = vpop.f32.mrf.mxu0
      %2521 = vmatprep.mubr.f32.mxu0 0.0
      %2522 = vmatmul.mubr.f32.gmra.mxu0 %v2302
      %v2523 = vpop.f32.mrf.mxu0
      %v2524 = vadd.f32 0.0, %v2523
      %v2525 = vpop.f32.mrf.mxu0
      %2526 = vmatprep.mubr.f32.mxu0 0.0
      %2527 = vmatmul.mubr.f32.gmra.mxu0 %v2305
      %v2528 = vpop.f32.mrf.mxu0
      %v2529 = vadd.f32 0.0, %v2528
      %v2530 = vpop.f32.mrf.mxu0
      %2531 = vdwg.mxu0
      %v2533 = vsel %vm266, %v2134, 0
      %v2536 = vsel %vm266, %v2135, 0
      %v2539 = vsel %vm266, %v2136, 0
      %v2542 = vsel %vm266, %v2137, 0
      %v2545 = vsel %vm266, %v2138, 0
      %v2548 = vsel %vm266, %v2139, 0
      %v2551 = vsel %vm266, %v2140, 0
      %v2554 = vsel %vm266, %v2141, 0
      %v2557 = vsel %vm266, %v2142, 0
      %v2560 = vsel %vm266, %v2143, 0
      %v2563 = vsel %vm266, %v2144, 0
      %v2566 = vsel %vm266, %v2145, 0
      %v2569 = vsel %vm266, %v2146, 0
      %v2572 = vsel %vm266, %v2147, 0
      %v2575 = vsel %vm266, %v2148, 0
      %v2578 = vsel %vm266, %v2149, 0
      %v2581 = vsel %vm266, %v2150, 0
      %v2584 = vsel %vm266, %v2151, 0
      %v2587 = vsel %vm266, %v2152, 0
      %v2590 = vsel %vm266, %v2153, 0
      %v2593 = vsel %vm266, %v2154, 0
      %v2596 = vsel %vm266, %v2155, 0
      %v2599 = vsel %vm266, %v2156, 0
      %v2602 = vsel %vm266, %v2157, 0
      %v2605 = vsel %vm266, %v2158, 0
      %v2608 = vsel %vm266, %v2159, 0
      %v2611 = vsel %vm266, %v2160, 0
      %v2614 = vsel %vm266, %v2161, 0
      %v2617 = vsel %vm266, %v2162, 0
      %v2620 = vsel %vm266, %v2163, 0
      %v2623 = vsel %vm266, %v2164, 0
      %v2626 = vsel %vm266, %v2165, 0
      %2628 = vmatprep.subr.mxu0 0.0
      %2629 = vmatpush1.msra.mxu0 0.0
      %2630 = vmatprep.subr.mxu0 0.0
      %2631 = vmatpush1.msra.mxu0 0.0
      %2632 = vmatprep.subr.mxu0 0.0
      %2633 = vmatpush1.msra.mxu0 0.0
      %2634 = vmatprep.subr.mxu0 0.0
      %2635 = vmatpush1.msra.mxu0 0.0
      %2636 = vmatprep.subr.mxu0 0.0
      %2637 = vmatpush1.msra.mxu0 0.0
      %2638 = vmatprep.subr.mxu0 0.0
      %2639 = vmatpush1.msra.mxu0 0.0
      %2640 = vmatprep.subr.mxu0 0.0
      %2641 = vmatpush1.msra.mxu0 0.0
      %2642 = vmatprep.subr.mxu0 0.0
      %2643 = vmatpush1.msra.mxu0 0.0
      %2644 = vmatprep.subr.mxu0 0.0
      %2645 = vmatpush1.msra.mxu0 0.0
      %2646 = vmatprep.subr.mxu0 0.0
      %2647 = vmatpush1.msra.mxu0 0.0
      %2648 = vmatprep.subr.mxu0 0.0
      %2649 = vmatpush1.msra.mxu0 %v2171
      %2650 = vmatprep.subr.mxu0 0.0
      %2651 = vmatpush1.msra.mxu0 %v2170
      %2652 = vmatprep.subr.mxu0 0.0
      %2653 = vmatpush1.msra.mxu0 %v2169
      %2654 = vmatprep.subr.mxu0 0.0
      %2655 = vmatpush1.msra.mxu0 %v2168
      %2656 = vmatprep.subr.mxu0 0.0
      %2657 = vmatpush1.msra.mxu0 %v2167
      %2658 = vmatprep.subr.mxu0 0.0
      %2659 = vmatpush1.msra.mxu0 %v2166
      %2660 = vmatprep.subr.mxu0 0.0
      %2661 = vmatpush2.msra.mxu0 0.0
      %2662 = vmatprep.subr.mxu0 0.0
      %2663 = vmatpush2.msra.mxu0 0.0
      %2664 = vmatprep.subr.mxu0 0.0
      %2665 = vmatpush2.msra.mxu0 0.0
      %2666 = vmatprep.subr.mxu0 0.0
      %2667 = vmatpush2.msra.mxu0 0.0
      %2668 = vmatprep.subr.mxu0 0.0
      %2669 = vmatpush2.msra.mxu0 0.0
      %2670 = vmatprep.subr.mxu0 0.0
      %2671 = vmatpush2.msra.mxu0 0.0
      %2672 = vmatprep.subr.mxu0 0.0
      %2673 = vmatpush2.msra.mxu0 0.0
      %2674 = vmatprep.subr.mxu0 0.0
      %2675 = vmatpush2.msra.mxu0 0.0
      %2676 = vmatprep.subr.mxu0 0.0
      %2677 = vmatpush2.msra.mxu0 0.0
      %2678 = vmatprep.subr.mxu0 0.0
      %2679 = vmatpush2.msra.mxu0 0.0
      %2680 = vmatprep.subr.mxu0 0.0
      %2681 = vmatpush2.msra.mxu0 0.0
      %2682 = vmatprep.subr.mxu0 0.0
      %2683 = vmatpush2.msra.mxu0 0.0
      %2684 = vmatprep.subr.mxu0 0.0
      %2685 = vmatpush2.msra.mxu0 0.0
      %2686 = vmatprep.subr.mxu0 0.0
      %2687 = vmatpush2.msra.mxu0 0.0
      %2688 = vmatprep.subr.mxu0 0.0
      %2689 = vmatpush2.msra.mxu0 0.0
      %2690 = vmatprep.subr.mxu0 0.0
      %2691 = vmatpush2.msra.mxu0 0.0
      %2692 = vmatprep.mubr.f32.mxu0 0.0
      %2693 = vmatmul.mubr.f32.gmra.mxu0 %v2533
      %v2694 = vpop.f32.mrf.mxu0
      %v2695 = vadd.f32 %v2374, %v2694
      %v2696 = vpop.f32.mrf.mxu0
      %2697 = vmatprep.mubr.f32.mxu0 0.0
      %2698 = vmatmul.mubr.f32.gmra.mxu0 %v2536
      %v2699 = vpop.f32.mrf.mxu0
      %v2700 = vadd.f32 %v2379, %v2699
      %v2701 = vpop.f32.mrf.mxu0
      %2702 = vmatprep.mubr.f32.mxu0 0.0
      %2703 = vmatmul.mubr.f32.gmra.mxu0 %v2539
      %v2704 = vpop.f32.mrf.mxu0
      %v2705 = vadd.f32 %v2384, %v2704
      %v2706 = vpop.f32.mrf.mxu0
      %2707 = vmatprep.mubr.f32.mxu0 0.0
      %2708 = vmatmul.mubr.f32.gmra.mxu0 %v2542
      %v2709 = vpop.f32.mrf.mxu0
      %v2710 = vadd.f32 %v2389, %v2709
      %v2711 = vpop.f32.mrf.mxu0
      %2712 = vmatprep.mubr.f32.mxu0 0.0
      %2713 = vmatmul.mubr.f32.gmra.mxu0 %v2545
      %v2714 = vpop.f32.mrf.mxu0
      %v2715 = vadd.f32 %v2394, %v2714
      %v2716 = vpop.f32.mrf.mxu0
      %2717 = vmatprep.mubr.f32.mxu0 0.0
      %2718 = vmatmul.mubr.f32.gmra.mxu0 %v2548
      %v2719 = vpop.f32.mrf.mxu0
      %v2720 = vadd.f32 %v2399, %v2719
      %v2721 = vpop.f32.mrf.mxu0
      %2722 = vmatprep.mubr.f32.mxu0 0.0
      %2723 = vmatmul.mubr.f32.gmra.mxu0 %v2551
      %v2724 = vpop.f32.mrf.mxu0
      %v2725 = vadd.f32 %v2404, %v2724
      %v2726 = vpop.f32.mrf.mxu0
      %2727 = vmatprep.mubr.f32.mxu0 0.0
      %2728 = vmatmul.mubr.f32.gmra.mxu0 %v2554
      %v2729 = vpop.f32.mrf.mxu0
      %v2730 = vadd.f32 %v2409, %v2729
      %v2731 = vpop.f32.mrf.mxu0
      %2732 = vmatprep.mubr.f32.mxu0 0.0
      %2733 = vmatmul.mubr.f32.gmra.mxu0 %v2557
      %v2734 = vpop.f32.mrf.mxu0
      %v2735 = vadd.f32 %v2414, %v2734
      %v2736 = vpop.f32.mrf.mxu0
      %2737 = vmatprep.mubr.f32.mxu0 0.0
      %2738 = vmatmul.mubr.f32.gmra.mxu0 %v2560
      %v2739 = vpop.f32.mrf.mxu0
      %v2740 = vadd.f32 %v2419, %v2739
      %v2741 = vpop.f32.mrf.mxu0
      %2742 = vmatprep.mubr.f32.mxu0 0.0
      %2743 = vmatmul.mubr.f32.gmra.mxu0 %v2563
      %v2744 = vpop.f32.mrf.mxu0
      %v2745 = vadd.f32 %v2424, %v2744
      %v2746 = vpop.f32.mrf.mxu0
      %2747 = vmatprep.mubr.f32.mxu0 0.0
      %2748 = vmatmul.mubr.f32.gmra.mxu0 %v2566
      %v2749 = vpop.f32.mrf.mxu0
      %v2750 = vadd.f32 %v2429, %v2749
      %v2751 = vpop.f32.mrf.mxu0
      %2752 = vmatprep.mubr.f32.mxu0 0.0
      %2753 = vmatmul.mubr.f32.gmra.mxu0 %v2569
      %v2754 = vpop.f32.mrf.mxu0
      %v2755 = vadd.f32 %v2434, %v2754
      %v2756 = vpop.f32.mrf.mxu0
      %2757 = vmatprep.mubr.f32.mxu0 0.0
      %2758 = vmatmul.mubr.f32.gmra.mxu0 %v2572
      %v2759 = vpop.f32.mrf.mxu0
      %v2760 = vadd.f32 %v2439, %v2759
      %v2761 = vpop.f32.mrf.mxu0
      %2762 = vmatprep.mubr.f32.mxu0 0.0
      %2763 = vmatmul.mubr.f32.gmra.mxu0 %v2575
      %v2764 = vpop.f32.mrf.mxu0
      %v2765 = vadd.f32 %v2444, %v2764
      %v2766 = vpop.f32.mrf.mxu0
      %2767 = vmatprep.mubr.f32.mxu0 0.0
      %2768 = vmatmul.mubr.f32.gmra.mxu0 %v2578
      %v2769 = vpop.f32.mrf.mxu0
      %v2770 = vadd.f32 %v2449, %v2769
      %v2771 = vpop.f32.mrf.mxu0
      %2772 = vmatprep.mubr.f32.mxu0 0.0
      %2773 = vmatmul.mubr.f32.gmra.mxu0 %v2581
      %v2774 = vpop.f32.mrf.mxu0
      %v2775 = vadd.f32 %v2454, %v2774
      %v2776 = vpop.f32.mrf.mxu0
      %2777 = vmatprep.mubr.f32.mxu0 0.0
      %2778 = vmatmul.mubr.f32.gmra.mxu0 %v2584
      %v2779 = vpop.f32.mrf.mxu0
      %v2780 = vadd.f32 %v2459, %v2779
      %v2781 = vpop.f32.mrf.mxu0
      %2782 = vmatprep.mubr.f32.mxu0 0.0
      %2783 = vmatmul.mubr.f32.gmra.mxu0 %v2587
      %v2784 = vpop.f32.mrf.mxu0
      %v2785 = vadd.f32 %v2464, %v2784
      %v2786 = vpop.f32.mrf.mxu0
      %2787 = vmatprep.mubr.f32.mxu0 0.0
      %2788 = vmatmul.mubr.f32.gmra.mxu0 %v2590
      %v2789 = vpop.f32.mrf.mxu0
      %v2790 = vadd.f32 %v2469, %v2789
      %v2791 = vpop.f32.mrf.mxu0
      %2792 = vmatprep.mubr.f32.mxu0 0.0
      %2793 = vmatmul.mubr.f32.gmra.mxu0 %v2593
      %v2794 = vpop.f32.mrf.mxu0
      %v2795 = vadd.f32 %v2474, %v2794
      %v2796 = vpop.f32.mrf.mxu0
      %2797 = vmatprep.mubr.f32.mxu0 0.0
      %2798 = vmatmul.mubr.f32.gmra.mxu0 %v2596
      %v2799 = vpop.f32.mrf.mxu0
      %v2800 = vadd.f32 %v2479, %v2799
      %v2801 = vpop.f32.mrf.mxu0
      %2802 = vmatprep.mubr.f32.mxu0 0.0
      %2803 = vmatmul.mubr.f32.gmra.mxu0 %v2599
      %v2804 = vpop.f32.mrf.mxu0
      %v2805 = vadd.f32 %v2484, %v2804
      %v2806 = vpop.f32.mrf.mxu0
      %2807 = vmatprep.mubr.f32.mxu0 0.0
      %2808 = vmatmul.mubr.f32.gmra.mxu0 %v2602
      %v2809 = vpop.f32.mrf.mxu0
      %v2810 = vadd.f32 %v2489, %v2809
      %v2811 = vpop.f32.mrf.mxu0
      %2812 = vmatprep.mubr.f32.mxu0 0.0
      %2813 = vmatmul.mubr.f32.gmra.mxu0 %v2605
      %v2814 = vpop.f32.mrf.mxu0
      %v2815 = vadd.f32 %v2494, %v2814
      %v2816 = vpop.f32.mrf.mxu0
      %2817 = vmatprep.mubr.f32.mxu0 0.0
      %2818 = vmatmul.mubr.f32.gmra.mxu0 %v2608
      %v2819 = vpop.f32.mrf.mxu0
      %v2820 = vadd.f32 %v2499, %v2819
      %v2821 = vpop.f32.mrf.mxu0
      %2822 = vmatprep.mubr.f32.mxu0 0.0
      %2823 = vmatmul.mubr.f32.gmra.mxu0 %v2611
      %v2824 = vpop.f32.mrf.mxu0
      %v2825 = vadd.f32 %v2504, %v2824
      %v2826 = vpop.f32.mrf.mxu0
      %2827 = vmatprep.mubr.f32.mxu0 0.0
      %2828 = vmatmul.mubr.f32.gmra.mxu0 %v2614
      %v2829 = vpop.f32.mrf.mxu0
      %v2830 = vadd.f32 %v2509, %v2829
      %v2831 = vpop.f32.mrf.mxu0
      %2832 = vmatprep.mubr.f32.mxu0 0.0
      %2833 = vmatmul.mubr.f32.gmra.mxu0 %v2617
      %v2834 = vpop.f32.mrf.mxu0
      %v2835 = vadd.f32 %v2514, %v2834
      %v2836 = vpop.f32.mrf.mxu0
      %2837 = vmatprep.mubr.f32.mxu0 0.0
      %2838 = vmatmul.mubr.f32.gmra.mxu0 %v2620
      %v2839 = vpop.f32.mrf.mxu0
      %v2840 = vadd.f32 %v2519, %v2839
      %v2841 = vpop.f32.mrf.mxu0
      %2842 = vmatprep.mubr.f32.mxu0 0.0
      %2843 = vmatmul.mubr.f32.gmra.mxu0 %v2623
      %v2844 = vpop.f32.mrf.mxu0
      %v2845 = vadd.f32 %v2524, %v2844
      %v2846 = vpop.f32.mrf.mxu0
      %2847 = vmatprep.mubr.f32.mxu0 0.0
      %2848 = vmatmul.mubr.f32.gmra.mxu0 %v2626
      %v2849 = vpop.f32.mrf.mxu0
      %v2850 = vadd.f32 %v2529, %v2849
      %v2851 = vpop.f32.mrf.mxu0
      %2852 = vdwg.mxu0
      %v2853 = vld [vmem:[%s1352] sm:$0xff]
      %v2854 = vld [vmem:[%s1352 + $0x8] sm:$0xff]
      %v2855 = vld [vmem:[%s1352 + $0x10] sm:$0xff]
      %v2856 = vld [vmem:[%s1352 + $0x18] sm:$0xff]
      %v2857 = vld [vmem:[%s1352 + $0x20] sm:$0xff]
      %v2858 = vld [vmem:[%s1352 + $0x28] sm:$0xff]
      %v2859 = vld [vmem:[%s1352 + $0x30] sm:$0xff]
      %v2860 = vld [vmem:[%s1352 + $0x38] sm:$0xff]
      %v2861 = vld [vmem:[%s1352 + $0x40] sm:$0xff]
      %v2862 = vld [vmem:[%s1352 + $0x48] sm:$0xff]
      %v2863 = vld [vmem:[%s1352 + $0x50] sm:$0xff]
      %v2864 = vld [vmem:[%s1352 + $0x58] sm:$0xff]
      %v2865 = vld [vmem:[%s1352 + $0x60] sm:$0xff]
      %v2866 = vld [vmem:[%s1352 + $0x68] sm:$0xff]
      %v2867 = vld [vmem:[%s1352 + $0x70] sm:$0xff]
      %v2868 = vld [vmem:[%s1352 + $0x78] sm:$0xff]
      %v2869 = vld [vmem:[%s1352 + $0x80] sm:$0xff]
      %v2870 = vld [vmem:[%s1352 + $0x88] sm:$0xff]
      %v2871 = vld [vmem:[%s1352 + $0x90] sm:$0xff]
      %v2872 = vld [vmem:[%s1352 + $0x98] sm:$0xff]
      %v2873 = vld [vmem:[%s1352 + $0xa0] sm:$0xff]
      %v2874 = vld [vmem:[%s1352 + $0xa8] sm:$0xff]
      %v2875 = vld [vmem:[%s1352 + $0xb0] sm:$0xff]
      %v2876 = vld [vmem:[%s1352 + $0xb8] sm:$0xff]
      %v2877 = vld [vmem:[%s1352 + $0xc0] sm:$0xff]
      %v2878 = vld [vmem:[%s1352 + $0xc8] sm:$0xff]
      %v2879 = vld [vmem:[%s1352 + $0xd0] sm:$0xff]
      %v2880 = vld [vmem:[%s1352 + $0xd8] sm:$0xff]
      %v2881 = vld [vmem:[%s1352 + $0xe0] sm:$0xff]
      %v2882 = vld [vmem:[%s1352 + $0xe8] sm:$0xff]
      %v2883 = vld [vmem:[%s1352 + $0xf0] sm:$0xff]
      %v2884 = vld [vmem:[%s1352 + $0xf8] sm:$0xff]
      %s2885 = scalar_lea.vmem %s2, 96
      %v2886 = vld [vmem:[%s2885] sm:$0xff]
      %v2887 = vld [vmem:[%s2885 + $0x8] sm:$0xff]
      %v2888 = vld [vmem:[%s2885 + $0x10] sm:$0xff]
      %v2889 = vld [vmem:[%s2885 + $0x18] sm:$0xff]
      %v2890 = vld [vmem:[%s2885 + $0x20] sm:$0xff]
      %v2891 = vld [vmem:[%s2885 + $0x28] sm:$0xff]
      %v2893 = vsel %vm266, %v2853, 0
      %v2896 = vsel %vm266, %v2854, 0
      %v2899 = vsel %vm266, %v2855, 0
      %v2902 = vsel %vm266, %v2856, 0
      %v2905 = vsel %vm266, %v2857, 0
      %v2908 = vsel %vm266, %v2858, 0
      %v2911 = vsel %vm266, %v2859, 0
      %v2914 = vsel %vm266, %v2860, 0
      %v2917 = vsel %vm266, %v2861, 0
      %v2920 = vsel %vm266, %v2862, 0
      %v2923 = vsel %vm266, %v2863, 0
      %v2926 = vsel %vm266, %v2864, 0
      %v2929 = vsel %vm266, %v2865, 0
      %v2932 = vsel %vm266, %v2866, 0
      %v2935 = vsel %vm266, %v2867, 0
      %v2938 = vsel %vm266, %v2868, 0
      %v2941 = vsel %vm266, %v2869, 0
      %v2944 = vsel %vm266, %v2870, 0
      %v2947 = vsel %vm266, %v2871, 0
      %v2950 = vsel %vm266, %v2872, 0
      %v2953 = vsel %vm266, %v2873, 0
      %v2956 = vsel %vm266, %v2874, 0
      %v2959 = vsel %vm266, %v2875, 0
      %v2962 = vsel %vm266, %v2876, 0
      %v2965 = vsel %vm266, %v2877, 0
      %v2968 = vsel %vm266, %v2878, 0
      %v2971 = vsel %vm266, %v2879, 0
      %v2974 = vsel %vm266, %v2880, 0
      %v2977 = vsel %vm266, %v2881, 0
      %v2980 = vsel %vm266, %v2882, 0
      %v2983 = vsel %vm266, %v2883, 0
      %v2986 = vsel %vm266, %v2884, 0
      %2988 = vmatprep.subr.mxu0 0.0
      %2989 = vmatpush1.msra.mxu0 0.0
      %2990 = vmatprep.subr.mxu0 0.0
      %2991 = vmatpush1.msra.mxu0 0.0
      %2992 = vmatprep.subr.mxu0 0.0
      %2993 = vmatpush1.msra.mxu0 0.0
      %2994 = vmatprep.subr.mxu0 0.0
      %2995 = vmatpush1.msra.mxu0 0.0
      %2996 = vmatprep.subr.mxu0 0.0
      %2997 = vmatpush1.msra.mxu0 0.0
      %2998 = vmatprep.subr.mxu0 0.0
      %2999 = vmatpush1.msra.mxu0 0.0
      %3000 = vmatprep.subr.mxu0 0.0
      %3001 = vmatpush1.msra.mxu0 0.0
      %3002 = vmatprep.subr.mxu0 0.0
      %3003 = vmatpush1.msra.mxu0 0.0
      %3004 = vmatprep.subr.mxu0 0.0
      %3005 = vmatpush1.msra.mxu0 0.0
      %3006 = vmatprep.subr.mxu0 0.0
      %3007 = vmatpush1.msra.mxu0 0.0
      %3008 = vmatprep.subr.mxu0 0.0
      %3009 = vmatpush1.msra.mxu0 %v2891
      %3010 = vmatprep.subr.mxu0 0.0
      %3011 = vmatpush1.msra.mxu0 %v2890
      %3012 = vmatprep.subr.mxu0 0.0
      %3013 = vmatpush1.msra.mxu0 %v2889
      %3014 = vmatprep.subr.mxu0 0.0
      %3015 = vmatpush1.msra.mxu0 %v2888
      %3016 = vmatprep.subr.mxu0 0.0
      %3017 = vmatpush1.msra.mxu0 %v2887
      %3018 = vmatprep.subr.mxu0 0.0
      %3019 = vmatpush1.msra.mxu0 %v2886
      %3020 = vmatprep.subr.mxu0 0.0
      %3021 = vmatpush2.msra.mxu0 0.0
      %3022 = vmatprep.subr.mxu0 0.0
      %3023 = vmatpush2.msra.mxu0 0.0
      %3024 = vmatprep.subr.mxu0 0.0
      %3025 = vmatpush2.msra.mxu0 0.0
      %3026 = vmatprep.subr.mxu0 0.0
      %3027 = vmatpush2.msra.mxu0 0.0
      %3028 = vmatprep.subr.mxu0 0.0
      %3029 = vmatpush2.msra.mxu0 0.0
      %3030 = vmatprep.subr.mxu0 0.0
      %3031 = vmatpush2.msra.mxu0 0.0
      %3032 = vmatprep.subr.mxu0 0.0
      %3033 = vmatpush2.msra.mxu0 0.0
      %3034 = vmatprep.subr.mxu0 0.0
      %3035 = vmatpush2.msra.mxu0 0.0
      %3036 = vmatprep.subr.mxu0 0.0
      %3037 = vmatpush2.msra.mxu0 0.0
      %3038 = vmatprep.subr.mxu0 0.0
      %3039 = vmatpush2.msra.mxu0 0.0
      %3040 = vmatprep.subr.mxu0 0.0
      %3041 = vmatpush2.msra.mxu0 0.0
      %3042 = vmatprep.subr.mxu0 0.0
      %3043 = vmatpush2.msra.mxu0 0.0
      %3044 = vmatprep.subr.mxu0 0.0
      %3045 = vmatpush2.msra.mxu0 0.0
      %3046 = vmatprep.subr.mxu0 0.0
      %3047 = vmatpush2.msra.mxu0 0.0
      %3048 = vmatprep.subr.mxu0 0.0
      %3049 = vmatpush2.msra.mxu0 0.0
      %3050 = vmatprep.subr.mxu0 0.0
      %3051 = vmatpush2.msra.mxu0 0.0
      %3052 = vmatprep.mubr.f32.mxu0 0.0
      %3053 = vmatmul.mubr.f32.gmra.mxu0 %v2893
      %v3054 = vpop.f32.mrf.mxu0
      %v3055 = vadd.f32 0.0, %v3054
      %v3056 = vpop.f32.mrf.mxu0
      %3057 = vmatprep.mubr.f32.mxu0 0.0
      %3058 = vmatmul.mubr.f32.gmra.mxu0 %v2896
      %v3059 = vpop.f32.mrf.mxu0
      %v3060 = vadd.f32 0.0, %v3059
      %v3061 = vpop.f32.mrf.mxu0
      %3062 = vmatprep.mubr.f32.mxu0 0.0
      %3063 = vmatmul.mubr.f32.gmra.mxu0 %v2899
      %v3064 = vpop.f32.mrf.mxu0
      %v3065 = vadd.f32 0.0, %v3064
      %v3066 = vpop.f32.mrf.mxu0
      %3067 = vmatprep.mubr.f32.mxu0 0.0
      %3068 = vmatmul.mubr.f32.gmra.mxu0 %v2902
      %v3069 = vpop.f32.mrf.mxu0
      %v3070 = vadd.f32 0.0, %v3069
      %v3071 = vpop.f32.mrf.mxu0
      %3072 = vmatprep.mubr.f32.mxu0 0.0
      %3073 = vmatmul.mubr.f32.gmra.mxu0 %v2905
      %v3074 = vpop.f32.mrf.mxu0
      %v3075 = vadd.f32 0.0, %v3074
      %v3076 = vpop.f32.mrf.mxu0
      %3077 = vmatprep.mubr.f32.mxu0 0.0
      %3078 = vmatmul.mubr.f32.gmra.mxu0 %v2908
      %v3079 = vpop.f32.mrf.mxu0
      %v3080 = vadd.f32 0.0, %v3079
      %v3081 = vpop.f32.mrf.mxu0
      %3082 = vmatprep.mubr.f32.mxu0 0.0
      %3083 = vmatmul.mubr.f32.gmra.mxu0 %v2911
      %v3084 = vpop.f32.mrf.mxu0
      %v3085 = vadd.f32 0.0, %v3084
      %v3086 = vpop.f32.mrf.mxu0
      %3087 = vmatprep.mubr.f32.mxu0 0.0
      %3088 = vmatmul.mubr.f32.gmra.mxu0 %v2914
      %v3089 = vpop.f32.mrf.mxu0
      %v3090 = vadd.f32 0.0, %v3089
      %v3091 = vpop.f32.mrf.mxu0
      %3092 = vmatprep.mubr.f32.mxu0 0.0
      %3093 = vmatmul.mubr.f32.gmra.mxu0 %v2917
      %v3094 = vpop.f32.mrf.mxu0
      %v3095 = vadd.f32 0.0, %v3094
      %v3096 = vpop.f32.mrf.mxu0
      %3097 = vmatprep.mubr.f32.mxu0 0.0
      %3098 = vmatmul.mubr.f32.gmra.mxu0 %v2920
      %v3099 = vpop.f32.mrf.mxu0
      %v3100 = vadd.f32 0.0, %v3099
      %v3101 = vpop.f32.mrf.mxu0
      %3102 = vmatprep.mubr.f32.mxu0 0.0
      %3103 = vmatmul.mubr.f32.gmra.mxu0 %v2923
      %v3104 = vpop.f32.mrf.mxu0
      %v3105 = vadd.f32 0.0, %v3104
      %v3106 = vpop.f32.mrf.mxu0
      %3107 = vmatprep.mubr.f32.mxu0 0.0
      %3108 = vmatmul.mubr.f32.gmra.mxu0 %v2926
      %v3109 = vpop.f32.mrf.mxu0
      %v3110 = vadd.f32 0.0, %v3109
      %v3111 = vpop.f32.mrf.mxu0
      %3112 = vmatprep.mubr.f32.mxu0 0.0
      %3113 = vmatmul.mubr.f32.gmra.mxu0 %v2929
      %v3114 = vpop.f32.mrf.mxu0
      %v3115 = vadd.f32 0.0, %v3114
      %v3116 = vpop.f32.mrf.mxu0
      %3117 = vmatprep.mubr.f32.mxu0 0.0
      %3118 = vmatmul.mubr.f32.gmra.mxu0 %v2932
      %v3119 = vpop.f32.mrf.mxu0
      %v3120 = vadd.f32 0.0, %v3119
      %v3121 = vpop.f32.mrf.mxu0
      %3122 = vmatprep.mubr.f32.mxu0 0.0
      %3123 = vmatmul.mubr.f32.gmra.mxu0 %v2935
      %v3124 = vpop.f32.mrf.mxu0
      %v3125 = vadd.f32 0.0, %v3124
      %v3126 = vpop.f32.mrf.mxu0
      %3127 = vmatprep.mubr.f32.mxu0 0.0
      %3128 = vmatmul.mubr.f32.gmra.mxu0 %v2938
      %v3129 = vpop.f32.mrf.mxu0
      %v3130 = vadd.f32 0.0, %v3129
      %v3131 = vpop.f32.mrf.mxu0
      %3132 = vmatprep.mubr.f32.mxu0 0.0
      %3133 = vmatmul.mubr.f32.gmra.mxu0 %v2941
      %v3134 = vpop.f32.mrf.mxu0
      %v3135 = vadd.f32 0.0, %v3134
      %v3136 = vpop.f32.mrf.mxu0
      %3137 = vmatprep.mubr.f32.mxu0 0.0
      %3138 = vmatmul.mubr.f32.gmra.mxu0 %v2944
      %v3139 = vpop.f32.mrf.mxu0
      %v3140 = vadd.f32 0.0, %v3139
      %v3141 = vpop.f32.mrf.mxu0
      %3142 = vmatprep.mubr.f32.mxu0 0.0
      %3143 = vmatmul.mubr.f32.gmra.mxu0 %v2947
      %v3144 = vpop.f32.mrf.mxu0
      %v3145 = vadd.f32 0.0, %v3144
      %v3146 = vpop.f32.mrf.mxu0
      %3147 = vmatprep.mubr.f32.mxu0 0.0
      %3148 = vmatmul.mubr.f32.gmra.mxu0 %v2950
      %v3149 = vpop.f32.mrf.mxu0
      %v3150 = vadd.f32 0.0, %v3149
      %v3151 = vpop.f32.mrf.mxu0
      %3152 = vmatprep.mubr.f32.mxu0 0.0
      %3153 = vmatmul.mubr.f32.gmra.mxu0 %v2953
      %v3154 = vpop.f32.mrf.mxu0
      %v3155 = vadd.f32 0.0, %v3154
      %v3156 = vpop.f32.mrf.mxu0
      %3157 = vmatprep.mubr.f32.mxu0 0.0
      %3158 = vmatmul.mubr.f32.gmra.mxu0 %v2956
      %v3159 = vpop.f32.mrf.mxu0
      %v3160 = vadd.f32 0.0, %v3159
      %v3161 = vpop.f32.mrf.mxu0
      %3162 = vmatprep.mubr.f32.mxu0 0.0
      %3163 = vmatmul.mubr.f32.gmra.mxu0 %v2959
      %v3164 = vpop.f32.mrf.mxu0
      %v3165 = vadd.f32 0.0, %v3164
      %v3166 = vpop.f32.mrf.mxu0
      %3167 = vmatprep.mubr.f32.mxu0 0.0
      %3168 = vmatmul.mubr.f32.gmra.mxu0 %v2962
      %v3169 = vpop.f32.mrf.mxu0
      %v3170 = vadd.f32 0.0, %v3169
      %v3171 = vpop.f32.mrf.mxu0
      %3172 = vmatprep.mubr.f32.mxu0 0.0
      %3173 = vmatmul.mubr.f32.gmra.mxu0 %v2965
      %v3174 = vpop.f32.mrf.mxu0
      %v3175 = vadd.f32 0.0, %v3174
      %v3176 = vpop.f32.mrf.mxu0
      %3177 = vmatprep.mubr.f32.mxu0 0.0
      %3178 = vmatmul.mubr.f32.gmra.mxu0 %v2968
      %v3179 = vpop.f32.mrf.mxu0
      %v3180 = vadd.f32 0.0, %v3179
      %v3181 = vpop.f32.mrf.mxu0
      %3182 = vmatprep.mubr.f32.mxu0 0.0
      %3183 = vmatmul.mubr.f32.gmra.mxu0 %v2971
      %v3184 = vpop.f32.mrf.mxu0
      %v3185 = vadd.f32 0.0, %v3184
      %v3186 = vpop.f32.mrf.mxu0
      %3187 = vmatprep.mubr.f32.mxu0 0.0
      %3188 = vmatmul.mubr.f32.gmra.mxu0 %v2974
      %v3189 = vpop.f32.mrf.mxu0
      %v3190 = vadd.f32 0.0, %v3189
      %v3191 = vpop.f32.mrf.mxu0
      %3192 = vmatprep.mubr.f32.mxu0 0.0
      %3193 = vmatmul.mubr.f32.gmra.mxu0 %v2977
      %v3194 = vpop.f32.mrf.mxu0
      %v3195 = vadd.f32 0.0, %v3194
      %v3196 = vpop.f32.mrf.mxu0
      %3197 = vmatprep.mubr.f32.mxu0 0.0
      %3198 = vmatmul.mubr.f32.gmra.mxu0 %v2980
      %v3199 = vpop.f32.mrf.mxu0
      %v3200 = vadd.f32 0.0, %v3199
      %v3201 = vpop.f32.mrf.mxu0
      %3202 = vmatprep.mubr.f32.mxu0 0.0
      %3203 = vmatmul.mubr.f32.gmra.mxu0 %v2983
      %v3204 = vpop.f32.mrf.mxu0
      %v3205 = vadd.f32 0.0, %v3204
      %v3206 = vpop.f32.mrf.mxu0
      %3207 = vmatprep.mubr.f32.mxu0 0.0
      %3208 = vmatmul.mubr.f32.gmra.mxu0 %v2986
      %v3209 = vpop.f32.mrf.mxu0
      %v3210 = vadd.f32 0.0, %v3209
      %v3211 = vpop.f32.mrf.mxu0
      %3212 = vdwg.mxu0
      %v3213 = vadd.f32 %v2695, %v3055
      %v3214 = vadd.f32 %v2700, %v3060
      %v3215 = vadd.f32 %v2705, %v3065
      %v3216 = vadd.f32 %v2710, %v3070
      %v3217 = vadd.f32 %v2715, %v3075
      %v3218 = vadd.f32 %v2720, %v3080
      %v3219 = vadd.f32 %v2725, %v3085
      %v3220 = vadd.f32 %v2730, %v3090
      %v3221 = vadd.f32 %v2735, %v3095
      %v3222 = vadd.f32 %v2740, %v3100
      %v3223 = vadd.f32 %v2745, %v3105
      %v3224 = vadd.f32 %v2750, %v3110
      %v3225 = vadd.f32 %v2755, %v3115
      %v3226 = vadd.f32 %v2760, %v3120
      %v3227 = vadd.f32 %v2765, %v3125
      %v3228 = vadd.f32 %v2770, %v3130
      %v3229 = vadd.f32 %v2775, %v3135
      %v3230 = vadd.f32 %v2780, %v3140
      %v3231 = vadd.f32 %v2785, %v3145
      %v3232 = vadd.f32 %v2790, %v3150
      %v3233 = vadd.f32 %v2795, %v3155
      %v3234 = vadd.f32 %v2800, %v3160
      %v3235 = vadd.f32 %v2805, %v3165
      %v3236 = vadd.f32 %v2810, %v3170
      %v3237 = vadd.f32 %v2815, %v3175
      %v3238 = vadd.f32 %v2820, %v3180
      %v3239 = vadd.f32 %v2825, %v3185
      %v3240 = vadd.f32 %v2830, %v3190
      %v3241 = vadd.f32 %v2835, %v3195
      %v3242 = vadd.f32 %v2840, %v3200
      %v3243 = vadd.f32 %v2845, %v3205
      %v3244 = vadd.f32 %v2850, %v3210
      %v3245 = vlaneseq
      %v3246 = vshrl.u32 %v3245, 7
      %v3247 = vsub.s32 0, %v3246
      %v3248 = vrot.slane %v2133, %v3247
      %v3249 = vadd.f32 %v3213, %v3248
      %v3250 = vadd.f32 %v3214, %v3248
      %v3251 = vadd.f32 %v3215, %v3248
      %v3252 = vadd.f32 %v3216, %v3248
      %v3253 = vadd.f32 %v3217, %v3248
      %v3254 = vadd.f32 %v3218, %v3248
      %v3255 = vadd.f32 %v3219, %v3248
      %v3256 = vadd.f32 %v3220, %v3248
      %v3257 = vadd.f32 %v3221, %v3248
      %v3258 = vadd.f32 %v3222, %v3248
      %v3259 = vadd.f32 %v3223, %v3248
      %v3260 = vadd.f32 %v3224, %v3248
      %v3261 = vadd.f32 %v3225, %v3248
      %v3262 = vadd.f32 %v3226, %v3248
      %v3263 = vadd.f32 %v3227, %v3248
      %v3264 = vadd.f32 %v3228, %v3248
      %v3265 = vadd.f32 %v3229, %v3248
      %v3266 = vadd.f32 %v3230, %v3248
      %v3267 = vadd.f32 %v3231, %v3248
      %v3268 = vadd.f32 %v3232, %v3248
      %v3269 = vadd.f32 %v3233, %v3248
      %v3270 = vadd.f32 %v3234, %v3248
      %v3271 = vadd.f32 %v3235, %v3248
      %v3272 = vadd.f32 %v3236, %v3248
      %v3273 = vadd.f32 %v3237, %v3248
      %v3274 = vadd.f32 %v3238, %v3248
      %v3275 = vadd.f32 %v3239, %v3248
      %v3276 = vadd.f32 %v3240, %v3248
      %v3277 = vadd.f32 %v3241, %v3248
      %v3278 = vadd.f32 %v3242, %v3248
      %v3279 = vadd.f32 %v3243, %v3248
      %v3280 = vadd.f32 %v3244, %v3248
      %3281 = vxpose.xlu0.b32.start [1/16] %v3249, 128
      %3282 = vxpose.xlu0.b32.cont [2/16] %v3250, 128
      %3283 = vxpose.xlu0.b32.cont [3/16] %v3251, 128
      %3284 = vxpose.xlu0.b32.cont [4/16] %v3252, 128
      %3285 = vxpose.xlu0.b32.cont [5/16] %v3253, 128
      %3286 = vxpose.xlu0.b32.cont [6/16] %v3254, 128
      %3287 = vxpose.xlu0.b32.cont [7/16] %v3255, 128
      %3288 = vxpose.xlu0.b32.cont [8/16] %v3256, 128
      %3289 = vxpose.xlu0.b32.cont [9/16] %v3257, 128
      %3290 = vxpose.xlu0.b32.cont [10/16] %v3258, 128
      %3291 = vxpose.xlu0.b32.cont [11/16] %v3259, 128
      %3292 = vxpose.xlu0.b32.cont [12/16] %v3260, 128
      %3293 = vxpose.xlu0.b32.cont [13/16] %v3261, 128
      %3294 = vxpose.xlu0.b32.cont [14/16] %v3262, 128
      %3295 = vxpose.xlu0.b32.cont [15/16] %v3263, 128
      %3296 = vxpose.xlu0.b32.end [16/16] %v3264, 128
      %v3297 = vpop.trf.xlu0
      %v3298 = vpop.trf.xlu0
      %v3299 = vpop.trf.xlu0
      %v3300 = vpop.trf.xlu0
      %v3301 = vpop.trf.xlu0
      %v3302 = vpop.trf.xlu0
      %v3303 = vpop.trf.xlu0
      %v3304 = vpop.trf.xlu0
      %v3305 = vpop.trf.xlu0
      %v3306 = vpop.trf.xlu0
      %v3307 = vpop.trf.xlu0
      %v3308 = vpop.trf.xlu0
      %v3309 = vpop.trf.xlu0
      %v3310 = vpop.trf.xlu0
      %v3311 = vpop.trf.xlu0
      %v3312 = vpop.trf.xlu0
      %3313 = vxpose.xlu0.b32.start [1/16] %v3265, 128
      %3314 = vxpose.xlu0.b32.cont [2/16] %v3266, 128
      %3315 = vxpose.xlu0.b32.cont [3/16] %v3267, 128
      %3316 = vxpose.xlu0.b32.cont [4/16] %v3268, 128
      %3317 = vxpose.xlu0.b32.cont [5/16] %v3269, 128
      %3318 = vxpose.xlu0.b32.cont [6/16] %v3270, 128
      %3319 = vxpose.xlu0.b32.cont [7/16] %v3271, 128
      %3320 = vxpose.xlu0.b32.cont [8/16] %v3272, 128
      %3321 = vxpose.xlu0.b32.cont [9/16] %v3273, 128
      %3322 = vxpose.xlu0.b32.cont [10/16] %v3274, 128
      %3323 = vxpose.xlu0.b32.cont [11/16] %v3275, 128
      %3324 = vxpose.xlu0.b32.cont [12/16] %v3276, 128
      %3325 = vxpose.xlu0.b32.cont [13/16] %v3277, 128
      %3326 = vxpose.xlu0.b32.cont [14/16] %v3278, 128
      %3327 = vxpose.xlu0.b32.cont [15/16] %v3279, 128
      %3328 = vxpose.xlu0.b32.end [16/16] %v3280, 128
      %v3329 = vpop.trf.xlu0
      %v3330 = vpop.trf.xlu0
      %v3331 = vpop.trf.xlu0
      %v3332 = vpop.trf.xlu0
      %v3333 = vpop.trf.xlu0
      %v3334 = vpop.trf.xlu0
      %v3335 = vpop.trf.xlu0
      %v3336 = vpop.trf.xlu0
      %v3337 = vpop.trf.xlu0
      %v3338 = vpop.trf.xlu0
      %v3339 = vpop.trf.xlu0
      %v3340 = vpop.trf.xlu0
      %v3341 = vpop.trf.xlu0
      %v3342 = vpop.trf.xlu0
      %v3343 = vpop.trf.xlu0
      %v3344 = vpop.trf.xlu0
      %v3345 = vadd.f32 %v3297, %v198
      %v3346 = vadd.f32 %v3329, %v199
      %v3347 = vadd.f32 %v3298, %v200
      %v3348 = vadd.f32 %v3330, %v201
      %v3349 = vmax.f32 %v3345, 0.0
      %v3350 = vmax.f32 %v3346, 0.0
      %v3351 = vmax.f32 %v3347, 0.0
      %v3352 = vmax.f32 %v3348, 0.0
      %3353 = vst [vmem:[%s197] sm:$0xff] %v3349
      %3354 = vst [vmem:[%s197 + $0x8] sm:$0xff] %v3350
      %3355 = vst [vmem:[%s197 + $0x10] sm:$0xff] %v3351
      %3356 = vst [vmem:[%s197 + $0x18] sm:$0xff] %v3352
      %p3357 = scmp.lt.s32.totalorder %s15, 1
      %s3358 = scalar_select %p3357, %s15, 1
      %s3359 = smul.addr %s3358, 4
      %s3360 = smul.addr %s3359, 8
      %s3361 = scalar_lea.vmem %s4, %s3360
      // Predicated region
      $region37: #{basic_block_forward.1} parent=35 // pred_check
        %p3362 = pneg %p122
      $region38: #{basic_block_forward.1} parent=35 // pred_check_branch
        %3364 = sbr.rel (%p3362) target = $region40
      $region39: #{basic_block_forward.1} parent=35 // pred_region
        _
      $region40: #{basic_block_forward.1} parent=35 // pred_fallthru
        _
    $region36: #{basic_block_forward.1} parent=5 // pred_fallthru
      _
    %p3365 = scmp.le.s32.totalorder 2, %s10
    // Predicated region
    $region41: #{basic_block_forward.1} parent=5 // pred_check
      %p3366 = pneg %p3365
    $region42: #{basic_block_forward.1} parent=5 // pred_check_branch
      %3368 = sbr.rel (%p3366) target = $region44
    $region43: #{basic_block_forward.1} parent=5 // pred_region
      %s3369 = ssub.s32 %s10, 2
      // Predicated region
      $region45: #{basic_block_forward.1} parent=43 // pred_check
        %p3370 = pneg %p128
      $region46: #{basic_block_forward.1} parent=43 // pred_check_branch
        %3372 = sbr.rel (%p3370) target = $region48
      $region47: #{basic_block_forward.1} parent=43 // pred_region
        %p3373 = scmp.lt.s32.totalorder %s16, 1
        %s3374 = scalar_select %p3373, %s16, 1
        %s3375 = smul.addr %s3374, 4
        %s3376 = smul.addr %s3375, 8
        %s3377 = scalar_lea.vmem %s4, %s3376
      $region48: #{basic_block_forward.1} parent=43 // pred_fallthru
        _
    $region44: #{basic_block_forward.1} parent=5 // pred_fallthru
      _
  $region6: #{basic_block_forward.1} parent=0 // loop_footer
    %s14 = sadd.s32 1, %s10
  $region7: #{basic_block_forward.1} parent=0 // loop_footer_branch
    %9 = sbr.rel target = $region3
  $region8: #{basic_block_forward.1} parent=0 // loop_exit
    _

</llo_original>
